<compile_context>
chip_gen: v7x
topology: tpu7x:2x2x1
jax: 0.10.0
libtpu: 0.0.40
codegen_flags: <defaults>
</compile_context>

<pallas_src>
import functools

import numpy as np
import jax
import jax.numpy as jnp
from jax import lax
from jax.experimental import pallas as pl
from jax.experimental.pallas import tpu as pltpu


# ----------------------------------------------------------------------------
# Path bookkeeping (identical to the PyTorch helper).
# ----------------------------------------------------------------------------
def create_paths(max_depth, branching_factor):
    paths = [[]]
    for node_idx in range(1, branching_factor ** max_depth):
        root_idx = (node_idx - 1) // branching_factor
        branch_idx = (node_idx - 1) % branching_factor
        paths.append(paths[root_idx] + [branch_idx])
    return [[branching_factor + 1]] * 2 + paths


def _round_up(x, m):
    return (x + m - 1) // m * m


# ----------------------------------------------------------------------------
# Pallas kernel: block of positions, all heads packed on lanes.
#   path_ref : VMEM (block_n*dim, depth) int32  -- branch index, row-expanded
#   prim_ref : VMEM (bf, H*dim, H*dim) f32      -- block-diagonal primitives
#   out_ref  : VMEM (block_n*dim, H*dim) f32    -- packed maps (accumulator)
# ----------------------------------------------------------------------------
def _maps_kernel(path_ref, prim_ref, out_ref, *, dim, bf, depth, hd, block_n):
    rows = block_n * dim

    # Identity replicated across heads on the lane axis:
    #   out[n*dim + r, h*dim + c] = (r == c)
    r = lax.broadcasted_iota(jnp.int32, (rows, hd), 0) % dim
    c = lax.broadcasted_iota(jnp.int32, (rows, hd), 1) % dim
    out_ref[...] = (r == c).astype(jnp.float32)

    # Statically unrolled chain over tree depth.  Per (depth, branch) one big
    # weight-stationary matmul with the block-diagonal primitive, then a
    # per-position (per-row) select.  Padded path entries (bf + 1) match no
    # branch k, so those rows keep their current (identity) value -- same
    # semantics as the PyTorch masked-matmul loop.
    for d in range(depth):
        branch_d = path_ref[:, d:d + 1]                         # (rows, 1) int32
        for k in range(bf):
            acc = out_ref[...]                                  # (rows, hd)
            upd = jnp.dot(acc, prim_ref[k],
                          preferred_element_type=jnp.float32)   # default precision
            out_ref[...] = jnp.where(branch_d == k, upd, acc)


def compute_maps_pallas(path_words, prim_bd, *, num_heads, dim, bf, block_n=64):
    """path_words: (N, depth) int32; prim_bd: (bf, H*dim, H*dim) f32.

    Returns maps of shape (N, H, dim, dim) float32."""
    n_pos, depth = path_words.shape
    hd = num_heads * dim

    if n_pos < block_n:
        block_n = max(1, _round_up(n_pos, 8) // 1)
        block_n = _round_up(min(block_n, n_pos if n_pos % 8 == 0 else block_n), 8)
        block_n = max(8, block_n)
    n_pad = _round_up(n_pos, block_n)

    # Pad extra positions with the padding branch value -> identity maps,
    # sliced off afterwards.
    pw = jnp.pad(path_words.astype(jnp.int32),
                 ((0, n_pad - n_pos), (0, 0)), constant_values=bf + 1)
    # Row-expand (one row of branch indices per matrix row) so the in-kernel
    # select mask broadcasts along the lane axis: (rows, 1) vs (rows, hd).
    path_rows = jnp.repeat(pw, dim, axis=0)                     # (n_pad*dim, depth)

    rows = block_n * dim
    kernel = functools.partial(_maps_kernel, dim=dim, bf=bf, depth=depth,
                               hd=hd, block_n=block_n)
    grid_spec = pltpu.PrefetchScalarGridSpec(
        num_scalar_prefetch=0,
        grid=(n_pad // block_n,),
        in_specs=[
            pl.BlockSpec((rows, depth), lambda i: (i, 0)),
            pl.BlockSpec((bf, hd, hd), lambda i: (0, 0, 0)),
        ],
        out_specs=pl.BlockSpec((rows, hd), lambda i: (i, 0)),
    )
    out = pl.pallas_call(
        kernel,
        out_shape=jax.ShapeDtypeStruct((n_pad * dim, hd), jnp.float32),
        grid_spec=grid_spec,
        compiler_params=pltpu.CompilerParams(
            dimension_semantics=("parallel",)),
    )(path_rows, prim_bd)

    # Lane-dense kernel layout -> (N, H, dim, dim) via wrapper-side plumbing.
    maps = out[:n_pos * dim].reshape(n_pos, dim, num_heads, dim)
    return jnp.transpose(maps, (0, 2, 1, 3))


# ----------------------------------------------------------------------------
# Parameter setup (deterministic, mirrors __init__ + `primitives` property).
# ----------------------------------------------------------------------------
def init_unitary_primitives(key, dim, bf, num_heads):
    raw = jax.random.uniform(key, (bf * num_heads + 1, dim, dim),
                             dtype=jnp.float32)                 # torch.rand
    prim = jnp.cumsum(jax.nn.softmax(raw, axis=-1), axis=-1)    # _primitives
    herm = prim - jnp.swapaxes(prim, -1, -2)                    # P - P.mH (real)
    return jax.vmap(jax.scipy.linalg.expm)(herm)                # matrix_exp


def make_block_diag_primitives(unitary, *, num_heads, dim, bf):
    # primitives[:-1] -> (bf, H, dim, dim).  primitives[-1] (sos repr) is never
    # selected (path value -1 never occurs), matching the PyTorch code.
    prim_body = unitary[:-1].reshape(bf, num_heads, dim, dim)
    eye_h = jnp.eye(num_heads, dtype=prim_body.dtype)
    bd = jnp.einsum('khrc,hg->khrgc', prim_body, eye_h)
    prim_bd = bd.reshape(bf, num_heads * dim, num_heads * dim)  # block diagonal
    return prim_body, prim_bd


# ----------------------------------------------------------------------------
# `precompute(positions)` equivalent.
# ----------------------------------------------------------------------------
def precompute(positions, unitary, paths, *, dim, bf, num_heads):
    seqs = [paths[p + 2] for p in positions]
    depth = max(1, max((len(s) for s in seqs), default=0))
    pw = np.full((len(seqs), depth), bf + 1, dtype=np.int32)    # pad_sequence
    for i, s in enumerate(seqs):
        pw[i, :len(s)] = s
    path_words = jnp.asarray(pw)

    # Tree-distance `steps` (integer metadata, plain JAX glue).
    point_mask = path_words != (bf + 1)
    pair_mask = point_mask[:, None] & point_mask[None]
    eq = path_words[:, None] == path_words[None]
    common_prefix = (jnp.cumprod(eq.astype(jnp.int32), axis=-1) > 0) & pair_mask
    sum_lens = point_mask.sum(-1)[:, None] + point_mask.sum(-1)[None]
    steps = sum_lens - 2 * common_prefix.sum(-1)

    prim_body, prim_bd = make_block_diag_primitives(
        unitary, num_heads=num_heads, dim=dim, bf=bf)
    maps = compute_maps_pallas(path_words, prim_bd,
                               num_heads=num_heads, dim=dim, bf=bf)
    # TODO(synk): forward()/adjust_attention() (applicative attention hook) are
    # not translated; forward raises NotImplementedError in the original module.
    return maps, steps, path_words, prim_body


# ----------------------------------------------------------------------------
# Pure-JAX reference of the PyTorch masked matmul loop (for verification).
# ----------------------------------------------------------------------------
def maps_reference(path_words, prim_body, *, dim, num_heads, bf):
    n_pos, depth = path_words.shape
    maps = jnp.broadcast_to(jnp.eye(dim, dtype=jnp.float32),
                            (n_pos, num_heads, dim, dim))
    for d in range(depth):
        for k in range(bf):
            sel = path_words[:, d] == k
            upd = jnp.einsum('nhij,hjk->nhik', maps, prim_body[k],
                             precision=jax.lax.Precision.HIGHEST)
            maps = jnp.where(sel[:, None, None, None], upd, maps)
    return maps


if __name__ == "__main__":
    dim, branching_factor, num_heads = 32, 2, 4
    paths = create_paths(12, branching_factor)

    key = jax.random.PRNGKey(0)
    unitary = init_unitary_primitives(key, dim, branching_factor, num_heads)

    positions = list(range(8))  # 8 tree positions (seq of length 8)

    maps, steps, path_words, prim_body = precompute(
        positions, unitary, paths,
        dim=dim, bf=branching_factor, num_heads=num_heads)
    maps = jax.block_until_ready(maps)
    steps = jax.block_until_ready(steps)

    assert maps.shape == (len(positions), num_heads, dim, dim)
    assert steps.shape == (len(positions), len(positions))

    ref = maps_reference(path_words, prim_body,
                         dim=dim, num_heads=num_heads, bf=branching_factor)
    np.testing.assert_allclose(np.asarray(maps), np.asarray(ref),
                               atol=2e-2, rtol=0)

    print("KERNEL_OK")
</pallas_src>

<mosaic_0001>
module attributes {stable_mosaic.version = 11 : i64} {
  func.func @_maps_kernel(%arg0: i32, %arg1: memref<256x3xi32, #tpu.memory_space<vmem>>, %arg2: memref<2x128x128xf32, #tpu.memory_space<vmem>>, %arg3: memref<256x128xf32, #tpu.memory_space<vmem>>) attributes {dimension_semantics = [#tpu.dimension_semantics<parallel>], iteration_bounds = array<i64: 1>, scalar_prefetch = 0 : i64, scratch_operands = 0 : i64, tpu.core_type = #tpu.core_type<tc>, window_params = [{transform_indices = @transform_0, window_bounds = array<i64: 256, 3>}, {pipeline_mode = #tpu.pipeline_mode<synchronous>, transform_indices = @transform_1, window_bounds = array<i64: 2, 128, 128>}, {transform_indices = @transform_2, window_bounds = array<i64: 256, 128>}]} {
    %0 = tpu.iota {dimensions = array<i32: 0>} : vector<256x128xi32>
    %c32_i32 = arith.constant 32 : i32
    %c0_i32 = arith.constant 0 : i32
    %1 = arith.cmpi eq, %c32_i32, %c0_i32 : i32
    %c1_i32 = arith.constant 1 : i32
    %2 = arith.select %1, %c1_i32, %c32_i32 : i32
    %3 = vector.broadcast %2 : i32 to vector<256x128xi32>
    %4 = arith.remsi %0, %3 : vector<256x128xi32>
    %c0_i32_0 = arith.constant 0 : i32
    %5 = vector.broadcast %c0_i32_0 : i32 to vector<256x128xi32>
    %6 = arith.cmpi ne, %4, %5 : vector<256x128xi32>
    %c0_i32_1 = arith.constant 0 : i32
    %7 = vector.broadcast %c0_i32_1 : i32 to vector<256x128xi32>
    %8 = arith.cmpi slt, %4, %7 : vector<256x128xi32>
    %c0_i32_2 = arith.constant 0 : i32
    %9 = arith.cmpi slt, %2, %c0_i32_2 : i32
    %10 = vector.broadcast %9 : i1 to vector<256x128xi1>
    %11 = vector.broadcast %10 : vector<256x128xi1> to vector<256x128xi1>
    %12 = arith.xori %8, %11 : vector<256x128xi1>
    %13 = arith.andi %12, %6 : vector<256x128xi1>
    %14 = vector.broadcast %2 : i32 to vector<256x128xi32>
    %15 = arith.addi %4, %14 : vector<256x128xi32>
    %16 = arith.select %13, %15, %4 : vector<256x128xi1>, vector<256x128xi32>
    %17 = tpu.iota {dimensions = array<i32: 1>} : vector<256x128xi32>
    %c32_i32_3 = arith.constant 32 : i32
    %c0_i32_4 = arith.constant 0 : i32
    %18 = arith.cmpi eq, %c32_i32_3, %c0_i32_4 : i32
    %c1_i32_5 = arith.constant 1 : i32
    %19 = arith.select %18, %c1_i32_5, %c32_i32_3 : i32
    %20 = vector.broadcast %19 : i32 to vector<256x128xi32>
    %21 = arith.remsi %17, %20 : vector<256x128xi32>
    %c0_i32_6 = arith.constant 0 : i32
    %22 = vector.broadcast %c0_i32_6 : i32 to vector<256x128xi32>
    %23 = arith.cmpi ne, %21, %22 : vector<256x128xi32>
    %c0_i32_7 = arith.constant 0 : i32
    %24 = vector.broadcast %c0_i32_7 : i32 to vector<256x128xi32>
    %25 = arith.cmpi slt, %21, %24 : vector<256x128xi32>
    %c0_i32_8 = arith.constant 0 : i32
    %26 = arith.cmpi slt, %19, %c0_i32_8 : i32
    %27 = vector.broadcast %26 : i1 to vector<256x128xi1>
    %28 = vector.broadcast %27 : vector<256x128xi1> to vector<256x128xi1>
    %29 = arith.xori %25, %28 : vector<256x128xi1>
    %30 = arith.andi %29, %23 : vector<256x128xi1>
    %31 = vector.broadcast %19 : i32 to vector<256x128xi32>
    %32 = arith.addi %21, %31 : vector<256x128xi32>
    %33 = arith.select %30, %32, %21 : vector<256x128xi1>, vector<256x128xi32>
    %34 = arith.cmpi eq, %16, %33 : vector<256x128xi32>
    %35 = arith.extui %34 : vector<256x128xi1> to vector<256x128xi32>
    %36 = arith.sitofp %35 : vector<256x128xi32> to vector<256x128xf32>
    %c0 = arith.constant 0 : index
    %c0_9 = arith.constant 0 : index
    %37 = vector.load %arg3[%c0, %c0_9] : memref<256x128xf32, #tpu.memory_space<vmem>>, vector<256x128xf32>
    tpu.vector_store %arg3[%c0, %c0_9], %36 {strides = array<i32>} : memref<256x128xf32, #tpu.memory_space<vmem>>, vector<256x128xf32>,
    %c0_10 = arith.constant 0 : index
    %c0_11 = arith.constant 0 : index
    %38 = vector.load %arg1[%c0_10, %c0_11] : memref<256x3xi32, #tpu.memory_space<vmem>>, vector<256x1xi32>
    %c0_12 = arith.constant 0 : index
    %c0_13 = arith.constant 0 : index
    %39 = vector.load %arg3[%c0_12, %c0_13] : memref<256x128xf32, #tpu.memory_space<vmem>>, vector<256x128xf32>
    %c0_14 = arith.constant 0 : index
    %c0_15 = arith.constant 0 : index
    %c0_16 = arith.constant 0 : index
    %40 = vector.load %arg2[%c0_14, %c0_15, %c0_16] : memref<2x128x128xf32, #tpu.memory_space<vmem>>, vector<1x128x128xf32>
    %41 = vector.shape_cast %40 : vector<1x128x128xf32> to vector<128x128xf32>
    %cst = arith.constant dense<0.000000e+00> : vector<256x128xf32>
    %42 = tpu.matmul %39, %41, %cst {dimension_numbers = #tpu.dot_dimension_numbers<[1], [0], [0], [1], [0, 0, 1, 1], [], []>} : vector<256x128xf32>, vector<128x128xf32>, vector<256x128xf32> -> vector<256x128xf32>
    %c0_i32_17 = arith.constant 0 : i32
    %43 = vector.broadcast %c0_i32_17 : i32 to vector<256x1xi32>
    %44 = arith.cmpi eq, %38, %43 : vector<256x1xi32>
    %45 = vector.shape_cast %44 : vector<256x1xi1> to vector<256x1xi1>
    %46 = vector.broadcast %45 : vector<256x1xi1> to vector<256x128xi1>
    %47 = arith.select %46, %42, %39 : vector<256x128xi1>, vector<256x128xf32>
    %c0_18 = arith.constant 0 : index
    %c0_19 = arith.constant 0 : index
    %48 = vector.load %arg3[%c0_18, %c0_19] : memref<256x128xf32, #tpu.memory_space<vmem>>, vector<256x128xf32>
    tpu.vector_store %arg3[%c0_18, %c0_19], %47 {strides = array<i32>} : memref<256x128xf32, #tpu.memory_space<vmem>>, vector<256x128xf32>,
    %c0_20 = arith.constant 0 : index
    %c0_21 = arith.constant 0 : index
    %49 = vector.load %arg3[%c0_20, %c0_21] : memref<256x128xf32, #tpu.memory_space<vmem>>, vector<256x128xf32>
    %c1 = arith.constant 1 : index
    %c0_22 = arith.constant 0 : index
    %c0_23 = arith.constant 0 : index
    %50 = vector.load %arg2[%c1, %c0_22, %c0_23] : memref<2x128x128xf32, #tpu.memory_space<vmem>>, vector<1x128x128xf32>
    %51 = vector.shape_cast %50 : vector<1x128x128xf32> to vector<128x128xf32>
    %cst_24 = arith.constant dense<0.000000e+00> : vector<256x128xf32>
    %52 = tpu.matmul %49, %51, %cst_24 {dimension_numbers = #tpu.dot_dimension_numbers<[1], [0], [0], [1], [0, 0, 1, 1], [], []>} : vector<256x128xf32>, vector<128x128xf32>, vector<256x128xf32> -> vector<256x128xf32>
    %c1_i32_25 = arith.constant 1 : i32
    %53 = vector.broadcast %c1_i32_25 : i32 to vector<256x1xi32>
    %54 = arith.cmpi eq, %38, %53 : vector<256x1xi32>
    %55 = vector.shape_cast %54 : vector<256x1xi1> to vector<256x1xi1>
    %56 = vector.broadcast %55 : vector<256x1xi1> to vector<256x128xi1>
    %57 = arith.select %56, %52, %49 : vector<256x128xi1>, vector<256x128xf32>
    %c0_26 = arith.constant 0 : index
    %c0_27 = arith.constant 0 : index
    %58 = vector.load %arg3[%c0_26, %c0_27] : memref<256x128xf32, #tpu.memory_space<vmem>>, vector<256x128xf32>
    tpu.vector_store %arg3[%c0_26, %c0_27], %57 {strides = array<i32>} : memref<256x128xf32, #tpu.memory_space<vmem>>, vector<256x128xf32>,
    %c0_28 = arith.constant 0 : index
    %c1_29 = arith.constant 1 : index
    %59 = vector.load %arg1[%c0_28, %c1_29] : memref<256x3xi32, #tpu.memory_space<vmem>>, vector<256x1xi32>
    %c0_30 = arith.constant 0 : index
    %c0_31 = arith.constant 0 : index
    %60 = vector.load %arg3[%c0_30, %c0_31] : memref<256x128xf32, #tpu.memory_space<vmem>>, vector<256x128xf32>
    %c0_32 = arith.constant 0 : index
    %c0_33 = arith.constant 0 : index
    %c0_34 = arith.constant 0 : index
    %61 = vector.load %arg2[%c0_32, %c0_33, %c0_34] : memref<2x128x128xf32, #tpu.memory_space<vmem>>, vector<1x128x128xf32>
    %62 = vector.shape_cast %61 : vector<1x128x128xf32> to vector<128x128xf32>
    %cst_35 = arith.constant dense<0.000000e+00> : vector<256x128xf32>
    %63 = tpu.matmul %60, %62, %cst_35 {dimension_numbers = #tpu.dot_dimension_numbers<[1], [0], [0], [1], [0, 0, 1, 1], [], []>} : vector<256x128xf32>, vector<128x128xf32>, vector<256x128xf32> -> vector<256x128xf32>
    %c0_i32_36 = arith.constant 0 : i32
    %64 = vector.broadcast %c0_i32_36 : i32 to vector<256x1xi32>
    %65 = arith.cmpi eq, %59, %64 : vector<256x1xi32>
    %66 = vector.shape_cast %65 : vector<256x1xi1> to vector<256x1xi1>
    %67 = vector.broadcast %66 : vector<256x1xi1> to vector<256x128xi1>
    %68 = arith.select %67, %63, %60 : vector<256x128xi1>, vector<256x128xf32>
    %c0_37 = arith.constant 0 : index
    %c0_38 = arith.constant 0 : index
    %69 = vector.load %arg3[%c0_37, %c0_38] : memref<256x128xf32, #tpu.memory_space<vmem>>, vector<256x128xf32>
    tpu.vector_store %arg3[%c0_37, %c0_38], %68 {strides = array<i32>} : memref<256x128xf32, #tpu.memory_space<vmem>>, vector<256x128xf32>,
    %c0_39 = arith.constant 0 : index
    %c0_40 = arith.constant 0 : index
    %70 = vector.load %arg3[%c0_39, %c0_40] : memref<256x128xf32, #tpu.memory_space<vmem>>, vector<256x128xf32>
    %c1_41 = arith.constant 1 : index
    %c0_42 = arith.constant 0 : index
    %c0_43 = arith.constant 0 : index
    %71 = vector.load %arg2[%c1_41, %c0_42, %c0_43] : memref<2x128x128xf32, #tpu.memory_space<vmem>>, vector<1x128x128xf32>
    %72 = vector.shape_cast %71 : vector<1x128x128xf32> to vector<128x128xf32>
    %cst_44 = arith.constant dense<0.000000e+00> : vector<256x128xf32>
    %73 = tpu.matmul %70, %72, %cst_44 {dimension_numbers = #tpu.dot_dimension_numbers<[1], [0], [0], [1], [0, 0, 1, 1], [], []>} : vector<256x128xf32>, vector<128x128xf32>, vector<256x128xf32> -> vector<256x128xf32>
    %c1_i32_45 = arith.constant 1 : i32
    %74 = vector.broadcast %c1_i32_45 : i32 to vector<256x1xi32>
    %75 = arith.cmpi eq, %59, %74 : vector<256x1xi32>
    %76 = vector.shape_cast %75 : vector<256x1xi1> to vector<256x1xi1>
    %77 = vector.broadcast %76 : vector<256x1xi1> to vector<256x128xi1>
    %78 = arith.select %77, %73, %70 : vector<256x128xi1>, vector<256x128xf32>
    %c0_46 = arith.constant 0 : index
    %c0_47 = arith.constant 0 : index
    %79 = vector.load %arg3[%c0_46, %c0_47] : memref<256x128xf32, #tpu.memory_space<vmem>>, vector<256x128xf32>
    tpu.vector_store %arg3[%c0_46, %c0_47], %78 {strides = array<i32>} : memref<256x128xf32, #tpu.memory_space<vmem>>, vector<256x128xf32>,
    %c0_48 = arith.constant 0 : index
    %c2 = arith.constant 2 : index
    %80 = vector.load %arg1[%c0_48, %c2] : memref<256x3xi32, #tpu.memory_space<vmem>>, vector<256x1xi32>
    %c0_49 = arith.constant 0 : index
    %c0_50 = arith.constant 0 : index
    %81 = vector.load %arg3[%c0_49, %c0_50] : memref<256x128xf32, #tpu.memory_space<vmem>>, vector<256x128xf32>
    %c0_51 = arith.constant 0 : index
    %c0_52 = arith.constant 0 : index
    %c0_53 = arith.constant 0 : index
    %82 = vector.load %arg2[%c0_51, %c0_52, %c0_53] : memref<2x128x128xf32, #tpu.memory_space<vmem>>, vector<1x128x128xf32>
    %83 = vector.shape_cast %82 : vector<1x128x128xf32> to vector<128x128xf32>
    %cst_54 = arith.constant dense<0.000000e+00> : vector<256x128xf32>
    %84 = tpu.matmul %81, %83, %cst_54 {dimension_numbers = #tpu.dot_dimension_numbers<[1], [0], [0], [1], [0, 0, 1, 1], [], []>} : vector<256x128xf32>, vector<128x128xf32>, vector<256x128xf32> -> vector<256x128xf32>
    %c0_i32_55 = arith.constant 0 : i32
    %85 = vector.broadcast %c0_i32_55 : i32 to vector<256x1xi32>
    %86 = arith.cmpi eq, %80, %85 : vector<256x1xi32>
    %87 = vector.shape_cast %86 : vector<256x1xi1> to vector<256x1xi1>
    %88 = vector.broadcast %87 : vector<256x1xi1> to vector<256x128xi1>
    %89 = arith.select %88, %84, %81 : vector<256x128xi1>, vector<256x128xf32>
    %c0_56 = arith.constant 0 : index
    %c0_57 = arith.constant 0 : index
    %90 = vector.load %arg3[%c0_56, %c0_57] : memref<256x128xf32, #tpu.memory_space<vmem>>, vector<256x128xf32>
    tpu.vector_store %arg3[%c0_56, %c0_57], %89 {strides = array<i32>} : memref<256x128xf32, #tpu.memory_space<vmem>>, vector<256x128xf32>,
    %c0_58 = arith.constant 0 : index
    %c0_59 = arith.constant 0 : index
    %91 = vector.load %arg3[%c0_58, %c0_59] : memref<256x128xf32, #tpu.memory_space<vmem>>, vector<256x128xf32>
    %c1_60 = arith.constant 1 : index
    %c0_61 = arith.constant 0 : index
    %c0_62 = arith.constant 0 : index
    %92 = vector.load %arg2[%c1_60, %c0_61, %c0_62] : memref<2x128x128xf32, #tpu.memory_space<vmem>>, vector<1x128x128xf32>
    %93 = vector.shape_cast %92 : vector<1x128x128xf32> to vector<128x128xf32>
    %cst_63 = arith.constant dense<0.000000e+00> : vector<256x128xf32>
    %94 = tpu.matmul %91, %93, %cst_63 {dimension_numbers = #tpu.dot_dimension_numbers<[1], [0], [0], [1], [0, 0, 1, 1], [], []>} : vector<256x128xf32>, vector<128x128xf32>, vector<256x128xf32> -> vector<256x128xf32>
    %c1_i32_64 = arith.constant 1 : i32
    %95 = vector.broadcast %c1_i32_64 : i32 to vector<256x1xi32>
    %96 = arith.cmpi eq, %80, %95 : vector<256x1xi32>
    %97 = vector.shape_cast %96 : vector<256x1xi1> to vector<256x1xi1>
    %98 = vector.broadcast %97 : vector<256x1xi1> to vector<256x128xi1>
    %99 = arith.select %98, %94, %91 : vector<256x128xi1>, vector<256x128xf32>
    %c0_65 = arith.constant 0 : index
    %c0_66 = arith.constant 0 : index
    %100 = vector.load %arg3[%c0_65, %c0_66] : memref<256x128xf32, #tpu.memory_space<vmem>>, vector<256x128xf32>
    tpu.vector_store %arg3[%c0_65, %c0_66], %99 {strides = array<i32>} : memref<256x128xf32, #tpu.memory_space<vmem>>, vector<256x128xf32>,
    return
  }
  func.func @transform_0(%arg0: i32) -> (i32, i32) {
    %c0_i32 = arith.constant 0 : i32
    %c0_i32_0 = arith.constant 0 : i32
    return %arg0, %c0_i32 : i32, i32
  }
  func.func @transform_1(%arg0: i32) -> (i32, i32, i32) {
    %c0_i32 = arith.constant 0 : i32
    %c0_i32_0 = arith.constant 0 : i32
    %c0_i32_1 = arith.constant 0 : i32
    %c0_i32_2 = arith.constant 0 : i32
    return %c0_i32, %c0_i32_0, %c0_i32_1 : i32, i32, i32
  }
  func.func @transform_2(%arg0: i32) -> (i32, i32) {
    %c0_i32 = arith.constant 0 : i32
    %c0_i32_0 = arith.constant 0 : i32
    return %arg0, %c0_i32 : i32, i32
  }
}

</mosaic_0001>

<llo_original>
// kernel: tpu_custom_call.1
$region0: #{tpu_custom_call.1}
  #allocation0 [shape = 'u32[]', space=smem, size = 0x4, offset = 0x4, fixed_abs, tag = 'smem constant byte address 0x4 - core index']
  #allocation1 [shape = 'u32[144,128]{1,0:T(1,128)}', space=vmem, size = 0x12000, scoped, tag = 'internal scratch']
  %s0 = inlined_call_operand.vmem [shape: s32[256,3], index: 0, kind: input, shape index: {}]
  %s1 = inlined_call_operand.vmem [shape: f32[2,128,128], index: 1, kind: input, shape index: {}]
  %s2 = inlined_call_operand.hbm [shape: f32[256,128], index: 2, kind: output, shape index: {}]
  %s3 = sld [smem:[#allocation0]]
  $region18: #{tpu_custom_call.1} parent=0
    _
  %s5 = ssub.s32 1, %s3
  %s6 = scalar_select 0, %s5, %s3
  $region1: #{tpu_custom_call.1} parent=0
    #allocation2 [shape = 'u8[131072]{0}', space=vmem, size = 0x20000, scoped, tag = 'output window, operand 0, single buffered']
    #allocation3 [shape = 's32[1]{0}', space=sflag, size = 0x4, scoped, tag = 'scoped memory for tpu_custom_call.1']
    %7 = vsyncpa [#allocation3], 0
    // Predicated region
    $region2: #{tpu_custom_call.1} parent=1 // pred_check
      _
    $region3: #{tpu_custom_call.1} parent=1 // pred_check_branch
      %9 = sbr.rel (0) target = $region5
    $region4: #{tpu_custom_call.1} parent=1 // pred_region
      _
    $region5: #{tpu_custom_call.1} parent=1 // pred_fallthru
      _
    // Predicated region
    $region6: #{tpu_custom_call.1} parent=1 // pred_check
      _
    $region7: #{tpu_custom_call.1} parent=1 // pred_check_branch
      %11 = sbr.rel (0) target = $region9
    $region8: #{tpu_custom_call.1} parent=1 // pred_region
      _
    $region9: #{tpu_custom_call.1} parent=1 // pred_fallthru
      _
    %v12 = vlaneseq
    %v13 = vshrl.u32 %v12, 7
    %v14 = vadd.s32 %v13, 8
    %v15 = vadd.s32 %v13, 16
    %v16 = vadd.s32 %v13, 24
    %v17 = vadd.s32 %v13, 32
    %v18 = vadd.s32 %v13, 40
    %v19 = vadd.s32 %v13, 48
    %v20 = vadd.s32 %v13, 56
    %v21 = vadd.s32 %v13, 64
    %v22 = vadd.s32 %v13, 72
    %v23 = vadd.s32 %v13, 80
    %v24 = vadd.s32 %v13, 88
    %v25 = vadd.s32 %v13, 96
    %v26 = vadd.s32 %v13, 104
    %v27 = vadd.s32 %v13, 112
    %v28 = vadd.s32 %v13, 120
    %v29 = vadd.s32 %v13, 128
    %v30 = vadd.s32 %v13, 136
    %v31 = vadd.s32 %v13, 144
    %v32 = vadd.s32 %v13, 152
    %v33 = vadd.s32 %v13, 160
    %v34 = vadd.s32 %v13, 168
    %v35 = vadd.s32 %v13, 176
    %v36 = vadd.s32 %v13, 184
    %v37 = vadd.s32 %v13, 192
    %v38 = vadd.s32 %v13, 200
    %v39 = vadd.s32 %v13, 208
    %v40 = vadd.s32 %v13, 216
    %v41 = vadd.s32 %v13, 224
    %v42 = vadd.s32 %v13, 232
    %v43 = vadd.s32 %v13, 240
    %v44 = vadd.s32 %v13, 248
    %vm45 = vcmp.lt.s32.totalorder %v13, 0
    %v46 = vsub.s32 0, %v13
    %v47 = vsel %vm45, %v46, %v13
    %v48 = vshrl.u32 %v47, 5
    %v49 = vand.u32 %v47, 31
    %v50 = vsub.s32 0, %v49
    %v51 = vsel %vm45, %v50, %v49
    %vm52 = vcmp.lt.s32.totalorder %v14, 0
    %v53 = vsub.s32 0, %v14
    %v54 = vsel %vm52, %v53, %v14
    %v55 = vshrl.u32 %v54, 5
    %v56 = vand.u32 %v54, 31
    %v57 = vsub.s32 0, %v56
    %v58 = vsel %vm52, %v57, %v56
    %vm59 = vcmp.lt.s32.totalorder %v15, 0
    %v60 = vsub.s32 0, %v15
    %v61 = vsel %vm59, %v60, %v15
    %v62 = vshrl.u32 %v61, 5
    %v63 = vand.u32 %v61, 31
    %v64 = vsub.s32 0, %v63
    %v65 = vsel %vm59, %v64, %v63
    %vm66 = vcmp.lt.s32.totalorder %v16, 0
    %v67 = vsub.s32 0, %v16
    %v68 = vsel %vm66, %v67, %v16
    %v69 = vshrl.u32 %v68, 5
    %v70 = vand.u32 %v68, 31
    %v71 = vsub.s32 0, %v70
    %v72 = vsel %vm66, %v71, %v70
    %vm73 = vcmp.lt.s32.totalorder %v17, 0
    %v74 = vsub.s32 0, %v17
    %v75 = vsel %vm73, %v74, %v17
    %v76 = vshrl.u32 %v75, 5
    %v77 = vand.u32 %v75, 31
    %v78 = vsub.s32 0, %v77
    %v79 = vsel %vm73, %v78, %v77
    %vm80 = vcmp.lt.s32.totalorder %v18, 0
    %v81 = vsub.s32 0, %v18
    %v82 = vsel %vm80, %v81, %v18
    %v83 = vshrl.u32 %v82, 5
    %v84 = vand.u32 %v82, 31
    %v85 = vsub.s32 0, %v84
    %v86 = vsel %vm80, %v85, %v84
    %vm87 = vcmp.lt.s32.totalorder %v19, 0
    %v88 = vsub.s32 0, %v19
    %v89 = vsel %vm87, %v88, %v19
    %v90 = vshrl.u32 %v89, 5
    %v91 = vand.u32 %v89, 31
    %v92 = vsub.s32 0, %v91
    %v93 = vsel %vm87, %v92, %v91
    %vm94 = vcmp.lt.s32.totalorder %v20, 0
    %v95 = vsub.s32 0, %v20
    %v96 = vsel %vm94, %v95, %v20
    %v97 = vshrl.u32 %v96, 5
    %v98 = vand.u32 %v96, 31
    %v99 = vsub.s32 0, %v98
    %v100 = vsel %vm94, %v99, %v98
    %vm101 = vcmp.lt.s32.totalorder %v21, 0
    %v102 = vsub.s32 0, %v21
    %v103 = vsel %vm101, %v102, %v21
    %v104 = vshrl.u32 %v103, 5
    %v105 = vand.u32 %v103, 31
    %v106 = vsub.s32 0, %v105
    %v107 = vsel %vm101, %v106, %v105
    %vm108 = vcmp.lt.s32.totalorder %v22, 0
    %v109 = vsub.s32 0, %v22
    %v110 = vsel %vm108, %v109, %v22
    %v111 = vshrl.u32 %v110, 5
    %v112 = vand.u32 %v110, 31
    %v113 = vsub.s32 0, %v112
    %v114 = vsel %vm108, %v113, %v112
    %vm115 = vcmp.lt.s32.totalorder %v23, 0
    %v116 = vsub.s32 0, %v23
    %v117 = vsel %vm115, %v116, %v23
    %v118 = vshrl.u32 %v117, 5
    %v119 = vand.u32 %v117, 31
    %v120 = vsub.s32 0, %v119
    %v121 = vsel %vm115, %v120, %v119
    %vm122 = vcmp.lt.s32.totalorder %v24, 0
    %v123 = vsub.s32 0, %v24
    %v124 = vsel %vm122, %v123, %v24
    %v125 = vshrl.u32 %v124, 5
    %v126 = vand.u32 %v124, 31
    %v127 = vsub.s32 0, %v126
    %v128 = vsel %vm122, %v127, %v126
    %vm129 = vcmp.lt.s32.totalorder %v25, 0
    %v130 = vsub.s32 0, %v25
    %v131 = vsel %vm129, %v130, %v25
    %v132 = vshrl.u32 %v131, 5
    %v133 = vand.u32 %v131, 31
    %v134 = vsub.s32 0, %v133
    %v135 = vsel %vm129, %v134, %v133
    %vm136 = vcmp.lt.s32.totalorder %v26, 0
    %v137 = vsub.s32 0, %v26
    %v138 = vsel %vm136, %v137, %v26
    %v139 = vshrl.u32 %v138, 5
    %v140 = vand.u32 %v138, 31
    %v141 = vsub.s32 0, %v140
    %v142 = vsel %vm136, %v141, %v140
    %vm143 = vcmp.lt.s32.totalorder %v27, 0
    %v144 = vsub.s32 0, %v27
    %v145 = vsel %vm143, %v144, %v27
    %v146 = vshrl.u32 %v145, 5
    %v147 = vand.u32 %v145, 31
    %v148 = vsub.s32 0, %v147
    %v149 = vsel %vm143, %v148, %v147
    %vm150 = vcmp.lt.s32.totalorder %v28, 0
    %v151 = vsub.s32 0, %v28
    %v152 = vsel %vm150, %v151, %v28
    %v153 = vshrl.u32 %v152, 5
    %v154 = vand.u32 %v152, 31
    %v155 = vsub.s32 0, %v154
    %v156 = vsel %vm150, %v155, %v154
    %vm157 = vcmp.lt.s32.totalorder %v29, 0
    %v158 = vsub.s32 0, %v29
    %v159 = vsel %vm157, %v158, %v29
    %v160 = vshrl.u32 %v159, 5
    %v161 = vand.u32 %v159, 31
    %v162 = vsub.s32 0, %v161
    %v163 = vsel %vm157, %v162, %v161
    %vm164 = vcmp.lt.s32.totalorder %v30, 0
    %v165 = vsub.s32 0, %v30
    %v166 = vsel %vm164, %v165, %v30
    %v167 = vshrl.u32 %v166, 5
    %v168 = vand.u32 %v166, 31
    %v169 = vsub.s32 0, %v168
    %v170 = vsel %vm164, %v169, %v168
    %vm171 = vcmp.lt.s32.totalorder %v31, 0
    %v172 = vsub.s32 0, %v31
    %v173 = vsel %vm171, %v172, %v31
    %v174 = vshrl.u32 %v173, 5
    %v175 = vand.u32 %v173, 31
    %v176 = vsub.s32 0, %v175
    %v177 = vsel %vm171, %v176, %v175
    %vm178 = vcmp.lt.s32.totalorder %v32, 0
    %v179 = vsub.s32 0, %v32
    %v180 = vsel %vm178, %v179, %v32
    %v181 = vshrl.u32 %v180, 5
    %v182 = vand.u32 %v180, 31
    %v183 = vsub.s32 0, %v182
    %v184 = vsel %vm178, %v183, %v182
    %vm185 = vcmp.lt.s32.totalorder %v33, 0
    %v186 = vsub.s32 0, %v33
    %v187 = vsel %vm185, %v186, %v33
    %v188 = vshrl.u32 %v187, 5
    %v189 = vand.u32 %v187, 31
    %v190 = vsub.s32 0, %v189
    %v191 = vsel %vm185, %v190, %v189
    %vm192 = vcmp.lt.s32.totalorder %v34, 0
    %v193 = vsub.s32 0, %v34
    %v194 = vsel %vm192, %v193, %v34
    %v195 = vshrl.u32 %v194, 5
    %v196 = vand.u32 %v194, 31
    %v197 = vsub.s32 0, %v196
    %v198 = vsel %vm192, %v197, %v196
    %vm199 = vcmp.lt.s32.totalorder %v35, 0
    %v200 = vsub.s32 0, %v35
    %v201 = vsel %vm199, %v200, %v35
    %v202 = vshrl.u32 %v201, 5
    %v203 = vand.u32 %v201, 31
    %v204 = vsub.s32 0, %v203
    %v205 = vsel %vm199, %v204, %v203
    %vm206 = vcmp.lt.s32.totalorder %v36, 0
    %v207 = vsub.s32 0, %v36
    %v208 = vsel %vm206, %v207, %v36
    %v209 = vshrl.u32 %v208, 5
    %v210 = vand.u32 %v208, 31
    %v211 = vsub.s32 0, %v210
    %v212 = vsel %vm206, %v211, %v210
    %vm213 = vcmp.lt.s32.totalorder %v37, 0
    %v214 = vsub.s32 0, %v37
    %v215 = vsel %vm213, %v214, %v37
    %v216 = vshrl.u32 %v215, 5
    %v217 = vand.u32 %v215, 31
    %v218 = vsub.s32 0, %v217
    %v219 = vsel %vm213, %v218, %v217
    %vm220 = vcmp.lt.s32.totalorder %v38, 0
    %v221 = vsub.s32 0, %v38
    %v222 = vsel %vm220, %v221, %v38
    %v223 = vshrl.u32 %v222, 5
    %v224 = vand.u32 %v222, 31
    %v225 = vsub.s32 0, %v224
    %v226 = vsel %vm220, %v225, %v224
    %vm227 = vcmp.lt.s32.totalorder %v39, 0
    %v228 = vsub.s32 0, %v39
    %v229 = vsel %vm227, %v228, %v39
    %v230 = vshrl.u32 %v229, 5
    %v231 = vand.u32 %v229, 31
    %v232 = vsub.s32 0, %v231
    %v233 = vsel %vm227, %v232, %v231
    %vm234 = vcmp.lt.s32.totalorder %v40, 0
    %v235 = vsub.s32 0, %v40
    %v236 = vsel %vm234, %v235, %v40
    %v237 = vshrl.u32 %v236, 5
    %v238 = vand.u32 %v236, 31
    %v239 = vsub.s32 0, %v238
    %v240 = vsel %vm234, %v239, %v238
    %vm241 = vcmp.lt.s32.totalorder %v41, 0
    %v242 = vsub.s32 0, %v41
    %v243 = vsel %vm241, %v242, %v41
    %v244 = vshrl.u32 %v243, 5
    %v245 = vand.u32 %v243, 31
    %v246 = vsub.s32 0, %v245
    %v247 = vsel %vm241, %v246, %v245
    %vm248 = vcmp.lt.s32.totalorder %v42, 0
    %v249 = vsub.s32 0, %v42
    %v250 = vsel %vm248, %v249, %v42
    %v251 = vshrl.u32 %v250, 5
    %v252 = vand.u32 %v250, 31
    %v253 = vsub.s32 0, %v252
    %v254 = vsel %vm248, %v253, %v252
    %vm255 = vcmp.lt.s32.totalorder %v43, 0
    %v256 = vsub.s32 0, %v43
    %v257 = vsel %vm255, %v256, %v43
    %v258 = vshrl.u32 %v257, 5
    %v259 = vand.u32 %v257, 31
    %v260 = vsub.s32 0, %v259
    %v261 = vsel %vm255, %v260, %v259
    %vm262 = vcmp.lt.s32.totalorder %v44, 0
    %v263 = vsub.s32 0, %v44
    %v264 = vsel %vm262, %v263, %v44
    %v265 = vshrl.u32 %v264, 5
    %v266 = vand.u32 %v264, 31
    %v267 = vsub.s32 0, %v266
    %v268 = vsel %vm262, %v267, %v266
    %vm269 = vcmp.ne.s32.totalorder %v51, 0
    %vm270 = vcmp.ne.s32.totalorder %v58, 0
    %vm271 = vcmp.ne.s32.totalorder %v65, 0
    %vm272 = vcmp.ne.s32.totalorder %v72, 0
    %vm273 = vcmp.ne.s32.totalorder %v79, 0
    %vm274 = vcmp.ne.s32.totalorder %v86, 0
    %vm275 = vcmp.ne.s32.totalorder %v93, 0
    %vm276 = vcmp.ne.s32.totalorder %v100, 0
    %vm277 = vcmp.ne.s32.totalorder %v107, 0
    %vm278 = vcmp.ne.s32.totalorder %v114, 0
    %vm279 = vcmp.ne.s32.totalorder %v121, 0
    %vm280 = vcmp.ne.s32.totalorder %v128, 0
    %vm281 = vcmp.ne.s32.totalorder %v135, 0
    %vm282 = vcmp.ne.s32.totalorder %v142, 0
    %vm283 = vcmp.ne.s32.totalorder %v149, 0
    %vm284 = vcmp.ne.s32.totalorder %v156, 0
    %vm285 = vcmp.ne.s32.totalorder %v163, 0
    %vm286 = vcmp.ne.s32.totalorder %v170, 0
    %vm287 = vcmp.ne.s32.totalorder %v177, 0
    %vm288 = vcmp.ne.s32.totalorder %v184, 0
    %vm289 = vcmp.ne.s32.totalorder %v191, 0
    %vm290 = vcmp.ne.s32.totalorder %v198, 0
    %vm291 = vcmp.ne.s32.totalorder %v205, 0
    %vm292 = vcmp.ne.s32.totalorder %v212, 0
    %vm293 = vcmp.ne.s32.totalorder %v219, 0
    %vm294 = vcmp.ne.s32.totalorder %v226, 0
    %vm295 = vcmp.ne.s32.totalorder %v233, 0
    %vm296 = vcmp.ne.s32.totalorder %v240, 0
    %vm297 = vcmp.ne.s32.totalorder %v247, 0
    %vm298 = vcmp.ne.s32.totalorder %v254, 0
    %vm299 = vcmp.ne.s32.totalorder %v261, 0
    %vm300 = vcmp.ne.s32.totalorder %v268, 0
    %vm301 = vcmp.lt.s32.totalorder %v51, 0
    %vm302 = vcmp.lt.s32.totalorder %v58, 0
    %vm303 = vcmp.lt.s32.totalorder %v65, 0
    %vm304 = vcmp.lt.s32.totalorder %v72, 0
    %vm305 = vcmp.lt.s32.totalorder %v79, 0
    %vm306 = vcmp.lt.s32.totalorder %v86, 0
    %vm307 = vcmp.lt.s32.totalorder %v93, 0
    %vm308 = vcmp.lt.s32.totalorder %v100, 0
    %vm309 = vcmp.lt.s32.totalorder %v107, 0
    %vm310 = vcmp.lt.s32.totalorder %v114, 0
    %vm311 = vcmp.lt.s32.totalorder %v121, 0
    %vm312 = vcmp.lt.s32.totalorder %v128, 0
    %vm313 = vcmp.lt.s32.totalorder %v135, 0
    %vm314 = vcmp.lt.s32.totalorder %v142, 0
    %vm315 = vcmp.lt.s32.totalorder %v149, 0
    %vm316 = vcmp.lt.s32.totalorder %v156, 0
    %vm317 = vcmp.lt.s32.totalorder %v163, 0
    %vm318 = vcmp.lt.s32.totalorder %v170, 0
    %vm319 = vcmp.lt.s32.totalorder %v177, 0
    %vm320 = vcmp.lt.s32.totalorder %v184, 0
    %vm321 = vcmp.lt.s32.totalorder %v191, 0
    %vm322 = vcmp.lt.s32.totalorder %v198, 0
    %vm323 = vcmp.lt.s32.totalorder %v205, 0
    %vm324 = vcmp.lt.s32.totalorder %v212, 0
    %vm325 = vcmp.lt.s32.totalorder %v219, 0
    %vm326 = vcmp.lt.s32.totalorder %v226, 0
    %vm327 = vcmp.lt.s32.totalorder %v233, 0
    %vm328 = vcmp.lt.s32.totalorder %v240, 0
    %vm329 = vcmp.lt.s32.totalorder %v247, 0
    %vm330 = vcmp.lt.s32.totalorder %v254, 0
    %vm331 = vcmp.lt.s32.totalorder %v261, 0
    %vm332 = vcmp.lt.s32.totalorder %v268, 0
    %vm333 = vmand %vm301, %vm269
    %vm334 = vmand %vm302, %vm270
    %vm335 = vmand %vm303, %vm271
    %vm336 = vmand %vm304, %vm272
    %vm337 = vmand %vm305, %vm273
    %vm338 = vmand %vm306, %vm274
    %vm339 = vmand %vm307, %vm275
    %vm340 = vmand %vm308, %vm276
    %vm341 = vmand %vm309, %vm277
    %vm342 = vmand %vm310, %vm278
    %vm343 = vmand %vm311, %vm279
    %vm344 = vmand %vm312, %vm280
    %vm345 = vmand %vm313, %vm281
    %vm346 = vmand %vm314, %vm282
    %vm347 = vmand %vm315, %vm283
    %vm348 = vmand %vm316, %vm284
    %vm349 = vmand %vm317, %vm285
    %vm350 = vmand %vm318, %vm286
    %vm351 = vmand %vm319, %vm287
    %vm352 = vmand %vm320, %vm288
    %vm353 = vmand %vm321, %vm289
    %vm354 = vmand %vm322, %vm290
    %vm355 = vmand %vm323, %vm291
    %vm356 = vmand %vm324, %vm292
    %vm357 = vmand %vm325, %vm293
    %vm358 = vmand %vm326, %vm294
    %vm359 = vmand %vm327, %vm295
    %vm360 = vmand %vm328, %vm296
    %vm361 = vmand %vm329, %vm297
    %vm362 = vmand %vm330, %vm298
    %vm363 = vmand %vm331, %vm299
    %vm364 = vmand %vm332, %vm300
    %v365 = vadd.s32 %v51, 32
    %v366 = vadd.s32 %v58, 32
    %v367 = vadd.s32 %v65, 32
    %v368 = vadd.s32 %v72, 32
    %v369 = vadd.s32 %v79, 32
    %v370 = vadd.s32 %v86, 32
    %v371 = vadd.s32 %v93, 32
    %v372 = vadd.s32 %v100, 32
    %v373 = vadd.s32 %v107, 32
    %v374 = vadd.s32 %v114, 32
    %v375 = vadd.s32 %v121, 32
    %v376 = vadd.s32 %v128, 32
    %v377 = vadd.s32 %v135, 32
    %v378 = vadd.s32 %v142, 32
    %v379 = vadd.s32 %v149, 32
    %v380 = vadd.s32 %v156, 32
    %v381 = vadd.s32 %v163, 32
    %v382 = vadd.s32 %v170, 32
    %v383 = vadd.s32 %v177, 32
    %v384 = vadd.s32 %v184, 32
    %v385 = vadd.s32 %v191, 32
    %v386 = vadd.s32 %v198, 32
    %v387 = vadd.s32 %v205, 32
    %v388 = vadd.s32 %v212, 32
    %v389 = vadd.s32 %v219, 32
    %v390 = vadd.s32 %v226, 32
    %v391 = vadd.s32 %v233, 32
    %v392 = vadd.s32 %v240, 32
    %v393 = vadd.s32 %v247, 32
    %v394 = vadd.s32 %v254, 32
    %v395 = vadd.s32 %v261, 32
    %v396 = vadd.s32 %v268, 32
    %v397 = vsel %vm333, %v365, %v51
    %v398 = vsel %vm334, %v366, %v58
    %v399 = vsel %vm335, %v367, %v65
    %v400 = vsel %vm336, %v368, %v72
    %v401 = vsel %vm337, %v369, %v79
    %v402 = vsel %vm338, %v370, %v86
    %v403 = vsel %vm339, %v371, %v93
    %v404 = vsel %vm340, %v372, %v100
    %v405 = vsel %vm341, %v373, %v107
    %v406 = vsel %vm342, %v374, %v114
    %v407 = vsel %vm343, %v375, %v121
    %v408 = vsel %vm344, %v376, %v128
    %v409 = vsel %vm345, %v377, %v135
    %v410 = vsel %vm346, %v378, %v142
    %v411 = vsel %vm347, %v379, %v149
    %v412 = vsel %vm348, %v380, %v156
    %v413 = vsel %vm349, %v381, %v163
    %v414 = vsel %vm350, %v382, %v170
    %v415 = vsel %vm351, %v383, %v177
    %v416 = vsel %vm352, %v384, %v184
    %v417 = vsel %vm353, %v385, %v191
    %v418 = vsel %vm354, %v386, %v198
    %v419 = vsel %vm355, %v387, %v205
    %v420 = vsel %vm356, %v388, %v212
    %v421 = vsel %vm357, %v389, %v219
    %v422 = vsel %vm358, %v390, %v226
    %v423 = vsel %vm359, %v391, %v233
    %v424 = vsel %vm360, %v392, %v240
    %v425 = vsel %vm361, %v393, %v247
    %v426 = vsel %vm362, %v394, %v254
    %v427 = vsel %vm363, %v395, %v261
    %v428 = vsel %vm364, %v396, %v268
    %v429 = vlaneseq
    %v430 = vand.u32 %v429, 127
    %vm431 = vcmp.lt.s32.totalorder %v430, 0
    %v432 = vsub.s32 0, %v430
    %v433 = vsel %vm431, %v432, %v430
    %v434 = vshrl.u32 %v433, 5
    %v435 = vand.u32 %v433, 31
    %v436 = vsub.s32 0, %v435
    %v437 = vsel %vm431, %v436, %v435
    %vm438 = vcmp.ne.s32.totalorder %v437, 0
    %vm439 = vcmp.lt.s32.totalorder %v437, 0
    %vm440 = vmand %vm439, %vm438
    %v441 = vadd.s32 %v437, 32
    %v442 = vsel %vm440, %v441, %v437
    %vm443 = vcmp.eq.s32.totalorder %v397, %v442
    %vm444 = vcmp.eq.s32.totalorder %v398, %v442
    %vm445 = vcmp.eq.s32.totalorder %v399, %v442
    %vm446 = vcmp.eq.s32.totalorder %v400, %v442
    %vm447 = vcmp.eq.s32.totalorder %v401, %v442
    %vm448 = vcmp.eq.s32.totalorder %v402, %v442
    %vm449 = vcmp.eq.s32.totalorder %v403, %v442
    %vm450 = vcmp.eq.s32.totalorder %v404, %v442
    %vm451 = vcmp.eq.s32.totalorder %v405, %v442
    %vm452 = vcmp.eq.s32.totalorder %v406, %v442
    %vm453 = vcmp.eq.s32.totalorder %v407, %v442
    %vm454 = vcmp.eq.s32.totalorder %v408, %v442
    %vm455 = vcmp.eq.s32.totalorder %v409, %v442
    %vm456 = vcmp.eq.s32.totalorder %v410, %v442
    %vm457 = vcmp.eq.s32.totalorder %v411, %v442
    %vm458 = vcmp.eq.s32.totalorder %v412, %v442
    %vm459 = vcmp.eq.s32.totalorder %v413, %v442
    %vm460 = vcmp.eq.s32.totalorder %v414, %v442
    %vm461 = vcmp.eq.s32.totalorder %v415, %v442
    %vm462 = vcmp.eq.s32.totalorder %v416, %v442
    %vm463 = vcmp.eq.s32.totalorder %v417, %v442
    %vm464 = vcmp.eq.s32.totalorder %v418, %v442
    %vm465 = vcmp.eq.s32.totalorder %v419, %v442
    %vm466 = vcmp.eq.s32.totalorder %v420, %v442
    %vm467 = vcmp.eq.s32.totalorder %v421, %v442
    %vm468 = vcmp.eq.s32.totalorder %v422, %v442
    %vm469 = vcmp.eq.s32.totalorder %v423, %v442
    %vm470 = vcmp.eq.s32.totalorder %v424, %v442
    %vm471 = vcmp.eq.s32.totalorder %v425, %v442
    %vm472 = vcmp.eq.s32.totalorder %v426, %v442
    %vm473 = vcmp.eq.s32.totalorder %v427, %v442
    %vm474 = vcmp.eq.s32.totalorder %v428, %v442
    %v475 = vsel %vm443, 1, 0
    %v476 = vsel %vm444, 1, 0
    %v477 = vsel %vm445, 1, 0
    %v478 = vsel %vm446, 1, 0
    %v479 = vsel %vm447, 1, 0
    %v480 = vsel %vm448, 1, 0
    %v481 = vsel %vm449, 1, 0
    %v482 = vsel %vm450, 1, 0
    %v483 = vsel %vm451, 1, 0
    %v484 = vsel %vm452, 1, 0
    %v485 = vsel %vm453, 1, 0
    %v486 = vsel %vm454, 1, 0
    %v487 = vsel %vm455, 1, 0
    %v488 = vsel %vm456, 1, 0
    %v489 = vsel %vm457, 1, 0
    %v490 = vsel %vm458, 1, 0
    %v491 = vsel %vm459, 1, 0
    %v492 = vsel %vm460, 1, 0
    %v493 = vsel %vm461, 1, 0
    %v494 = vsel %vm462, 1, 0
    %v495 = vsel %vm463, 1, 0
    %v496 = vsel %vm464, 1, 0
    %v497 = vsel %vm465, 1, 0
    %v498 = vsel %vm466, 1, 0
    %v499 = vsel %vm467, 1, 0
    %v500 = vsel %vm468, 1, 0
    %v501 = vsel %vm469, 1, 0
    %v502 = vsel %vm470, 1, 0
    %v503 = vsel %vm471, 1, 0
    %v504 = vsel %vm472, 1, 0
    %v505 = vsel %vm473, 1, 0
    %v506 = vsel %vm474, 1, 0
    %v507 = vcvt.s32.f32 %v475
    %v508 = vcvt.s32.f32 %v476
    %v509 = vcvt.s32.f32 %v477
    %v510 = vcvt.s32.f32 %v478
    %v511 = vcvt.s32.f32 %v479
    %v512 = vcvt.s32.f32 %v480
    %v513 = vcvt.s32.f32 %v481
    %v514 = vcvt.s32.f32 %v482
    %v515 = vcvt.s32.f32 %v483
    %v516 = vcvt.s32.f32 %v484
    %v517 = vcvt.s32.f32 %v485
    %v518 = vcvt.s32.f32 %v486
    %v519 = vcvt.s32.f32 %v487
    %v520 = vcvt.s32.f32 %v488
    %v521 = vcvt.s32.f32 %v489
    %v522 = vcvt.s32.f32 %v490
    %v523 = vcvt.s32.f32 %v491
    %v524 = vcvt.s32.f32 %v492
    %v525 = vcvt.s32.f32 %v493
    %v526 = vcvt.s32.f32 %v494
    %v527 = vcvt.s32.f32 %v495
    %v528 = vcvt.s32.f32 %v496
    %v529 = vcvt.s32.f32 %v497
    %v530 = vcvt.s32.f32 %v498
    %v531 = vcvt.s32.f32 %v499
    %v532 = vcvt.s32.f32 %v500
    %v533 = vcvt.s32.f32 %v501
    %v534 = vcvt.s32.f32 %v502
    %v535 = vcvt.s32.f32 %v503
    %v536 = vcvt.s32.f32 %v504
    %v537 = vcvt.s32.f32 %v505
    %v538 = vcvt.s32.f32 %v506
    %539 = vst [vmem:[#allocation2] sm:$0xff] %v507
    %540 = vst [vmem:[#allocation2 + $0x8] sm:$0xff] %v508
    %541 = vst [vmem:[#allocation2 + $0x10] sm:$0xff] %v509
    %542 = vst [vmem:[#allocation2 + $0x18] sm:$0xff] %v510
    %543 = vst [vmem:[#allocation2 + $0x20] sm:$0xff] %v511
    %544 = vst [vmem:[#allocation2 + $0x28] sm:$0xff] %v512
    %545 = vst [vmem:[#allocation2 + $0x30] sm:$0xff] %v513
    %546 = vst [vmem:[#allocation2 + $0x38] sm:$0xff] %v514
    %547 = vst [vmem:[#allocation2 + $0x40] sm:$0xff] %v515
    %548 = vst [vmem:[#allocation2 + $0x48] sm:$0xff] %v516
    %549 = vst [vmem:[#allocation2 + $0x50] sm:$0xff] %v517
    %550 = vst [vmem:[#allocation2 + $0x58] sm:$0xff] %v518
    %551 = vst [vmem:[#allocation2 + $0x60] sm:$0xff] %v519
    %552 = vst [vmem:[#allocation2 + $0x68] sm:$0xff] %v520
    %553 = vst [vmem:[#allocation2 + $0x70] sm:$0xff] %v521
    %554 = vst [vmem:[#allocation2 + $0x78] sm:$0xff] %v522
    %555 = vst [vmem:[#allocation2 + $0x80] sm:$0xff] %v523
    %556 = vst [vmem:[#allocation2 + $0x88] sm:$0xff] %v524
    %557 = vst [vmem:[#allocation2 + $0x90] sm:$0xff] %v525
    %558 = vst [vmem:[#allocation2 + $0x98] sm:$0xff] %v526
    %559 = vst [vmem:[#allocation2 + $0xa0] sm:$0xff] %v527
    %560 = vst [vmem:[#allocation2 + $0xa8] sm:$0xff] %v528
    %561 = vst [vmem:[#allocation2 + $0xb0] sm:$0xff] %v529
    %562 = vst [vmem:[#allocation2 + $0xb8] sm:$0xff] %v530
    %563 = vst [vmem:[#allocation2 + $0xc0] sm:$0xff] %v531
    %564 = vst [vmem:[#allocation2 + $0xc8] sm:$0xff] %v532
    %565 = vst [vmem:[#allocation2 + $0xd0] sm:$0xff] %v533
    %566 = vst [vmem:[#allocation2 + $0xd8] sm:$0xff] %v534
    %567 = vst [vmem:[#allocation2 + $0xe0] sm:$0xff] %v535
    %568 = vst [vmem:[#allocation2 + $0xe8] sm:$0xff] %v536
    %569 = vst [vmem:[#allocation2 + $0xf0] sm:$0xff] %v537
    %570 = vst [vmem:[#allocation2 + $0xf8] sm:$0xff] %v538
    %v571 = vld [vmem:[%s0] sm:$0xff]
    %v572 = vld [vmem:[%s0 + $0x8] sm:$0xff]
    %v573 = vld [vmem:[%s0 + $0x10] sm:$0xff]
    %v574 = vld [vmem:[%s0 + $0x18] sm:$0xff]
    %v575 = vld [vmem:[%s0 + $0x20] sm:$0xff]
    %v576 = vld [vmem:[%s0 + $0x28] sm:$0xff]
    %v577 = vld [vmem:[%s0 + $0x30] sm:$0xff]
    %v578 = vld [vmem:[%s0 + $0x38] sm:$0xff]
    %v579 = vld [vmem:[%s0 + $0x40] sm:$0xff]
    %v580 = vld [vmem:[%s0 + $0x48] sm:$0xff]
    %v581 = vld [vmem:[%s0 + $0x50] sm:$0xff]
    %v582 = vld [vmem:[%s0 + $0x58] sm:$0xff]
    %v583 = vld [vmem:[%s0 + $0x60] sm:$0xff]
    %v584 = vld [vmem:[%s0 + $0x68] sm:$0xff]
    %v585 = vld [vmem:[%s0 + $0x70] sm:$0xff]
    %v586 = vld [vmem:[%s0 + $0x78] sm:$0xff]
    %v587 = vld [vmem:[%s0 + $0x80] sm:$0xff]
    %v588 = vld [vmem:[%s0 + $0x88] sm:$0xff]
    %v589 = vld [vmem:[%s0 + $0x90] sm:$0xff]
    %v590 = vld [vmem:[%s0 + $0x98] sm:$0xff]
    %v591 = vld [vmem:[%s0 + $0xa0] sm:$0xff]
    %v592 = vld [vmem:[%s0 + $0xa8] sm:$0xff]
    %v593 = vld [vmem:[%s0 + $0xb0] sm:$0xff]
    %v594 = vld [vmem:[%s0 + $0xb8] sm:$0xff]
    %v595 = vld [vmem:[%s0 + $0xc0] sm:$0xff]
    %v596 = vld [vmem:[%s0 + $0xc8] sm:$0xff]
    %v597 = vld [vmem:[%s0 + $0xd0] sm:$0xff]
    %v598 = vld [vmem:[%s0 + $0xd8] sm:$0xff]
    %v599 = vld [vmem:[%s0 + $0xe0] sm:$0xff]
    %v600 = vld [vmem:[%s0 + $0xe8] sm:$0xff]
    %v601 = vld [vmem:[%s0 + $0xf0] sm:$0xff]
    %v602 = vld [vmem:[%s0 + $0xf8] sm:$0xff]
    %v603 = vld [vmem:[#allocation2] sm:$0xff]
    %v604 = vld [vmem:[#allocation2 + $0x8] sm:$0xff]
    %v605 = vld [vmem:[#allocation2 + $0x10] sm:$0xff]
    %v606 = vld [vmem:[#allocation2 + $0x18] sm:$0xff]
    %v607 = vld [vmem:[#allocation2 + $0x20] sm:$0xff]
    %v608 = vld [vmem:[#allocation2 + $0x28] sm:$0xff]
    %v609 = vld [vmem:[#allocation2 + $0x30] sm:$0xff]
    %v610 = vld [vmem:[#allocation2 + $0x38] sm:$0xff]
    %v611 = vld [vmem:[#allocation2 + $0x40] sm:$0xff]
    %v612 = vld [vmem:[#allocation2 + $0x48] sm:$0xff]
    %v613 = vld [vmem:[#allocation2 + $0x50] sm:$0xff]
    %v614 = vld [vmem:[#allocation2 + $0x58] sm:$0xff]
    %v615 = vld [vmem:[#allocation2 + $0x60] sm:$0xff]
    %v616 = vld [vmem:[#allocation2 + $0x68] sm:$0xff]
    %v617 = vld [vmem:[#allocation2 + $0x70] sm:$0xff]
    %v618 = vld [vmem:[#allocation2 + $0x78] sm:$0xff]
    %v619 = vld [vmem:[#allocation2 + $0x80] sm:$0xff]
    %v620 = vld [vmem:[#allocation2 + $0x88] sm:$0xff]
    %v621 = vld [vmem:[#allocation2 + $0x90] sm:$0xff]
    %v622 = vld [vmem:[#allocation2 + $0x98] sm:$0xff]
    %v623 = vld [vmem:[#allocation2 + $0xa0] sm:$0xff]
    %v624 = vld [vmem:[#allocation2 + $0xa8] sm:$0xff]
    %v625 = vld [vmem:[#allocation2 + $0xb0] sm:$0xff]
    %v626 = vld [vmem:[#allocation2 + $0xb8] sm:$0xff]
    %v627 = vld [vmem:[#allocation2 + $0xc0] sm:$0xff]
    %v628 = vld [vmem:[#allocation2 + $0xc8] sm:$0xff]
    %v629 = vld [vmem:[#allocation2 + $0xd0] sm:$0xff]
    %v630 = vld [vmem:[#allocation2 + $0xd8] sm:$0xff]
    %v631 = vld [vmem:[#allocation2 + $0xe0] sm:$0xff]
    %v632 = vld [vmem:[#allocation2 + $0xe8] sm:$0xff]
    %v633 = vld [vmem:[#allocation2 + $0xf0] sm:$0xff]
    %v634 = vld [vmem:[#allocation2 + $0xf8] sm:$0xff]
    %v635 = vld [vmem:[%s1] sm:$0xff]
    %v636 = vld [vmem:[%s1 + $0x8] sm:$0xff]
    %v637 = vld [vmem:[%s1 + $0x10] sm:$0xff]
    %v638 = vld [vmem:[%s1 + $0x18] sm:$0xff]
    %v639 = vld [vmem:[%s1 + $0x20] sm:$0xff]
    %v640 = vld [vmem:[%s1 + $0x28] sm:$0xff]
    %v641 = vld [vmem:[%s1 + $0x30] sm:$0xff]
    %v642 = vld [vmem:[%s1 + $0x38] sm:$0xff]
    %v643 = vld [vmem:[%s1 + $0x40] sm:$0xff]
    %v644 = vld [vmem:[%s1 + $0x48] sm:$0xff]
    %v645 = vld [vmem:[%s1 + $0x50] sm:$0xff]
    %v646 = vld [vmem:[%s1 + $0x58] sm:$0xff]
    %v647 = vld [vmem:[%s1 + $0x60] sm:$0xff]
    %v648 = vld [vmem:[%s1 + $0x68] sm:$0xff]
    %v649 = vld [vmem:[%s1 + $0x70] sm:$0xff]
    %v650 = vld [vmem:[%s1 + $0x78] sm:$0xff]
    %651 = vmatprep.subr.mxu0 0.0
    %652 = vmatpush1.msra.mxu0 %v635
    %653 = vmatprep.subr.mxu0 0.0
    %654 = vmatpush1.msra.mxu0 %v636
    %655 = vmatprep.subr.mxu0 0.0
    %656 = vmatpush1.msra.mxu0 %v637
    %657 = vmatprep.subr.mxu0 0.0
    %658 = vmatpush1.msra.mxu0 %v638
    %659 = vmatprep.subr.mxu0 0.0
    %660 = vmatpush1.msra.mxu0 %v639
    %661 = vmatprep.subr.mxu0 0.0
    %662 = vmatpush1.msra.mxu0 %v640
    %663 = vmatprep.subr.mxu0 0.0
    %664 = vmatpush1.msra.mxu0 %v641
    %665 = vmatprep.subr.mxu0 0.0
    %666 = vmatpush1.msra.mxu0 %v642
    %667 = vmatprep.subr.mxu0 0.0
    %668 = vmatpush1.msra.mxu0 %v643
    %669 = vmatprep.subr.mxu0 0.0
    %670 = vmatpush1.msra.mxu0 %v644
    %671 = vmatprep.subr.mxu0 0.0
    %672 = vmatpush1.msra.mxu0 %v645
    %673 = vmatprep.subr.mxu0 0.0
    %674 = vmatpush1.msra.mxu0 %v646
    %675 = vmatprep.subr.mxu0 0.0
    %676 = vmatpush1.msra.mxu0 %v647
    %677 = vmatprep.subr.mxu0 0.0
    %678 = vmatpush1.msra.mxu0 %v648
    %679 = vmatprep.subr.mxu0 0.0
    %680 = vmatpush1.msra.mxu0 %v649
    %681 = vmatprep.subr.mxu0 0.0
    %682 = vmatpush1.msra.mxu0 %v650
    %683 = vmatprep.subr.mxu0 0.0
    %684 = vmatpush1.msra.mxu0 0.0
    %685 = vmatprep.subr.mxu0 0.0
    %686 = vmatpush1.msra.mxu0 0.0
    %687 = vmatprep.subr.mxu0 0.0
    %688 = vmatpush1.msra.mxu0 0.0
    %689 = vmatprep.subr.mxu0 0.0
    %690 = vmatpush1.msra.mxu0 0.0
    %691 = vmatprep.subr.mxu0 0.0
    %692 = vmatpush1.msra.mxu0 0.0
    %693 = vmatprep.subr.mxu0 0.0
    %694 = vmatpush1.msra.mxu0 0.0
    %695 = vmatprep.subr.mxu0 0.0
    %696 = vmatpush1.msra.mxu0 0.0
    %697 = vmatprep.subr.mxu0 0.0
    %698 = vmatpush1.msra.mxu0 0.0
    %699 = vmatprep.subr.mxu0 0.0
    %700 = vmatpush1.msra.mxu0 0.0
    %701 = vmatprep.subr.mxu0 0.0
    %702 = vmatpush1.msra.mxu0 0.0
    %703 = vmatprep.subr.mxu0 0.0
    %704 = vmatpush1.msra.mxu0 0.0
    %705 = vmatprep.subr.mxu0 0.0
    %706 = vmatpush1.msra.mxu0 0.0
    %707 = vmatprep.subr.mxu0 0.0
    %708 = vmatpush1.msra.mxu0 0.0
    %709 = vmatprep.subr.mxu0 0.0
    %710 = vmatpush1.msra.mxu0 0.0
    %711 = vmatprep.subr.mxu0 0.0
    %712 = vmatpush1.msra.mxu0 0.0
    %713 = vmatprep.subr.mxu0 0.0
    %714 = vmatpush1.msra.mxu0 0.0
    %715 = vmatprep.mubr.f32.mxu0 0.0
    %716 = vmatmul.mubr.f32.gmra.mrb[0].mxu0 %v603
    %v717 = vpop.f32.mrb[0].mxu0
    %v718 = vadd.f32 0.0, %v717
    %v719 = vpop.f32.mrb[0].mxu0
    %720 = vmatprep.mubr.f32.mxu0 0.0
    %721 = vmatmul.mubr.f32.gmra.mrb[0].mxu0 %v604
    %v722 = vpop.f32.mrb[0].mxu0
    %v723 = vadd.f32 0.0, %v722
    %v724 = vpop.f32.mrb[0].mxu0
    %725 = vmatprep.mubr.f32.mxu0 0.0
    %726 = vmatmul.mubr.f32.gmra.mrb[0].mxu0 %v605
    %v727 = vpop.f32.mrb[0].mxu0
    %v728 = vadd.f32 0.0, %v727
    %v729 = vpop.f32.mrb[0].mxu0
    %730 = vmatprep.mubr.f32.mxu0 0.0
    %731 = vmatmul.mubr.f32.gmra.mrb[0].mxu0 %v606
    %v732 = vpop.f32.mrb[0].mxu0
    %v733 = vadd.f32 0.0, %v732
    %v734 = vpop.f32.mrb[0].mxu0
    %735 = vmatprep.mubr.f32.mxu0 0.0
    %736 = vmatmul.mubr.f32.gmra.mrb[0].mxu0 %v607
    %v737 = vpop.f32.mrb[0].mxu0
    %v738 = vadd.f32 0.0, %v737
    %v739 = vpop.f32.mrb[0].mxu0
    %740 = vmatprep.mubr.f32.mxu0 0.0
    %741 = vmatmul.mubr.f32.gmra.mrb[0].mxu0 %v608
    %v742 = vpop.f32.mrb[0].mxu0
    %v743 = vadd.f32 0.0, %v742
    %v744 = vpop.f32.mrb[0].mxu0
    %745 = vmatprep.mubr.f32.mxu0 0.0
    %746 = vmatmul.mubr.f32.gmra.mrb[0].mxu0 %v609
    %v747 = vpop.f32.mrb[0].mxu0
    %v748 = vadd.f32 0.0, %v747
    %v749 = vpop.f32.mrb[0].mxu0
    %750 = vmatprep.mubr.f32.mxu0 0.0
    %751 = vmatmul.mubr.f32.gmra.mrb[0].mxu0 %v610
    %v752 = vpop.f32.mrb[0].mxu0
    %v753 = vadd.f32 0.0, %v752
    %v754 = vpop.f32.mrb[0].mxu0
    %755 = vmatprep.mubr.f32.mxu0 0.0
    %756 = vmatmul.mubr.f32.gmra.mrb[0].mxu0 %v611
    %v757 = vpop.f32.mrb[0].mxu0
    %v758 = vadd.f32 0.0, %v757
    %v759 = vpop.f32.mrb[0].mxu0
    %760 = vmatprep.mubr.f32.mxu0 0.0
    %761 = vmatmul.mubr.f32.gmra.mrb[0].mxu0 %v612
    %v762 = vpop.f32.mrb[0].mxu0
    %v763 = vadd.f32 0.0, %v762
    %v764 = vpop.f32.mrb[0].mxu0
    %765 = vmatprep.mubr.f32.mxu0 0.0
    %766 = vmatmul.mubr.f32.gmra.mrb[0].mxu0 %v613
    %v767 = vpop.f32.mrb[0].mxu0
    %v768 = vadd.f32 0.0, %v767
    %v769 = vpop.f32.mrb[0].mxu0
    %770 = vmatprep.mubr.f32.mxu0 0.0
    %771 = vmatmul.mubr.f32.gmra.mrb[0].mxu0 %v614
    %v772 = vpop.f32.mrb[0].mxu0
    %v773 = vadd.f32 0.0, %v772
    %v774 = vpop.f32.mrb[0].mxu0
    %775 = vmatprep.mubr.f32.mxu0 0.0
    %776 = vmatmul.mubr.f32.gmra.mrb[0].mxu0 %v615
    %v777 = vpop.f32.mrb[0].mxu0
    %v778 = vadd.f32 0.0, %v777
    %v779 = vpop.f32.mrb[0].mxu0
    %780 = vmatprep.mubr.f32.mxu0 0.0
    %781 = vmatmul.mubr.f32.gmra.mrb[0].mxu0 %v616
    %v782 = vpop.f32.mrb[0].mxu0
    %v783 = vadd.f32 0.0, %v782
    %v784 = vpop.f32.mrb[0].mxu0
    %785 = vmatprep.mubr.f32.mxu0 0.0
    %786 = vmatmul.mubr.f32.gmra.mrb[0].mxu0 %v617
    %v787 = vpop.f32.mrb[0].mxu0
    %v788 = vadd.f32 0.0, %v787
    %v789 = vpop.f32.mrb[0].mxu0
    %790 = vmatprep.mubr.f32.mxu0 0.0
    %791 = vmatmul.mubr.f32.gmra.mrb[0].mxu0 %v618
    %v792 = vpop.f32.mrb[0].mxu0
    %v793 = vadd.f32 0.0, %v792
    %v794 = vpop.f32.mrb[0].mxu0
    %795 = vmatprep.mubr.f32.mxu0 0.0
    %796 = vmatmul.mubr.f32.gmra.mrb[0].mxu0 %v619
    %v797 = vpop.f32.mrb[0].mxu0
    %v798 = vadd.f32 0.0, %v797
    %v799 = vpop.f32.mrb[0].mxu0
    %800 = vmatprep.mubr.f32.mxu0 0.0
    %801 = vmatmul.mubr.f32.gmra.mrb[0].mxu0 %v620
    %v802 = vpop.f32.mrb[0].mxu0
    %v803 = vadd.f32 0.0, %v802
    %v804 = vpop.f32.mrb[0].mxu0
    %805 = vmatprep.mubr.f32.mxu0 0.0
    %806 = vmatmul.mubr.f32.gmra.mrb[0].mxu0 %v621
    %v807 = vpop.f32.mrb[0].mxu0
    %v808 = vadd.f32 0.0, %v807
    %v809 = vpop.f32.mrb[0].mxu0
    %810 = vmatprep.mubr.f32.mxu0 0.0
    %811 = vmatmul.mubr.f32.gmra.mrb[0].mxu0 %v622
    %v812 = vpop.f32.mrb[0].mxu0
    %v813 = vadd.f32 0.0, %v812
    %v814 = vpop.f32.mrb[0].mxu0
    %815 = vmatprep.mubr.f32.mxu0 0.0
    %816 = vmatmul.mubr.f32.gmra.mrb[0].mxu0 %v623
    %v817 = vpop.f32.mrb[0].mxu0
    %v818 = vadd.f32 0.0, %v817
    %v819 = vpop.f32.mrb[0].mxu0
    %820 = vmatprep.mubr.f32.mxu0 0.0
    %821 = vmatmul.mubr.f32.gmra.mrb[0].mxu0 %v624
    %v822 = vpop.f32.mrb[0].mxu0
    %v823 = vadd.f32 0.0, %v822
    %v824 = vpop.f32.mrb[0].mxu0
    %825 = vmatprep.mubr.f32.mxu0 0.0
    %826 = vmatmul.mubr.f32.gmra.mrb[0].mxu0 %v625
    %v827 = vpop.f32.mrb[0].mxu0
    %v828 = vadd.f32 0.0, %v827
    %v829 = vpop.f32.mrb[0].mxu0
    %830 = vmatprep.mubr.f32.mxu0 0.0
    %831 = vmatmul.mubr.f32.gmra.mrb[0].mxu0 %v626
    %v832 = vpop.f32.mrb[0].mxu0
    %v833 = vadd.f32 0.0, %v832
    %v834 = vpop.f32.mrb[0].mxu0
    %835 = vmatprep.mubr.f32.mxu0 0.0
    %836 = vmatmul.mubr.f32.gmra.mrb[0].mxu0 %v627
    %v837 = vpop.f32.mrb[0].mxu0
    %v838 = vadd.f32 0.0, %v837
    %v839 = vpop.f32.mrb[0].mxu0
    %840 = vmatprep.mubr.f32.mxu0 0.0
    %841 = vmatmul.mubr.f32.gmra.mrb[0].mxu0 %v628
    %v842 = vpop.f32.mrb[0].mxu0
    %v843 = vadd.f32 0.0, %v842
    %v844 = vpop.f32.mrb[0].mxu0
    %845 = vmatprep.mubr.f32.mxu0 0.0
    %846 = vmatmul.mubr.f32.gmra.mrb[0].mxu0 %v629
    %v847 = vpop.f32.mrb[0].mxu0
    %v848 = vadd.f32 0.0, %v847
    %v849 = vpop.f32.mrb[0].mxu0
    %850 = vmatprep.mubr.f32.mxu0 0.0
    %851 = vmatmul.mubr.f32.gmra.mrb[0].mxu0 %v630
    %v852 = vpop.f32.mrb[0].mxu0
    %v853 = vadd.f32 0.0, %v852
    %v854 = vpop.f32.mrb[0].mxu0
    %855 = vmatprep.mubr.f32.mxu0 0.0
    %856 = vmatmul.mubr.f32.gmra.mrb[0].mxu0 %v631
    %v857 = vpop.f32.mrb[0].mxu0
    %v858 = vadd.f32 0.0, %v857
    %v859 = vpop.f32.mrb[0].mxu0
    %860 = vmatprep.mubr.f32.mxu0 0.0
    %861 = vmatmul.mubr.f32.gmra.mrb[0].mxu0 %v632
    %v862 = vpop.f32.mrb[0].mxu0
    %v863 = vadd.f32 0.0, %v862
    %v864 = vpop.f32.mrb[0].mxu0
    %865 = vmatprep.mubr.f32.mxu0 0.0
    %866 = vmatmul.mubr.f32.gmra.mrb[0].mxu0 %v633
    %v867 = vpop.f32.mrb[0].mxu0
    %v868 = vadd.f32 0.0, %v867
    %v869 = vpop.f32.mrb[0].mxu0
    %870 = vmatprep.mubr.f32.mxu0 0.0
    %871 = vmatmul.mubr.f32.gmra.mrb[0].mxu0 %v634
    %v872 = vpop.f32.mrb[0].mxu0
    %v873 = vadd.f32 0.0, %v872
    %v874 = vpop.f32.mrb[0].mxu0
    %875 = vdwg.mxu0
    %vm876 = vcmp.eq.s32.totalorder %v571, 0
    %vm877 = vcmp.eq.s32.totalorder %v572, 0
    %vm878 = vcmp.eq.s32.totalorder %v573, 0
    %vm879 = vcmp.eq.s32.totalorder %v574, 0
    %vm880 = vcmp.eq.s32.totalorder %v575, 0
    %vm881 = vcmp.eq.s32.totalorder %v576, 0
    %vm882 = vcmp.eq.s32.totalorder %v577, 0
    %vm883 = vcmp.eq.s32.totalorder %v578, 0
    %vm884 = vcmp.eq.s32.totalorder %v579, 0
    %vm885 = vcmp.eq.s32.totalorder %v580, 0
    %vm886 = vcmp.eq.s32.totalorder %v581, 0
    %vm887 = vcmp.eq.s32.totalorder %v582, 0
    %vm888 = vcmp.eq.s32.totalorder %v583, 0
    %vm889 = vcmp.eq.s32.totalorder %v584, 0
    %vm890 = vcmp.eq.s32.totalorder %v585, 0
    %vm891 = vcmp.eq.s32.totalorder %v586, 0
    %vm892 = vcmp.eq.s32.totalorder %v587, 0
    %vm893 = vcmp.eq.s32.totalorder %v588, 0
    %vm894 = vcmp.eq.s32.totalorder %v589, 0
    %vm895 = vcmp.eq.s32.totalorder %v590, 0
    %vm896 = vcmp.eq.s32.totalorder %v591, 0
    %vm897 = vcmp.eq.s32.totalorder %v592, 0
    %vm898 = vcmp.eq.s32.totalorder %v593, 0
    %vm899 = vcmp.eq.s32.totalorder %v594, 0
    %vm900 = vcmp.eq.s32.totalorder %v595, 0
    %vm901 = vcmp.eq.s32.totalorder %v596, 0
    %vm902 = vcmp.eq.s32.totalorder %v597, 0
    %vm903 = vcmp.eq.s32.totalorder %v598, 0
    %vm904 = vcmp.eq.s32.totalorder %v599, 0
    %vm905 = vcmp.eq.s32.totalorder %v600, 0
    %vm906 = vcmp.eq.s32.totalorder %v601, 0
    %vm907 = vcmp.eq.s32.totalorder %v602, 0
    %v908 = vsel %vm876, 1, 0
    %v909 = vsel %vm877, 1, 0
    %v910 = vsel %vm878, 1, 0
    %v911 = vsel %vm879, 1, 0
    %v912 = vsel %vm880, 1, 0
    %v913 = vsel %vm881, 1, 0
    %v914 = vsel %vm882, 1, 0
    %v915 = vsel %vm883, 1, 0
    %v916 = vsel %vm884, 1, 0
    %v917 = vsel %vm885, 1, 0
    %v918 = vsel %vm886, 1, 0
    %v919 = vsel %vm887, 1, 0
    %v920 = vsel %vm888, 1, 0
    %v921 = vsel %vm889, 1, 0
    %v922 = vsel %vm890, 1, 0
    %v923 = vsel %vm891, 1, 0
    %v924 = vsel %vm892, 1, 0
    %v925 = vsel %vm893, 1, 0
    %v926 = vsel %vm894, 1, 0
    %v927 = vsel %vm895, 1, 0
    %v928 = vsel %vm896, 1, 0
    %v929 = vsel %vm897, 1, 0
    %v930 = vsel %vm898, 1, 0
    %v931 = vsel %vm899, 1, 0
    %v932 = vsel %vm900, 1, 0
    %v933 = vsel %vm901, 1, 0
    %v934 = vsel %vm902, 1, 0
    %v935 = vsel %vm903, 1, 0
    %v936 = vsel %vm904, 1, 0
    %v937 = vsel %vm905, 1, 0
    %v938 = vsel %vm906, 1, 0
    %v939 = vsel %vm907, 1, 0
    %940 = vset.pattern.permute.xlu0 0
    %941 = vperm.xlu0 %940, %v908
    %v942 = vpop.permute.xlu0 %941
    %943 = vset.pattern.permute.xlu0 0
    %944 = vperm.xlu0 %943, %v909
    %v945 = vpop.permute.xlu0 %944
    %946 = vset.pattern.permute.xlu0 0
    %947 = vperm.xlu0 %946, %v910
    %v948 = vpop.permute.xlu0 %947
    %949 = vset.pattern.permute.xlu0 0
    %950 = vperm.xlu0 %949, %v911
    %v951 = vpop.permute.xlu0 %950
    %952 = vset.pattern.permute.xlu0 0
    %953 = vperm.xlu0 %952, %v912
    %v954 = vpop.permute.xlu0 %953
    %955 = vset.pattern.permute.xlu0 0
    %956 = vperm.xlu0 %955, %v913
    %v957 = vpop.permute.xlu0 %956
    %958 = vset.pattern.permute.xlu0 0
    %959 = vperm.xlu0 %958, %v914
    %v960 = vpop.permute.xlu0 %959
    %961 = vset.pattern.permute.xlu0 0
    %962 = vperm.xlu0 %961, %v915
    %v963 = vpop.permute.xlu0 %962
    %964 = vset.pattern.permute.xlu0 0
    %965 = vperm.xlu0 %964, %v916
    %v966 = vpop.permute.xlu0 %965
    %967 = vset.pattern.permute.xlu0 0
    %968 = vperm.xlu0 %967, %v917
    %v969 = vpop.permute.xlu0 %968
    %970 = vset.pattern.permute.xlu0 0
    %971 = vperm.xlu0 %970, %v918
    %v972 = vpop.permute.xlu0 %971
    %973 = vset.pattern.permute.xlu0 0
    %974 = vperm.xlu0 %973, %v919
    %v975 = vpop.permute.xlu0 %974
    %976 = vset.pattern.permute.xlu0 0
    %977 = vperm.xlu0 %976, %v920
    %v978 = vpop.permute.xlu0 %977
    %979 = vset.pattern.permute.xlu0 0
    %980 = vperm.xlu0 %979, %v921
    %v981 = vpop.permute.xlu0 %980
    %982 = vset.pattern.permute.xlu0 0
    %983 = vperm.xlu0 %982, %v922
    %v984 = vpop.permute.xlu0 %983
    %985 = vset.pattern.permute.xlu0 0
    %986 = vperm.xlu0 %985, %v923
    %v987 = vpop.permute.xlu0 %986
    %988 = vset.pattern.permute.xlu0 0
    %989 = vperm.xlu0 %988, %v924
    %v990 = vpop.permute.xlu0 %989
    %991 = vset.pattern.permute.xlu0 0
    %992 = vperm.xlu0 %991, %v925
    %v993 = vpop.permute.xlu0 %992
    %994 = vset.pattern.permute.xlu0 0
    %995 = vperm.xlu0 %994, %v926
    %v996 = vpop.permute.xlu0 %995
    %997 = vset.pattern.permute.xlu0 0
    %998 = vperm.xlu0 %997, %v927
    %v999 = vpop.permute.xlu0 %998
    %1000 = vset.pattern.permute.xlu0 0
    %1001 = vperm.xlu0 %1000, %v928
    %v1002 = vpop.permute.xlu0 %1001
    %1003 = vset.pattern.permute.xlu0 0
    %1004 = vperm.xlu0 %1003, %v929
    %v1005 = vpop.permute.xlu0 %1004
    %1006 = vset.pattern.permute.xlu0 0
    %1007 = vperm.xlu0 %1006, %v930
    %v1008 = vpop.permute.xlu0 %1007
    %1009 = vset.pattern.permute.xlu0 0
    %1010 = vperm.xlu0 %1009, %v931
    %v1011 = vpop.permute.xlu0 %1010
    %1012 = vset.pattern.permute.xlu0 0
    %1013 = vperm.xlu0 %1012, %v932
    %v1014 = vpop.permute.xlu0 %1013
    %1015 = vset.pattern.permute.xlu0 0
    %1016 = vperm.xlu0 %1015, %v933
    %v1017 = vpop.permute.xlu0 %1016
    %1018 = vset.pattern.permute.xlu0 0
    %1019 = vperm.xlu0 %1018, %v934
    %v1020 = vpop.permute.xlu0 %1019
    %1021 = vset.pattern.permute.xlu0 0
    %1022 = vperm.xlu0 %1021, %v935
    %v1023 = vpop.permute.xlu0 %1022
    %1024 = vset.pattern.permute.xlu0 0
    %1025 = vperm.xlu0 %1024, %v936
    %v1026 = vpop.permute.xlu0 %1025
    %1027 = vset.pattern.permute.xlu0 0
    %1028 = vperm.xlu0 %1027, %v937
    %v1029 = vpop.permute.xlu0 %1028
    %1030 = vset.pattern.permute.xlu0 0
    %1031 = vperm.xlu0 %1030, %v938
    %v1032 = vpop.permute.xlu0 %1031
    %1033 = vset.pattern.permute.xlu0 0
    %1034 = vperm.xlu0 %1033, %v939
    %v1035 = vpop.permute.xlu0 %1034
    %vm1036 = vcmp.eq.s32.totalorder %v942, 1
    %vm1037 = vcmp.eq.s32.totalorder %v945, 1
    %vm1038 = vcmp.eq.s32.totalorder %v948, 1
    %vm1039 = vcmp.eq.s32.totalorder %v951, 1
    %vm1040 = vcmp.eq.s32.totalorder %v954, 1
    %vm1041 = vcmp.eq.s32.totalorder %v957, 1
    %vm1042 = vcmp.eq.s32.totalorder %v960, 1
    %vm1043 = vcmp.eq.s32.totalorder %v963, 1
    %vm1044 = vcmp.eq.s32.totalorder %v966, 1
    %vm1045 = vcmp.eq.s32.totalorder %v969, 1
    %vm1046 = vcmp.eq.s32.totalorder %v972, 1
    %vm1047 = vcmp.eq.s32.totalorder %v975, 1
    %vm1048 = vcmp.eq.s32.totalorder %v978, 1
    %vm1049 = vcmp.eq.s32.totalorder %v981, 1
    %vm1050 = vcmp.eq.s32.totalorder %v984, 1
    %vm1051 = vcmp.eq.s32.totalorder %v987, 1
    %vm1052 = vcmp.eq.s32.totalorder %v990, 1
    %vm1053 = vcmp.eq.s32.totalorder %v993, 1
    %vm1054 = vcmp.eq.s32.totalorder %v996, 1
    %vm1055 = vcmp.eq.s32.totalorder %v999, 1
    %vm1056 = vcmp.eq.s32.totalorder %v1002, 1
    %vm1057 = vcmp.eq.s32.totalorder %v1005, 1
    %vm1058 = vcmp.eq.s32.totalorder %v1008, 1
    %vm1059 = vcmp.eq.s32.totalorder %v1011, 1
    %vm1060 = vcmp.eq.s32.totalorder %v1014, 1
    %vm1061 = vcmp.eq.s32.totalorder %v1017, 1
    %vm1062 = vcmp.eq.s32.totalorder %v1020, 1
    %vm1063 = vcmp.eq.s32.totalorder %v1023, 1
    %vm1064 = vcmp.eq.s32.totalorder %v1026, 1
    %vm1065 = vcmp.eq.s32.totalorder %v1029, 1
    %vm1066 = vcmp.eq.s32.totalorder %v1032, 1
    %vm1067 = vcmp.eq.s32.totalorder %v1035, 1
    %v1068 = vsel %vm1036, %v718, %v603
    %v1069 = vsel %vm1037, %v723, %v604
    %v1070 = vsel %vm1038, %v728, %v605
    %v1071 = vsel %vm1039, %v733, %v606
    %v1072 = vsel %vm1040, %v738, %v607
    %v1073 = vsel %vm1041, %v743, %v608
    %v1074 = vsel %vm1042, %v748, %v609
    %v1075 = vsel %vm1043, %v753, %v610
    %v1076 = vsel %vm1044, %v758, %v611
    %v1077 = vsel %vm1045, %v763, %v612
    %v1078 = vsel %vm1046, %v768, %v613
    %v1079 = vsel %vm1047, %v773, %v614
    %v1080 = vsel %vm1048, %v778, %v615
    %v1081 = vsel %vm1049, %v783, %v616
    %v1082 = vsel %vm1050, %v788, %v617
    %v1083 = vsel %vm1051, %v793, %v618
    %v1084 = vsel %vm1052, %v798, %v619
    %v1085 = vsel %vm1053, %v803, %v620
    %v1086 = vsel %vm1054, %v808, %v621
    %v1087 = vsel %vm1055, %v813, %v622
    %v1088 = vsel %vm1056, %v818, %v623
    %v1089 = vsel %vm1057, %v823, %v624
    %v1090 = vsel %vm1058, %v828, %v625
    %v1091 = vsel %vm1059, %v833, %v626
    %v1092 = vsel %vm1060, %v838, %v627
    %v1093 = vsel %vm1061, %v843, %v628
    %v1094 = vsel %vm1062, %v848, %v629
    %v1095 = vsel %vm1063, %v853, %v630
    %v1096 = vsel %vm1064, %v858, %v631
    %v1097 = vsel %vm1065, %v863, %v632
    %v1098 = vsel %vm1066, %v868, %v633
    %v1099 = vsel %vm1067, %v873, %v634
    %1100 = vst [vmem:[#allocation2] sm:$0xff] %v1068
    %1101 = vst [vmem:[#allocation2 + $0x8] sm:$0xff] %v1069
    %1102 = vst [vmem:[#allocation2 + $0x10] sm:$0xff] %v1070
    %1103 = vst [vmem:[#allocation2 + $0x18] sm:$0xff] %v1071
    %1104 = vst [vmem:[#allocation2 + $0x20] sm:$0xff] %v1072
    %1105 = vst [vmem:[#allocation2 + $0x28] sm:$0xff] %v1073
    %1106 = vst [vmem:[#allocation2 + $0x30] sm:$0xff] %v1074
    %1107 = vst [vmem:[#allocation2 + $0x38] sm:$0xff] %v1075
    %1108 = vst [vmem:[#allocation2 + $0x40] sm:$0xff] %v1076
    %1109 = vst [vmem:[#allocation2 + $0x48] sm:$0xff] %v1077
    %1110 = vst [vmem:[#allocation2 + $0x50] sm:$0xff] %v1078
    %1111 = vst [vmem:[#allocation2 + $0x58] sm:$0xff] %v1079
    %1112 = vst [vmem:[#allocation2 + $0x60] sm:$0xff] %v1080
    %1113 = vst [vmem:[#allocation2 + $0x68] sm:$0xff] %v1081
    %1114 = vst [vmem:[#allocation2 + $0x70] sm:$0xff] %v1082
    %1115 = vst [vmem:[#allocation2 + $0x78] sm:$0xff] %v1083
    %1116 = vst [vmem:[#allocation2 + $0x80] sm:$0xff] %v1084
    %1117 = vst [vmem:[#allocation2 + $0x88] sm:$0xff] %v1085
    %1118 = vst [vmem:[#allocation2 + $0x90] sm:$0xff] %v1086
    %1119 = vst [vmem:[#allocation2 + $0x98] sm:$0xff] %v1087
    %1120 = vst [vmem:[#allocation2 + $0xa0] sm:$0xff] %v1088
    %1121 = vst [vmem:[#allocation2 + $0xa8] sm:$0xff] %v1089
    %1122 = vst [vmem:[#allocation2 + $0xb0] sm:$0xff] %v1090
    %1123 = vst [vmem:[#allocation2 + $0xb8] sm:$0xff] %v1091
    %1124 = vst [vmem:[#allocation2 + $0xc0] sm:$0xff] %v1092
    %1125 = vst [vmem:[#allocation2 + $0xc8] sm:$0xff] %v1093
    %1126 = vst [vmem:[#allocation2 + $0xd0] sm:$0xff] %v1094
    %1127 = vst [vmem:[#allocation2 + $0xd8] sm:$0xff] %v1095
    %1128 = vst [vmem:[#allocation2 + $0xe0] sm:$0xff] %v1096
    %1129 = vst [vmem:[#allocation2 + $0xe8] sm:$0xff] %v1097
    %1130 = vst [vmem:[#allocation2 + $0xf0] sm:$0xff] %v1098
    %1131 = vst [vmem:[#allocation2 + $0xf8] sm:$0xff] %v1099
    %v1132 = vld [vmem:[#allocation2] sm:$0xff]
    %v1133 = vld [vmem:[#allocation2 + $0x8] sm:$0xff]
    %v1134 = vld [vmem:[#allocation2 + $0x10] sm:$0xff]
    %v1135 = vld [vmem:[#allocation2 + $0x18] sm:$0xff]
    %v1136 = vld [vmem:[#allocation2 + $0x20] sm:$0xff]
    %v1137 = vld [vmem:[#allocation2 + $0x28] sm:$0xff]
    %v1138 = vld [vmem:[#allocation2 + $0x30] sm:$0xff]
    %v1139 = vld [vmem:[#allocation2 + $0x38] sm:$0xff]
    %v1140 = vld [vmem:[#allocation2 + $0x40] sm:$0xff]
    %v1141 = vld [vmem:[#allocation2 + $0x48] sm:$0xff]
    %v1142 = vld [vmem:[#allocation2 + $0x50] sm:$0xff]
    %v1143 = vld [vmem:[#allocation2 + $0x58] sm:$0xff]
    %v1144 = vld [vmem:[#allocation2 + $0x60] sm:$0xff]
    %v1145 = vld [vmem:[#allocation2 + $0x68] sm:$0xff]
    %v1146 = vld [vmem:[#allocation2 + $0x70] sm:$0xff]
    %v1147 = vld [vmem:[#allocation2 + $0x78] sm:$0xff]
    %v1148 = vld [vmem:[#allocation2 + $0x80] sm:$0xff]
    %v1149 = vld [vmem:[#allocation2 + $0x88] sm:$0xff]
    %v1150 = vld [vmem:[#allocation2 + $0x90] sm:$0xff]
    %v1151 = vld [vmem:[#allocation2 + $0x98] sm:$0xff]
    %v1152 = vld [vmem:[#allocation2 + $0xa0] sm:$0xff]
    %v1153 = vld [vmem:[#allocation2 + $0xa8] sm:$0xff]
    %v1154 = vld [vmem:[#allocation2 + $0xb0] sm:$0xff]
    %v1155 = vld [vmem:[#allocation2 + $0xb8] sm:$0xff]
    %v1156 = vld [vmem:[#allocation2 + $0xc0] sm:$0xff]
    %v1157 = vld [vmem:[#allocation2 + $0xc8] sm:$0xff]
    %v1158 = vld [vmem:[#allocation2 + $0xd0] sm:$0xff]
    %v1159 = vld [vmem:[#allocation2 + $0xd8] sm:$0xff]
    %v1160 = vld [vmem:[#allocation2 + $0xe0] sm:$0xff]
    %v1161 = vld [vmem:[#allocation2 + $0xe8] sm:$0xff]
    %v1162 = vld [vmem:[#allocation2 + $0xf0] sm:$0xff]
    %v1163 = vld [vmem:[#allocation2 + $0xf8] sm:$0xff]
    %s1164 = scalar_lea.vmem %s1, 128
    %v1165 = vld [vmem:[%s1164] sm:$0xff]
    %v1166 = vld [vmem:[%s1164 + $0x8] sm:$0xff]
    %v1167 = vld [vmem:[%s1164 + $0x10] sm:$0xff]
    %v1168 = vld [vmem:[%s1164 + $0x18] sm:$0xff]
    %v1169 = vld [vmem:[%s1164 + $0x20] sm:$0xff]
    %v1170 = vld [vmem:[%s1164 + $0x28] sm:$0xff]
    %v1171 = vld [vmem:[%s1164 + $0x30] sm:$0xff]
    %v1172 = vld [vmem:[%s1164 + $0x38] sm:$0xff]
    %v1173 = vld [vmem:[%s1164 + $0x40] sm:$0xff]
    %v1174 = vld [vmem:[%s1164 + $0x48] sm:$0xff]
    %v1175 = vld [vmem:[%s1164 + $0x50] sm:$0xff]
    %v1176 = vld [vmem:[%s1164 + $0x58] sm:$0xff]
    %v1177 = vld [vmem:[%s1164 + $0x60] sm:$0xff]
    %v1178 = vld [vmem:[%s1164 + $0x68] sm:$0xff]
    %v1179 = vld [vmem:[%s1164 + $0x70] sm:$0xff]
    %v1180 = vld [vmem:[%s1164 + $0x78] sm:$0xff]
    %1181 = vmatprep.subr.mxu0 0.0
    %1182 = vmatpush1.msra.mxu0 %v1165
    %1183 = vmatprep.subr.mxu0 0.0
    %1184 = vmatpush1.msra.mxu0 %v1166
    %1185 = vmatprep.subr.mxu0 0.0
    %1186 = vmatpush1.msra.mxu0 %v1167
    %1187 = vmatprep.subr.mxu0 0.0
    %1188 = vmatpush1.msra.mxu0 %v1168
    %1189 = vmatprep.subr.mxu0 0.0
    %1190 = vmatpush1.msra.mxu0 %v1169
    %1191 = vmatprep.subr.mxu0 0.0
    %1192 = vmatpush1.msra.mxu0 %v1170
    %1193 = vmatprep.subr.mxu0 0.0
    %1194 = vmatpush1.msra.mxu0 %v1171
    %1195 = vmatprep.subr.mxu0 0.0
    %1196 = vmatpush1.msra.mxu0 %v1172
    %1197 = vmatprep.subr.mxu0 0.0
    %1198 = vmatpush1.msra.mxu0 %v1173
    %1199 = vmatprep.subr.mxu0 0.0
    %1200 = vmatpush1.msra.mxu0 %v1174
    %1201 = vmatprep.subr.mxu0 0.0
    %1202 = vmatpush1.msra.mxu0 %v1175
    %1203 = vmatprep.subr.mxu0 0.0
    %1204 = vmatpush1.msra.mxu0 %v1176
    %1205 = vmatprep.subr.mxu0 0.0
    %1206 = vmatpush1.msra.mxu0 %v1177
    %1207 = vmatprep.subr.mxu0 0.0
    %1208 = vmatpush1.msra.mxu0 %v1178
    %1209 = vmatprep.subr.mxu0 0.0
    %1210 = vmatpush1.msra.mxu0 %v1179
    %1211 = vmatprep.subr.mxu0 0.0
    %1212 = vmatpush1.msra.mxu0 %v1180
    %1213 = vmatprep.subr.mxu0 0.0
    %1214 = vmatpush1.msra.mxu0 0.0
    %1215 = vmatprep.subr.mxu0 0.0
    %1216 = vmatpush1.msra.mxu0 0.0
    %1217 = vmatprep.subr.mxu0 0.0
    %1218 = vmatpush1.msra.mxu0 0.0
    %1219 = vmatprep.subr.mxu0 0.0
    %1220 = vmatpush1.msra.mxu0 0.0
    %1221 = vmatprep.subr.mxu0 0.0
    %1222 = vmatpush1.msra.mxu0 0.0
    %1223 = vmatprep.subr.mxu0 0.0
    %1224 = vmatpush1.msra.mxu0 0.0
    %1225 = vmatprep.subr.mxu0 0.0
    %1226 = vmatpush1.msra.mxu0 0.0
    %1227 = vmatprep.subr.mxu0 0.0
    %1228 = vmatpush1.msra.mxu0 0.0
    %1229 = vmatprep.subr.mxu0 0.0
    %1230 = vmatpush1.msra.mxu0 0.0
    %1231 = vmatprep.subr.mxu0 0.0
    %1232 = vmatpush1.msra.mxu0 0.0
    %1233 = vmatprep.subr.mxu0 0.0
    %1234 = vmatpush1.msra.mxu0 0.0
    %1235 = vmatprep.subr.mxu0 0.0
    %1236 = vmatpush1.msra.mxu0 0.0
    %1237 = vmatprep.subr.mxu0 0.0
    %1238 = vmatpush1.msra.mxu0 0.0
    %1239 = vmatprep.subr.mxu0 0.0
    %1240 = vmatpush1.msra.mxu0 0.0
    %1241 = vmatprep.subr.mxu0 0.0
    %1242 = vmatpush1.msra.mxu0 0.0
    %1243 = vmatprep.subr.mxu0 0.0
    %1244 = vmatpush1.msra.mxu0 0.0
    %1245 = vmatprep.mubr.f32.mxu0 0.0
    %1246 = vmatmul.mubr.f32.gmra.mrb[0].mxu0 %v1132
    %v1247 = vpop.f32.mrb[0].mxu0
    %v1248 = vadd.f32 0.0, %v1247
    %v1249 = vpop.f32.mrb[0].mxu0
    %1250 = vmatprep.mubr.f32.mxu0 0.0
    %1251 = vmatmul.mubr.f32.gmra.mrb[0].mxu0 %v1133
    %v1252 = vpop.f32.mrb[0].mxu0
    %v1253 = vadd.f32 0.0, %v1252
    %v1254 = vpop.f32.mrb[0].mxu0
    %1255 = vmatprep.mubr.f32.mxu0 0.0
    %1256 = vmatmul.mubr.f32.gmra.mrb[0].mxu0 %v1134
    %v1257 = vpop.f32.mrb[0].mxu0
    %v1258 = vadd.f32 0.0, %v1257
    %v1259 = vpop.f32.mrb[0].mxu0
    %1260 = vmatprep.mubr.f32.mxu0 0.0
    %1261 = vmatmul.mubr.f32.gmra.mrb[0].mxu0 %v1135
    %v1262 = vpop.f32.mrb[0].mxu0
    %v1263 = vadd.f32 0.0, %v1262
    %v1264 = vpop.f32.mrb[0].mxu0
    %1265 = vmatprep.mubr.f32.mxu0 0.0
    %1266 = vmatmul.mubr.f32.gmra.mrb[0].mxu0 %v1136
    %v1267 = vpop.f32.mrb[0].mxu0
    %v1268 = vadd.f32 0.0, %v1267
    %v1269 = vpop.f32.mrb[0].mxu0
    %1270 = vmatprep.mubr.f32.mxu0 0.0
    %1271 = vmatmul.mubr.f32.gmra.mrb[0].mxu0 %v1137
    %v1272 = vpop.f32.mrb[0].mxu0
    %v1273 = vadd.f32 0.0, %v1272
    %v1274 = vpop.f32.mrb[0].mxu0
    %1275 = vmatprep.mubr.f32.mxu0 0.0
    %1276 = vmatmul.mubr.f32.gmra.mrb[0].mxu0 %v1138
    %v1277 = vpop.f32.mrb[0].mxu0
    %v1278 = vadd.f32 0.0, %v1277
    %v1279 = vpop.f32.mrb[0].mxu0
    %1280 = vmatprep.mubr.f32.mxu0 0.0
    %1281 = vmatmul.mubr.f32.gmra.mrb[0].mxu0 %v1139
    %v1282 = vpop.f32.mrb[0].mxu0
    %v1283 = vadd.f32 0.0, %v1282
    %v1284 = vpop.f32.mrb[0].mxu0
    %1285 = vmatprep.mubr.f32.mxu0 0.0
    %1286 = vmatmul.mubr.f32.gmra.mrb[0].mxu0 %v1140
    %v1287 = vpop.f32.mrb[0].mxu0
    %v1288 = vadd.f32 0.0, %v1287
    %v1289 = vpop.f32.mrb[0].mxu0
    %1290 = vmatprep.mubr.f32.mxu0 0.0
    %1291 = vmatmul.mubr.f32.gmra.mrb[0].mxu0 %v1141
    %v1292 = vpop.f32.mrb[0].mxu0
    %v1293 = vadd.f32 0.0, %v1292
    %v1294 = vpop.f32.mrb[0].mxu0
    %1295 = vmatprep.mubr.f32.mxu0 0.0
    %1296 = vmatmul.mubr.f32.gmra.mrb[0].mxu0 %v1142
    %v1297 = vpop.f32.mrb[0].mxu0
    %v1298 = vadd.f32 0.0, %v1297
    %v1299 = vpop.f32.mrb[0].mxu0
    %1300 = vmatprep.mubr.f32.mxu0 0.0
    %1301 = vmatmul.mubr.f32.gmra.mrb[0].mxu0 %v1143
    %v1302 = vpop.f32.mrb[0].mxu0
    %v1303 = vadd.f32 0.0, %v1302
    %v1304 = vpop.f32.mrb[0].mxu0
    %1305 = vmatprep.mubr.f32.mxu0 0.0
    %1306 = vmatmul.mubr.f32.gmra.mrb[0].mxu0 %v1144
    %v1307 = vpop.f32.mrb[0].mxu0
    %v1308 = vadd.f32 0.0, %v1307
    %v1309 = vpop.f32.mrb[0].mxu0
    %1310 = vmatprep.mubr.f32.mxu0 0.0
    %1311 = vmatmul.mubr.f32.gmra.mrb[0].mxu0 %v1145
    %v1312 = vpop.f32.mrb[0].mxu0
    %v1313 = vadd.f32 0.0, %v1312
    %v1314 = vpop.f32.mrb[0].mxu0
    %1315 = vmatprep.mubr.f32.mxu0 0.0
    %1316 = vmatmul.mubr.f32.gmra.mrb[0].mxu0 %v1146
    %v1317 = vpop.f32.mrb[0].mxu0
    %v1318 = vadd.f32 0.0, %v1317
    %v1319 = vpop.f32.mrb[0].mxu0
    %1320 = vmatprep.mubr.f32.mxu0 0.0
    %1321 = vmatmul.mubr.f32.gmra.mrb[0].mxu0 %v1147
    %v1322 = vpop.f32.mrb[0].mxu0
    %v1323 = vadd.f32 0.0, %v1322
    %v1324 = vpop.f32.mrb[0].mxu0
    %1325 = vmatprep.mubr.f32.mxu0 0.0
    %1326 = vmatmul.mubr.f32.gmra.mrb[0].mxu0 %v1148
    %v1327 = vpop.f32.mrb[0].mxu0
    %v1328 = vadd.f32 0.0, %v1327
    %v1329 = vpop.f32.mrb[0].mxu0
    %1330 = vmatprep.mubr.f32.mxu0 0.0
    %1331 = vmatmul.mubr.f32.gmra.mrb[0].mxu0 %v1149
    %v1332 = vpop.f32.mrb[0].mxu0
    %v1333 = vadd.f32 0.0, %v1332
    %v1334 = vpop.f32.mrb[0].mxu0
    %1335 = vmatprep.mubr.f32.mxu0 0.0
    %1336 = vmatmul.mubr.f32.gmra.mrb[0].mxu0 %v1150
    %v1337 = vpop.f32.mrb[0].mxu0
    %v1338 = vadd.f32 0.0, %v1337
    %v1339 = vpop.f32.mrb[0].mxu0
    %1340 = vmatprep.mubr.f32.mxu0 0.0
    %1341 = vmatmul.mubr.f32.gmra.mrb[0].mxu0 %v1151
    %v1342 = vpop.f32.mrb[0].mxu0
    %v1343 = vadd.f32 0.0, %v1342
    %v1344 = vpop.f32.mrb[0].mxu0
    %1345 = vmatprep.mubr.f32.mxu0 0.0
    %1346 = vmatmul.mubr.f32.gmra.mrb[0].mxu0 %v1152
    %v1347 = vpop.f32.mrb[0].mxu0
    %v1348 = vadd.f32 0.0, %v1347
    %v1349 = vpop.f32.mrb[0].mxu0
    %1350 = vmatprep.mubr.f32.mxu0 0.0
    %1351 = vmatmul.mubr.f32.gmra.mrb[0].mxu0 %v1153
    %v1352 = vpop.f32.mrb[0].mxu0
    %v1353 = vadd.f32 0.0, %v1352
    %v1354 = vpop.f32.mrb[0].mxu0
    %1355 = vmatprep.mubr.f32.mxu0 0.0
    %1356 = vmatmul.mubr.f32.gmra.mrb[0].mxu0 %v1154
    %v1357 = vpop.f32.mrb[0].mxu0
    %v1358 = vadd.f32 0.0, %v1357
    %v1359 = vpop.f32.mrb[0].mxu0
    %1360 = vmatprep.mubr.f32.mxu0 0.0
    %1361 = vmatmul.mubr.f32.gmra.mrb[0].mxu0 %v1155
    %v1362 = vpop.f32.mrb[0].mxu0
    %v1363 = vadd.f32 0.0, %v1362
    %v1364 = vpop.f32.mrb[0].mxu0
    %1365 = vmatprep.mubr.f32.mxu0 0.0
    %1366 = vmatmul.mubr.f32.gmra.mrb[0].mxu0 %v1156
    %v1367 = vpop.f32.mrb[0].mxu0
    %v1368 = vadd.f32 0.0, %v1367
    %v1369 = vpop.f32.mrb[0].mxu0
    %1370 = vmatprep.mubr.f32.mxu0 0.0
    %1371 = vmatmul.mubr.f32.gmra.mrb[0].mxu0 %v1157
    %v1372 = vpop.f32.mrb[0].mxu0
    %v1373 = vadd.f32 0.0, %v1372
    %v1374 = vpop.f32.mrb[0].mxu0
    %1375 = vmatprep.mubr.f32.mxu0 0.0
    %1376 = vmatmul.mubr.f32.gmra.mrb[0].mxu0 %v1158
    %v1377 = vpop.f32.mrb[0].mxu0
    %v1378 = vadd.f32 0.0, %v1377
    %v1379 = vpop.f32.mrb[0].mxu0
    %1380 = vmatprep.mubr.f32.mxu0 0.0
    %1381 = vmatmul.mubr.f32.gmra.mrb[0].mxu0 %v1159
    %v1382 = vpop.f32.mrb[0].mxu0
    %v1383 = vadd.f32 0.0, %v1382
    %v1384 = vpop.f32.mrb[0].mxu0
    %1385 = vmatprep.mubr.f32.mxu0 0.0
    %1386 = vmatmul.mubr.f32.gmra.mrb[0].mxu0 %v1160
    %v1387 = vpop.f32.mrb[0].mxu0
    %v1388 = vadd.f32 0.0, %v1387
    %v1389 = vpop.f32.mrb[0].mxu0
    %1390 = vmatprep.mubr.f32.mxu0 0.0
    %1391 = vmatmul.mubr.f32.gmra.mrb[0].mxu0 %v1161
    %v1392 = vpop.f32.mrb[0].mxu0
    %v1393 = vadd.f32 0.0, %v1392
    %v1394 = vpop.f32.mrb[0].mxu0
    %1395 = vmatprep.mubr.f32.mxu0 0.0
    %1396 = vmatmul.mubr.f32.gmra.mrb[0].mxu0 %v1162
    %v1397 = vpop.f32.mrb[0].mxu0
    %v1398 = vadd.f32 0.0, %v1397
    %v1399 = vpop.f32.mrb[0].mxu0
    %1400 = vmatprep.mubr.f32.mxu0 0.0
    %1401 = vmatmul.mubr.f32.gmra.mrb[0].mxu0 %v1163
    %v1402 = vpop.f32.mrb[0].mxu0
    %v1403 = vadd.f32 0.0, %v1402
    %v1404 = vpop.f32.mrb[0].mxu0
    %1405 = vdwg.mxu0
    %vm1406 = vcmp.eq.s32.totalorder %v571, 1
    %vm1407 = vcmp.eq.s32.totalorder %v572, 1
    %vm1408 = vcmp.eq.s32.totalorder %v573, 1
    %vm1409 = vcmp.eq.s32.totalorder %v574, 1
    %vm1410 = vcmp.eq.s32.totalorder %v575, 1
    %vm1411 = vcmp.eq.s32.totalorder %v576, 1
    %vm1412 = vcmp.eq.s32.totalorder %v577, 1
    %vm1413 = vcmp.eq.s32.totalorder %v578, 1
    %vm1414 = vcmp.eq.s32.totalorder %v579, 1
    %vm1415 = vcmp.eq.s32.totalorder %v580, 1
    %vm1416 = vcmp.eq.s32.totalorder %v581, 1
    %vm1417 = vcmp.eq.s32.totalorder %v582, 1
    %vm1418 = vcmp.eq.s32.totalorder %v583, 1
    %vm1419 = vcmp.eq.s32.totalorder %v584, 1
    %vm1420 = vcmp.eq.s32.totalorder %v585, 1
    %vm1421 = vcmp.eq.s32.totalorder %v586, 1
    %vm1422 = vcmp.eq.s32.totalorder %v587, 1
    %vm1423 = vcmp.eq.s32.totalorder %v588, 1
    %vm1424 = vcmp.eq.s32.totalorder %v589, 1
    %vm1425 = vcmp.eq.s32.totalorder %v590, 1
    %vm1426 = vcmp.eq.s32.totalorder %v591, 1
    %vm1427 = vcmp.eq.s32.totalorder %v592, 1
    %vm1428 = vcmp.eq.s32.totalorder %v593, 1
    %vm1429 = vcmp.eq.s32.totalorder %v594, 1
    %vm1430 = vcmp.eq.s32.totalorder %v595, 1
    %vm1431 = vcmp.eq.s32.totalorder %v596, 1
    %vm1432 = vcmp.eq.s32.totalorder %v597, 1
    %vm1433 = vcmp.eq.s32.totalorder %v598, 1
    %vm1434 = vcmp.eq.s32.totalorder %v599, 1
    %vm1435 = vcmp.eq.s32.totalorder %v600, 1
    %vm1436 = vcmp.eq.s32.totalorder %v601, 1
    %vm1437 = vcmp.eq.s32.totalorder %v602, 1
    %v1438 = vsel %vm1406, 1, 0
    %v1439 = vsel %vm1407, 1, 0
    %v1440 = vsel %vm1408, 1, 0
    %v1441 = vsel %vm1409, 1, 0
    %v1442 = vsel %vm1410, 1, 0
    %v1443 = vsel %vm1411, 1, 0
    %v1444 = vsel %vm1412, 1, 0
    %v1445 = vsel %vm1413, 1, 0
    %v1446 = vsel %vm1414, 1, 0
    %v1447 = vsel %vm1415, 1, 0
    %v1448 = vsel %vm1416, 1, 0
    %v1449 = vsel %vm1417, 1, 0
    %v1450 = vsel %vm1418, 1, 0
    %v1451 = vsel %vm1419, 1, 0
    %v1452 = vsel %vm1420, 1, 0
    %v1453 = vsel %vm1421, 1, 0
    %v1454 = vsel %vm1422, 1, 0
    %v1455 = vsel %vm1423, 1, 0
    %v1456 = vsel %vm1424, 1, 0
    %v1457 = vsel %vm1425, 1, 0
    %v1458 = vsel %vm1426, 1, 0
    %v1459 = vsel %vm1427, 1, 0
    %v1460 = vsel %vm1428, 1, 0
    %v1461 = vsel %vm1429, 1, 0
    %v1462 = vsel %vm1430, 1, 0
    %v1463 = vsel %vm1431, 1, 0
    %v1464 = vsel %vm1432, 1, 0
    %v1465 = vsel %vm1433, 1, 0
    %v1466 = vsel %vm1434, 1, 0
    %v1467 = vsel %vm1435, 1, 0
    %v1468 = vsel %vm1436, 1, 0
    %v1469 = vsel %vm1437, 1, 0
    %1470 = vset.pattern.permute.xlu0 0
    %1471 = vperm.xlu0 %1470, %v1438
    %v1472 = vpop.permute.xlu0 %1471
    %1473 = vset.pattern.permute.xlu0 0
    %1474 = vperm.xlu0 %1473, %v1439
    %v1475 = vpop.permute.xlu0 %1474
    %1476 = vset.pattern.permute.xlu0 0
    %1477 = vperm.xlu0 %1476, %v1440
    %v1478 = vpop.permute.xlu0 %1477
    %1479 = vset.pattern.permute.xlu0 0
    %1480 = vperm.xlu0 %1479, %v1441
    %v1481 = vpop.permute.xlu0 %1480
    %1482 = vset.pattern.permute.xlu0 0
    %1483 = vperm.xlu0 %1482, %v1442
    %v1484 = vpop.permute.xlu0 %1483
    %1485 = vset.pattern.permute.xlu0 0
    %1486 = vperm.xlu0 %1485, %v1443
    %v1487 = vpop.permute.xlu0 %1486
    %1488 = vset.pattern.permute.xlu0 0
    %1489 = vperm.xlu0 %1488, %v1444
    %v1490 = vpop.permute.xlu0 %1489
    %1491 = vset.pattern.permute.xlu0 0
    %1492 = vperm.xlu0 %1491, %v1445
    %v1493 = vpop.permute.xlu0 %1492
    %1494 = vset.pattern.permute.xlu0 0
    %1495 = vperm.xlu0 %1494, %v1446
    %v1496 = vpop.permute.xlu0 %1495
    %1497 = vset.pattern.permute.xlu0 0
    %1498 = vperm.xlu0 %1497, %v1447
    %v1499 = vpop.permute.xlu0 %1498
    %1500 = vset.pattern.permute.xlu0 0
    %1501 = vperm.xlu0 %1500, %v1448
    %v1502 = vpop.permute.xlu0 %1501
    %1503 = vset.pattern.permute.xlu0 0
    %1504 = vperm.xlu0 %1503, %v1449
    %v1505 = vpop.permute.xlu0 %1504
    %1506 = vset.pattern.permute.xlu0 0
    %1507 = vperm.xlu0 %1506, %v1450
    %v1508 = vpop.permute.xlu0 %1507
    %1509 = vset.pattern.permute.xlu0 0
    %1510 = vperm.xlu0 %1509, %v1451
    %v1511 = vpop.permute.xlu0 %1510
    %1512 = vset.pattern.permute.xlu0 0
    %1513 = vperm.xlu0 %1512, %v1452
    %v1514 = vpop.permute.xlu0 %1513
    %1515 = vset.pattern.permute.xlu0 0
    %1516 = vperm.xlu0 %1515, %v1453
    %v1517 = vpop.permute.xlu0 %1516
    %1518 = vset.pattern.permute.xlu0 0
    %1519 = vperm.xlu0 %1518, %v1454
    %v1520 = vpop.permute.xlu0 %1519
    %1521 = vset.pattern.permute.xlu0 0
    %1522 = vperm.xlu0 %1521, %v1455
    %v1523 = vpop.permute.xlu0 %1522
    %1524 = vset.pattern.permute.xlu0 0
    %1525 = vperm.xlu0 %1524, %v1456
    %v1526 = vpop.permute.xlu0 %1525
    %1527 = vset.pattern.permute.xlu0 0
    %1528 = vperm.xlu0 %1527, %v1457
    %v1529 = vpop.permute.xlu0 %1528
    %1530 = vset.pattern.permute.xlu0 0
    %1531 = vperm.xlu0 %1530, %v1458
    %v1532 = vpop.permute.xlu0 %1531
    %1533 = vset.pattern.permute.xlu0 0
    %1534 = vperm.xlu0 %1533, %v1459
    %v1535 = vpop.permute.xlu0 %1534
    %1536 = vset.pattern.permute.xlu0 0
    %1537 = vperm.xlu0 %1536, %v1460
    %v1538 = vpop.permute.xlu0 %1537
    %1539 = vset.pattern.permute.xlu0 0
    %1540 = vperm.xlu0 %1539, %v1461
    %v1541 = vpop.permute.xlu0 %1540
    %1542 = vset.pattern.permute.xlu0 0
    %1543 = vperm.xlu0 %1542, %v1462
    %v1544 = vpop.permute.xlu0 %1543
    %1545 = vset.pattern.permute.xlu0 0
    %1546 = vperm.xlu0 %1545, %v1463
    %v1547 = vpop.permute.xlu0 %1546
    %1548 = vset.pattern.permute.xlu0 0
    %1549 = vperm.xlu0 %1548, %v1464
    %v1550 = vpop.permute.xlu0 %1549
    %1551 = vset.pattern.permute.xlu0 0
    %1552 = vperm.xlu0 %1551, %v1465
    %v1553 = vpop.permute.xlu0 %1552
    %1554 = vset.pattern.permute.xlu0 0
    %1555 = vperm.xlu0 %1554, %v1466
    %v1556 = vpop.permute.xlu0 %1555
    %1557 = vset.pattern.permute.xlu0 0
    %1558 = vperm.xlu0 %1557, %v1467
    %v1559 = vpop.permute.xlu0 %1558
    %1560 = vset.pattern.permute.xlu0 0
    %1561 = vperm.xlu0 %1560, %v1468
    %v1562 = vpop.permute.xlu0 %1561
    %1563 = vset.pattern.permute.xlu0 0
    %1564 = vperm.xlu0 %1563, %v1469
    %v1565 = vpop.permute.xlu0 %1564
    %vm1566 = vcmp.eq.s32.totalorder %v1472, 1
    %vm1567 = vcmp.eq.s32.totalorder %v1475, 1
    %vm1568 = vcmp.eq.s32.totalorder %v1478, 1
    %vm1569 = vcmp.eq.s32.totalorder %v1481, 1
    %vm1570 = vcmp.eq.s32.totalorder %v1484, 1
    %vm1571 = vcmp.eq.s32.totalorder %v1487, 1
    %vm1572 = vcmp.eq.s32.totalorder %v1490, 1
    %vm1573 = vcmp.eq.s32.totalorder %v1493, 1
    %vm1574 = vcmp.eq.s32.totalorder %v1496, 1
    %vm1575 = vcmp.eq.s32.totalorder %v1499, 1
    %vm1576 = vcmp.eq.s32.totalorder %v1502, 1
    %vm1577 = vcmp.eq.s32.totalorder %v1505, 1
    %vm1578 = vcmp.eq.s32.totalorder %v1508, 1
    %vm1579 = vcmp.eq.s32.totalorder %v1511, 1
    %vm1580 = vcmp.eq.s32.totalorder %v1514, 1
    %vm1581 = vcmp.eq.s32.totalorder %v1517, 1
    %vm1582 = vcmp.eq.s32.totalorder %v1520, 1
    %vm1583 = vcmp.eq.s32.totalorder %v1523, 1
    %vm1584 = vcmp.eq.s32.totalorder %v1526, 1
    %vm1585 = vcmp.eq.s32.totalorder %v1529, 1
    %vm1586 = vcmp.eq.s32.totalorder %v1532, 1
    %vm1587 = vcmp.eq.s32.totalorder %v1535, 1
    %vm1588 = vcmp.eq.s32.totalorder %v1538, 1
    %vm1589 = vcmp.eq.s32.totalorder %v1541, 1
    %vm1590 = vcmp.eq.s32.totalorder %v1544, 1
    %vm1591 = vcmp.eq.s32.totalorder %v1547, 1
    %vm1592 = vcmp.eq.s32.totalorder %v1550, 1
    %vm1593 = vcmp.eq.s32.totalorder %v1553, 1
    %vm1594 = vcmp.eq.s32.totalorder %v1556, 1
    %vm1595 = vcmp.eq.s32.totalorder %v1559, 1
    %vm1596 = vcmp.eq.s32.totalorder %v1562, 1
    %vm1597 = vcmp.eq.s32.totalorder %v1565, 1
    %v1598 = vsel %vm1566, %v1248, %v1132
    %v1599 = vsel %vm1567, %v1253, %v1133
    %v1600 = vsel %vm1568, %v1258, %v1134
    %v1601 = vsel %vm1569, %v1263, %v1135
    %v1602 = vsel %vm1570, %v1268, %v1136
    %v1603 = vsel %vm1571, %v1273, %v1137
    %v1604 = vsel %vm1572, %v1278, %v1138
    %v1605 = vsel %vm1573, %v1283, %v1139
    %v1606 = vsel %vm1574, %v1288, %v1140
    %v1607 = vsel %vm1575, %v1293, %v1141
    %v1608 = vsel %vm1576, %v1298, %v1142
    %v1609 = vsel %vm1577, %v1303, %v1143
    %v1610 = vsel %vm1578, %v1308, %v1144
    %v1611 = vsel %vm1579, %v1313, %v1145
    %v1612 = vsel %vm1580, %v1318, %v1146
    %v1613 = vsel %vm1581, %v1323, %v1147
    %v1614 = vsel %vm1582, %v1328, %v1148
    %v1615 = vsel %vm1583, %v1333, %v1149
    %v1616 = vsel %vm1584, %v1338, %v1150
    %v1617 = vsel %vm1585, %v1343, %v1151
    %v1618 = vsel %vm1586, %v1348, %v1152
    %v1619 = vsel %vm1587, %v1353, %v1153
    %v1620 = vsel %vm1588, %v1358, %v1154
    %v1621 = vsel %vm1589, %v1363, %v1155
    %v1622 = vsel %vm1590, %v1368, %v1156
    %v1623 = vsel %vm1591, %v1373, %v1157
    %v1624 = vsel %vm1592, %v1378, %v1158
    %v1625 = vsel %vm1593, %v1383, %v1159
    %v1626 = vsel %vm1594, %v1388, %v1160
    %v1627 = vsel %vm1595, %v1393, %v1161
    %v1628 = vsel %vm1596, %v1398, %v1162
    %v1629 = vsel %vm1597, %v1403, %v1163
    %1630 = vst [vmem:[#allocation2] sm:$0xff] %v1598
    %1631 = vst [vmem:[#allocation2 + $0x8] sm:$0xff] %v1599
    %1632 = vst [vmem:[#allocation2 + $0x10] sm:$0xff] %v1600
    %1633 = vst [vmem:[#allocation2 + $0x18] sm:$0xff] %v1601
    %1634 = vst [vmem:[#allocation2 + $0x20] sm:$0xff] %v1602
    %1635 = vst [vmem:[#allocation2 + $0x28] sm:$0xff] %v1603
    %1636 = vst [vmem:[#allocation2 + $0x30] sm:$0xff] %v1604
    %1637 = vst [vmem:[#allocation2 + $0x38] sm:$0xff] %v1605
    %1638 = vst [vmem:[#allocation2 + $0x40] sm:$0xff] %v1606
    %1639 = vst [vmem:[#allocation2 + $0x48] sm:$0xff] %v1607
    %1640 = vst [vmem:[#allocation2 + $0x50] sm:$0xff] %v1608
    %1641 = vst [vmem:[#allocation2 + $0x58] sm:$0xff] %v1609
    %1642 = vst [vmem:[#allocation2 + $0x60] sm:$0xff] %v1610
    %1643 = vst [vmem:[#allocation2 + $0x68] sm:$0xff] %v1611
    %1644 = vst [vmem:[#allocation2 + $0x70] sm:$0xff] %v1612
    %1645 = vst [vmem:[#allocation2 + $0x78] sm:$0xff] %v1613
    %1646 = vst [vmem:[#allocation2 + $0x80] sm:$0xff] %v1614
    %1647 = vst [vmem:[#allocation2 + $0x88] sm:$0xff] %v1615
    %1648 = vst [vmem:[#allocation2 + $0x90] sm:$0xff] %v1616
    %1649 = vst [vmem:[#allocation2 + $0x98] sm:$0xff] %v1617
    %1650 = vst [vmem:[#allocation2 + $0xa0] sm:$0xff] %v1618
    %1651 = vst [vmem:[#allocation2 + $0xa8] sm:$0xff] %v1619
    %1652 = vst [vmem:[#allocation2 + $0xb0] sm:$0xff] %v1620
    %1653 = vst [vmem:[#allocation2 + $0xb8] sm:$0xff] %v1621
    %1654 = vst [vmem:[#allocation2 + $0xc0] sm:$0xff] %v1622
    %1655 = vst [vmem:[#allocation2 + $0xc8] sm:$0xff] %v1623
    %1656 = vst [vmem:[#allocation2 + $0xd0] sm:$0xff] %v1624
    %1657 = vst [vmem:[#allocation2 + $0xd8] sm:$0xff] %v1625
    %1658 = vst [vmem:[#allocation2 + $0xe0] sm:$0xff] %v1626
    %1659 = vst [vmem:[#allocation2 + $0xe8] sm:$0xff] %v1627
    %1660 = vst [vmem:[#allocation2 + $0xf0] sm:$0xff] %v1628
    %1661 = vst [vmem:[#allocation2 + $0xf8] sm:$0xff] %v1629
    %v1662 = vld [vmem:[%s0] sm:$0xff]
    %v1663 = vld [vmem:[%s0 + $0x8] sm:$0xff]
    %v1664 = vld [vmem:[%s0 + $0x10] sm:$0xff]
    %v1665 = vld [vmem:[%s0 + $0x18] sm:$0xff]
    %v1666 = vld [vmem:[%s0 + $0x20] sm:$0xff]
    %v1667 = vld [vmem:[%s0 + $0x28] sm:$0xff]
    %v1668 = vld [vmem:[%s0 + $0x30] sm:$0xff]
    %v1669 = vld [vmem:[%s0 + $0x38] sm:$0xff]
    %v1670 = vld [vmem:[%s0 + $0x40] sm:$0xff]
    %v1671 = vld [vmem:[%s0 + $0x48] sm:$0xff]
    %v1672 = vld [vmem:[%s0 + $0x50] sm:$0xff]
    %v1673 = vld [vmem:[%s0 + $0x58] sm:$0xff]
    %v1674 = vld [vmem:[%s0 + $0x60] sm:$0xff]
    %v1675 = vld [vmem:[%s0 + $0x68] sm:$0xff]
    %v1676 = vld [vmem:[%s0 + $0x70] sm:$0xff]
    %v1677 = vld [vmem:[%s0 + $0x78] sm:$0xff]
    %v1678 = vld [vmem:[%s0 + $0x80] sm:$0xff]
    %v1679 = vld [vmem:[%s0 + $0x88] sm:$0xff]
    %v1680 = vld [vmem:[%s0 + $0x90] sm:$0xff]
    %v1681 = vld [vmem:[%s0 + $0x98] sm:$0xff]
    %v1682 = vld [vmem:[%s0 + $0xa0] sm:$0xff]
    %v1683 = vld [vmem:[%s0 + $0xa8] sm:$0xff]
    %v1684 = vld [vmem:[%s0 + $0xb0] sm:$0xff]
    %v1685 = vld [vmem:[%s0 + $0xb8] sm:$0xff]
    %v1686 = vld [vmem:[%s0 + $0xc0] sm:$0xff]
    %v1687 = vld [vmem:[%s0 + $0xc8] sm:$0xff]
    %v1688 = vld [vmem:[%s0 + $0xd0] sm:$0xff]
    %v1689 = vld [vmem:[%s0 + $0xd8] sm:$0xff]
    %v1690 = vld [vmem:[%s0 + $0xe0] sm:$0xff]
    %v1691 = vld [vmem:[%s0 + $0xe8] sm:$0xff]
    %v1692 = vld [vmem:[%s0 + $0xf0] sm:$0xff]
    %v1693 = vld [vmem:[%s0 + $0xf8] sm:$0xff]
    %v1694 = vld [vmem:[#allocation2] sm:$0xff]
    %v1695 = vld [vmem:[#allocation2 + $0x8] sm:$0xff]
    %v1696 = vld [vmem:[#allocation2 + $0x10] sm:$0xff]
    %v1697 = vld [vmem:[#allocation2 + $0x18] sm:$0xff]
    %v1698 = vld [vmem:[#allocation2 + $0x20] sm:$0xff]
    %v1699 = vld [vmem:[#allocation2 + $0x28] sm:$0xff]
    %v1700 = vld [vmem:[#allocation2 + $0x30] sm:$0xff]
    %v1701 = vld [vmem:[#allocation2 + $0x38] sm:$0xff]
    %v1702 = vld [vmem:[#allocation2 + $0x40] sm:$0xff]
    %v1703 = vld [vmem:[#allocation2 + $0x48] sm:$0xff]
    %v1704 = vld [vmem:[#allocation2 + $0x50] sm:$0xff]
    %v1705 = vld [vmem:[#allocation2 + $0x58] sm:$0xff]
    %v1706 = vld [vmem:[#allocation2 + $0x60] sm:$0xff]
    %v1707 = vld [vmem:[#allocation2 + $0x68] sm:$0xff]
    %v1708 = vld [vmem:[#allocation2 + $0x70] sm:$0xff]
    %v1709 = vld [vmem:[#allocation2 + $0x78] sm:$0xff]
    %v1710 = vld [vmem:[#allocation2 + $0x80] sm:$0xff]
    %v1711 = vld [vmem:[#allocation2 + $0x88] sm:$0xff]
    %v1712 = vld [vmem:[#allocation2 + $0x90] sm:$0xff]
    %v1713 = vld [vmem:[#allocation2 + $0x98] sm:$0xff]
    %v1714 = vld [vmem:[#allocation2 + $0xa0] sm:$0xff]
    %v1715 = vld [vmem:[#allocation2 + $0xa8] sm:$0xff]
    %v1716 = vld [vmem:[#allocation2 + $0xb0] sm:$0xff]
    %v1717 = vld [vmem:[#allocation2 + $0xb8] sm:$0xff]
    %v1718 = vld [vmem:[#allocation2 + $0xc0] sm:$0xff]
    %v1719 = vld [vmem:[#allocation2 + $0xc8] sm:$0xff]
    %v1720 = vld [vmem:[#allocation2 + $0xd0] sm:$0xff]
    %v1721 = vld [vmem:[#allocation2 + $0xd8] sm:$0xff]
    %v1722 = vld [vmem:[#allocation2 + $0xe0] sm:$0xff]
    %v1723 = vld [vmem:[#allocation2 + $0xe8] sm:$0xff]
    %v1724 = vld [vmem:[#allocation2 + $0xf0] sm:$0xff]
    %v1725 = vld [vmem:[#allocation2 + $0xf8] sm:$0xff]
    %v1726 = vld [vmem:[%s1] sm:$0xff]
    %v1727 = vld [vmem:[%s1 + $0x8] sm:$0xff]
    %v1728 = vld [vmem:[%s1 + $0x10] sm:$0xff]
    %v1729 = vld [vmem:[%s1 + $0x18] sm:$0xff]
    %v1730 = vld [vmem:[%s1 + $0x20] sm:$0xff]
    %v1731 = vld [vmem:[%s1 + $0x28] sm:$0xff]
    %v1732 = vld [vmem:[%s1 + $0x30] sm:$0xff]
    %v1733 = vld [vmem:[%s1 + $0x38] sm:$0xff]
    %v1734 = vld [vmem:[%s1 + $0x40] sm:$0xff]
    %v1735 = vld [vmem:[%s1 + $0x48] sm:$0xff]
    %v1736 = vld [vmem:[%s1 + $0x50] sm:$0xff]
    %v1737 = vld [vmem:[%s1 + $0x58] sm:$0xff]
    %v1738 = vld [vmem:[%s1 + $0x60] sm:$0xff]
    %v1739 = vld [vmem:[%s1 + $0x68] sm:$0xff]
    %v1740 = vld [vmem:[%s1 + $0x70] sm:$0xff]
    %v1741 = vld [vmem:[%s1 + $0x78] sm:$0xff]
    %1742 = vmatprep.subr.mxu0 0.0
    %1743 = vmatpush1.msra.mxu0 %v1726
    %1744 = vmatprep.subr.mxu0 0.0
    %1745 = vmatpush1.msra.mxu0 %v1727
    %1746 = vmatprep.subr.mxu0 0.0
    %1747 = vmatpush1.msra.mxu0 %v1728
    %1748 = vmatprep.subr.mxu0 0.0
    %1749 = vmatpush1.msra.mxu0 %v1729
    %1750 = vmatprep.subr.mxu0 0.0
    %1751 = vmatpush1.msra.mxu0 %v1730
    %1752 = vmatprep.subr.mxu0 0.0
    %1753 = vmatpush1.msra.mxu0 %v1731
    %1754 = vmatprep.subr.mxu0 0.0
    %1755 = vmatpush1.msra.mxu0 %v1732
    %1756 = vmatprep.subr.mxu0 0.0
    %1757 = vmatpush1.msra.mxu0 %v1733
    %1758 = vmatprep.subr.mxu0 0.0
    %1759 = vmatpush1.msra.mxu0 %v1734
    %1760 = vmatprep.subr.mxu0 0.0
    %1761 = vmatpush1.msra.mxu0 %v1735
    %1762 = vmatprep.subr.mxu0 0.0
    %1763 = vmatpush1.msra.mxu0 %v1736
    %1764 = vmatprep.subr.mxu0 0.0
    %1765 = vmatpush1.msra.mxu0 %v1737
    %1766 = vmatprep.subr.mxu0 0.0
    %1767 = vmatpush1.msra.mxu0 %v1738
    %1768 = vmatprep.subr.mxu0 0.0
    %1769 = vmatpush1.msra.mxu0 %v1739
    %1770 = vmatprep.subr.mxu0 0.0
    %1771 = vmatpush1.msra.mxu0 %v1740
    %1772 = vmatprep.subr.mxu0 0.0
    %1773 = vmatpush1.msra.mxu0 %v1741
    %1774 = vmatprep.subr.mxu0 0.0
    %1775 = vmatpush1.msra.mxu0 0.0
    %1776 = vmatprep.subr.mxu0 0.0
    %1777 = vmatpush1.msra.mxu0 0.0
    %1778 = vmatprep.subr.mxu0 0.0
    %1779 = vmatpush1.msra.mxu0 0.0
    %1780 = vmatprep.subr.mxu0 0.0
    %1781 = vmatpush1.msra.mxu0 0.0
    %1782 = vmatprep.subr.mxu0 0.0
    %1783 = vmatpush1.msra.mxu0 0.0
    %1784 = vmatprep.subr.mxu0 0.0
    %1785 = vmatpush1.msra.mxu0 0.0
    %1786 = vmatprep.subr.mxu0 0.0
    %1787 = vmatpush1.msra.mxu0 0.0
    %1788 = vmatprep.subr.mxu0 0.0
    %1789 = vmatpush1.msra.mxu0 0.0
    %1790 = vmatprep.subr.mxu0 0.0
    %1791 = vmatpush1.msra.mxu0 0.0
    %1792 = vmatprep.subr.mxu0 0.0
    %1793 = vmatpush1.msra.mxu0 0.0
    %1794 = vmatprep.subr.mxu0 0.0
    %1795 = vmatpush1.msra.mxu0 0.0
    %1796 = vmatprep.subr.mxu0 0.0
    %1797 = vmatpush1.msra.mxu0 0.0
    %1798 = vmatprep.subr.mxu0 0.0
    %1799 = vmatpush1.msra.mxu0 0.0
    %1800 = vmatprep.subr.mxu0 0.0
    %1801 = vmatpush1.msra.mxu0 0.0
    %1802 = vmatprep.subr.mxu0 0.0
    %1803 = vmatpush1.msra.mxu0 0.0
    %1804 = vmatprep.subr.mxu0 0.0
    %1805 = vmatpush1.msra.mxu0 0.0
    %1806 = vmatprep.mubr.f32.mxu0 0.0
    %1807 = vmatmul.mubr.f32.gmra.mrb[0].mxu0 %v1694
    %v1808 = vpop.f32.mrb[0].mxu0
    %v1809 = vadd.f32 0.0, %v1808
    %v1810 = vpop.f32.mrb[0].mxu0
    %1811 = vmatprep.mubr.f32.mxu0 0.0
    %1812 = vmatmul.mubr.f32.gmra.mrb[0].mxu0 %v1695
    %v1813 = vpop.f32.mrb[0].mxu0
    %v1814 = vadd.f32 0.0, %v1813
    %v1815 = vpop.f32.mrb[0].mxu0
    %1816 = vmatprep.mubr.f32.mxu0 0.0
    %1817 = vmatmul.mubr.f32.gmra.mrb[0].mxu0 %v1696
    %v1818 = vpop.f32.mrb[0].mxu0
    %v1819 = vadd.f32 0.0, %v1818
    %v1820 = vpop.f32.mrb[0].mxu0
    %1821 = vmatprep.mubr.f32.mxu0 0.0
    %1822 = vmatmul.mubr.f32.gmra.mrb[0].mxu0 %v1697
    %v1823 = vpop.f32.mrb[0].mxu0
    %v1824 = vadd.f32 0.0, %v1823
    %v1825 = vpop.f32.mrb[0].mxu0
    %1826 = vmatprep.mubr.f32.mxu0 0.0
    %1827 = vmatmul.mubr.f32.gmra.mrb[0].mxu0 %v1698
    %v1828 = vpop.f32.mrb[0].mxu0
    %v1829 = vadd.f32 0.0, %v1828
    %v1830 = vpop.f32.mrb[0].mxu0
    %1831 = vmatprep.mubr.f32.mxu0 0.0
    %1832 = vmatmul.mubr.f32.gmra.mrb[0].mxu0 %v1699
    %v1833 = vpop.f32.mrb[0].mxu0
    %v1834 = vadd.f32 0.0, %v1833
    %v1835 = vpop.f32.mrb[0].mxu0
    %1836 = vmatprep.mubr.f32.mxu0 0.0
    %1837 = vmatmul.mubr.f32.gmra.mrb[0].mxu0 %v1700
    %v1838 = vpop.f32.mrb[0].mxu0
    %v1839 = vadd.f32 0.0, %v1838
    %v1840 = vpop.f32.mrb[0].mxu0
    %1841 = vmatprep.mubr.f32.mxu0 0.0
    %1842 = vmatmul.mubr.f32.gmra.mrb[0].mxu0 %v1701
    %v1843 = vpop.f32.mrb[0].mxu0
    %v1844 = vadd.f32 0.0, %v1843
    %v1845 = vpop.f32.mrb[0].mxu0
    %1846 = vmatprep.mubr.f32.mxu0 0.0
    %1847 = vmatmul.mubr.f32.gmra.mrb[0].mxu0 %v1702
    %v1848 = vpop.f32.mrb[0].mxu0
    %v1849 = vadd.f32 0.0, %v1848
    %v1850 = vpop.f32.mrb[0].mxu0
    %1851 = vmatprep.mubr.f32.mxu0 0.0
    %1852 = vmatmul.mubr.f32.gmra.mrb[0].mxu0 %v1703
    %v1853 = vpop.f32.mrb[0].mxu0
    %v1854 = vadd.f32 0.0, %v1853
    %v1855 = vpop.f32.mrb[0].mxu0
    %1856 = vmatprep.mubr.f32.mxu0 0.0
    %1857 = vmatmul.mubr.f32.gmra.mrb[0].mxu0 %v1704
    %v1858 = vpop.f32.mrb[0].mxu0
    %v1859 = vadd.f32 0.0, %v1858
    %v1860 = vpop.f32.mrb[0].mxu0
    %1861 = vmatprep.mubr.f32.mxu0 0.0
    %1862 = vmatmul.mubr.f32.gmra.mrb[0].mxu0 %v1705
    %v1863 = vpop.f32.mrb[0].mxu0
    %v1864 = vadd.f32 0.0, %v1863
    %v1865 = vpop.f32.mrb[0].mxu0
    %1866 = vmatprep.mubr.f32.mxu0 0.0
    %1867 = vmatmul.mubr.f32.gmra.mrb[0].mxu0 %v1706
    %v1868 = vpop.f32.mrb[0].mxu0
    %v1869 = vadd.f32 0.0, %v1868
    %v1870 = vpop.f32.mrb[0].mxu0
    %1871 = vmatprep.mubr.f32.mxu0 0.0
    %1872 = vmatmul.mubr.f32.gmra.mrb[0].mxu0 %v1707
    %v1873 = vpop.f32.mrb[0].mxu0
    %v1874 = vadd.f32 0.0, %v1873
    %v1875 = vpop.f32.mrb[0].mxu0
    %1876 = vmatprep.mubr.f32.mxu0 0.0
    %1877 = vmatmul.mubr.f32.gmra.mrb[0].mxu0 %v1708
    %v1878 = vpop.f32.mrb[0].mxu0
    %v1879 = vadd.f32 0.0, %v1878
    %v1880 = vpop.f32.mrb[0].mxu0
    %1881 = vmatprep.mubr.f32.mxu0 0.0
    %1882 = vmatmul.mubr.f32.gmra.mrb[0].mxu0 %v1709
    %v1883 = vpop.f32.mrb[0].mxu0
    %v1884 = vadd.f32 0.0, %v1883
    %v1885 = vpop.f32.mrb[0].mxu0
    %1886 = vmatprep.mubr.f32.mxu0 0.0
    %1887 = vmatmul.mubr.f32.gmra.mrb[0].mxu0 %v1710
    %v1888 = vpop.f32.mrb[0].mxu0
    %v1889 = vadd.f32 0.0, %v1888
    %v1890 = vpop.f32.mrb[0].mxu0
    %1891 = vmatprep.mubr.f32.mxu0 0.0
    %1892 = vmatmul.mubr.f32.gmra.mrb[0].mxu0 %v1711
    %v1893 = vpop.f32.mrb[0].mxu0
    %v1894 = vadd.f32 0.0, %v1893
    %v1895 = vpop.f32.mrb[0].mxu0
    %1896 = vmatprep.mubr.f32.mxu0 0.0
    %1897 = vmatmul.mubr.f32.gmra.mrb[0].mxu0 %v1712
    %v1898 = vpop.f32.mrb[0].mxu0
    %v1899 = vadd.f32 0.0, %v1898
    %v1900 = vpop.f32.mrb[0].mxu0
    %1901 = vmatprep.mubr.f32.mxu0 0.0
    %1902 = vmatmul.mubr.f32.gmra.mrb[0].mxu0 %v1713
    %v1903 = vpop.f32.mrb[0].mxu0
    %v1904 = vadd.f32 0.0, %v1903
    %v1905 = vpop.f32.mrb[0].mxu0
    %1906 = vmatprep.mubr.f32.mxu0 0.0
    %1907 = vmatmul.mubr.f32.gmra.mrb[0].mxu0 %v1714
    %v1908 = vpop.f32.mrb[0].mxu0
    %v1909 = vadd.f32 0.0, %v1908
    %v1910 = vpop.f32.mrb[0].mxu0
    %1911 = vmatprep.mubr.f32.mxu0 0.0
    %1912 = vmatmul.mubr.f32.gmra.mrb[0].mxu0 %v1715
    %v1913 = vpop.f32.mrb[0].mxu0
    %v1914 = vadd.f32 0.0, %v1913
    %v1915 = vpop.f32.mrb[0].mxu0
    %1916 = vmatprep.mubr.f32.mxu0 0.0
    %1917 = vmatmul.mubr.f32.gmra.mrb[0].mxu0 %v1716
    %v1918 = vpop.f32.mrb[0].mxu0
    %v1919 = vadd.f32 0.0, %v1918
    %v1920 = vpop.f32.mrb[0].mxu0
    %1921 = vmatprep.mubr.f32.mxu0 0.0
    %1922 = vmatmul.mubr.f32.gmra.mrb[0].mxu0 %v1717
    %v1923 = vpop.f32.mrb[0].mxu0
    %v1924 = vadd.f32 0.0, %v1923
    %v1925 = vpop.f32.mrb[0].mxu0
    %1926 = vmatprep.mubr.f32.mxu0 0.0
    %1927 = vmatmul.mubr.f32.gmra.mrb[0].mxu0 %v1718
    %v1928 = vpop.f32.mrb[0].mxu0
    %v1929 = vadd.f32 0.0, %v1928
    %v1930 = vpop.f32.mrb[0].mxu0
    %1931 = vmatprep.mubr.f32.mxu0 0.0
    %1932 = vmatmul.mubr.f32.gmra.mrb[0].mxu0 %v1719
    %v1933 = vpop.f32.mrb[0].mxu0
    %v1934 = vadd.f32 0.0, %v1933
    %v1935 = vpop.f32.mrb[0].mxu0
    %1936 = vmatprep.mubr.f32.mxu0 0.0
    %1937 = vmatmul.mubr.f32.gmra.mrb[0].mxu0 %v1720
    %v1938 = vpop.f32.mrb[0].mxu0
    %v1939 = vadd.f32 0.0, %v1938
    %v1940 = vpop.f32.mrb[0].mxu0
    %1941 = vmatprep.mubr.f32.mxu0 0.0
    %1942 = vmatmul.mubr.f32.gmra.mrb[0].mxu0 %v1721
    %v1943 = vpop.f32.mrb[0].mxu0
    %v1944 = vadd.f32 0.0, %v1943
    %v1945 = vpop.f32.mrb[0].mxu0
    %1946 = vmatprep.mubr.f32.mxu0 0.0
    %1947 = vmatmul.mubr.f32.gmra.mrb[0].mxu0 %v1722
    %v1948 = vpop.f32.mrb[0].mxu0
    %v1949 = vadd.f32 0.0, %v1948
    %v1950 = vpop.f32.mrb[0].mxu0
    %1951 = vmatprep.mubr.f32.mxu0 0.0
    %1952 = vmatmul.mubr.f32.gmra.mrb[0].mxu0 %v1723
    %v1953 = vpop.f32.mrb[0].mxu0
    %v1954 = vadd.f32 0.0, %v1953
    %v1955 = vpop.f32.mrb[0].mxu0
    %1956 = vmatprep.mubr.f32.mxu0 0.0
    %1957 = vmatmul.mubr.f32.gmra.mrb[0].mxu0 %v1724
    %v1958 = vpop.f32.mrb[0].mxu0
    %v1959 = vadd.f32 0.0, %v1958
    %v1960 = vpop.f32.mrb[0].mxu0
    %1961 = vmatprep.mubr.f32.mxu0 0.0
    %1962 = vmatmul.mubr.f32.gmra.mrb[0].mxu0 %v1725
    %v1963 = vpop.f32.mrb[0].mxu0
    %v1964 = vadd.f32 0.0, %v1963
    %v1965 = vpop.f32.mrb[0].mxu0
    %1966 = vdwg.mxu0
    %vm1967 = vcmp.eq.s32.totalorder %v1662, 0
    %vm1968 = vcmp.eq.s32.totalorder %v1663, 0
    %vm1969 = vcmp.eq.s32.totalorder %v1664, 0
    %vm1970 = vcmp.eq.s32.totalorder %v1665, 0
    %vm1971 = vcmp.eq.s32.totalorder %v1666, 0
    %vm1972 = vcmp.eq.s32.totalorder %v1667, 0
    %vm1973 = vcmp.eq.s32.totalorder %v1668, 0
    %vm1974 = vcmp.eq.s32.totalorder %v1669, 0
    %vm1975 = vcmp.eq.s32.totalorder %v1670, 0
    %vm1976 = vcmp.eq.s32.totalorder %v1671, 0
    %vm1977 = vcmp.eq.s32.totalorder %v1672, 0
    %vm1978 = vcmp.eq.s32.totalorder %v1673, 0
    %vm1979 = vcmp.eq.s32.totalorder %v1674, 0
    %vm1980 = vcmp.eq.s32.totalorder %v1675, 0
    %vm1981 = vcmp.eq.s32.totalorder %v1676, 0
    %vm1982 = vcmp.eq.s32.totalorder %v1677, 0
    %vm1983 = vcmp.eq.s32.totalorder %v1678, 0
    %vm1984 = vcmp.eq.s32.totalorder %v1679, 0
    %vm1985 = vcmp.eq.s32.totalorder %v1680, 0
    %vm1986 = vcmp.eq.s32.totalorder %v1681, 0
    %vm1987 = vcmp.eq.s32.totalorder %v1682, 0
    %vm1988 = vcmp.eq.s32.totalorder %v1683, 0
    %vm1989 = vcmp.eq.s32.totalorder %v1684, 0
    %vm1990 = vcmp.eq.s32.totalorder %v1685, 0
    %vm1991 = vcmp.eq.s32.totalorder %v1686, 0
    %vm1992 = vcmp.eq.s32.totalorder %v1687, 0
    %vm1993 = vcmp.eq.s32.totalorder %v1688, 0
    %vm1994 = vcmp.eq.s32.totalorder %v1689, 0
    %vm1995 = vcmp.eq.s32.totalorder %v1690, 0
    %vm1996 = vcmp.eq.s32.totalorder %v1691, 0
    %vm1997 = vcmp.eq.s32.totalorder %v1692, 0
    %vm1998 = vcmp.eq.s32.totalorder %v1693, 0
    %v1999 = vsel %vm1967, 1, 0
    %v2000 = vsel %vm1968, 1, 0
    %v2001 = vsel %vm1969, 1, 0
    %v2002 = vsel %vm1970, 1, 0
    %v2003 = vsel %vm1971, 1, 0
    %v2004 = vsel %vm1972, 1, 0
    %v2005 = vsel %vm1973, 1, 0
    %v2006 = vsel %vm1974, 1, 0
    %v2007 = vsel %vm1975, 1, 0
    %v2008 = vsel %vm1976, 1, 0
    %v2009 = vsel %vm1977, 1, 0
    %v2010 = vsel %vm1978, 1, 0
    %v2011 = vsel %vm1979, 1, 0
    %v2012 = vsel %vm1980, 1, 0
    %v2013 = vsel %vm1981, 1, 0
    %v2014 = vsel %vm1982, 1, 0
    %v2015 = vsel %vm1983, 1, 0
    %v2016 = vsel %vm1984, 1, 0
    %v2017 = vsel %vm1985, 1, 0
    %v2018 = vsel %vm1986, 1, 0
    %v2019 = vsel %vm1987, 1, 0
    %v2020 = vsel %vm1988, 1, 0
    %v2021 = vsel %vm1989, 1, 0
    %v2022 = vsel %vm1990, 1, 0
    %v2023 = vsel %vm1991, 1, 0
    %v2024 = vsel %vm1992, 1, 0
    %v2025 = vsel %vm1993, 1, 0
    %v2026 = vsel %vm1994, 1, 0
    %v2027 = vsel %vm1995, 1, 0
    %v2028 = vsel %vm1996, 1, 0
    %v2029 = vsel %vm1997, 1, 0
    %v2030 = vsel %vm1998, 1, 0
    %2031 = vset.pattern.permute.xlu0 1
    %2032 = vperm.xlu0 %2031, %v1999
    %v2033 = vpop.permute.xlu0 %2032
    %2034 = vset.pattern.permute.xlu0 1
    %2035 = vperm.xlu0 %2034, %v2000
    %v2036 = vpop.permute.xlu0 %2035
    %2037 = vset.pattern.permute.xlu0 1
    %2038 = vperm.xlu0 %2037, %v2001
    %v2039 = vpop.permute.xlu0 %2038
    %2040 = vset.pattern.permute.xlu0 1
    %2041 = vperm.xlu0 %2040, %v2002
    %v2042 = vpop.permute.xlu0 %2041
    %2043 = vset.pattern.permute.xlu0 1
    %2044 = vperm.xlu0 %2043, %v2003
    %v2045 = vpop.permute.xlu0 %2044
    %2046 = vset.pattern.permute.xlu0 1
    %2047 = vperm.xlu0 %2046, %v2004
    %v2048 = vpop.permute.xlu0 %2047
    %2049 = vset.pattern.permute.xlu0 1
    %2050 = vperm.xlu0 %2049, %v2005
    %v2051 = vpop.permute.xlu0 %2050
    %2052 = vset.pattern.permute.xlu0 1
    %2053 = vperm.xlu0 %2052, %v2006
    %v2054 = vpop.permute.xlu0 %2053
    %2055 = vset.pattern.permute.xlu0 1
    %2056 = vperm.xlu0 %2055, %v2007
    %v2057 = vpop.permute.xlu0 %2056
    %2058 = vset.pattern.permute.xlu0 1
    %2059 = vperm.xlu0 %2058, %v2008
    %v2060 = vpop.permute.xlu0 %2059
    %2061 = vset.pattern.permute.xlu0 1
    %2062 = vperm.xlu0 %2061, %v2009
    %v2063 = vpop.permute.xlu0 %2062
    %2064 = vset.pattern.permute.xlu0 1
    %2065 = vperm.xlu0 %2064, %v2010
    %v2066 = vpop.permute.xlu0 %2065
    %2067 = vset.pattern.permute.xlu0 1
    %2068 = vperm.xlu0 %2067, %v2011
    %v2069 = vpop.permute.xlu0 %2068
    %2070 = vset.pattern.permute.xlu0 1
    %2071 = vperm.xlu0 %2070, %v2012
    %v2072 = vpop.permute.xlu0 %2071
    %2073 = vset.pattern.permute.xlu0 1
    %2074 = vperm.xlu0 %2073, %v2013
    %v2075 = vpop.permute.xlu0 %2074
    %2076 = vset.pattern.permute.xlu0 1
    %2077 = vperm.xlu0 %2076, %v2014
    %v2078 = vpop.permute.xlu0 %2077
    %2079 = vset.pattern.permute.xlu0 1
    %2080 = vperm.xlu0 %2079, %v2015
    %v2081 = vpop.permute.xlu0 %2080
    %2082 = vset.pattern.permute.xlu0 1
    %2083 = vperm.xlu0 %2082, %v2016
    %v2084 = vpop.permute.xlu0 %2083
    %2085 = vset.pattern.permute.xlu0 1
    %2086 = vperm.xlu0 %2085, %v2017
    %v2087 = vpop.permute.xlu0 %2086
    %2088 = vset.pattern.permute.xlu0 1
    %2089 = vperm.xlu0 %2088, %v2018
    %v2090 = vpop.permute.xlu0 %2089
    %2091 = vset.pattern.permute.xlu0 1
    %2092 = vperm.xlu0 %2091, %v2019
    %v2093 = vpop.permute.xlu0 %2092
    %2094 = vset.pattern.permute.xlu0 1
    %2095 = vperm.xlu0 %2094, %v2020
    %v2096 = vpop.permute.xlu0 %2095
    %2097 = vset.pattern.permute.xlu0 1
    %2098 = vperm.xlu0 %2097, %v2021
    %v2099 = vpop.permute.xlu0 %2098
    %2100 = vset.pattern.permute.xlu0 1
    %2101 = vperm.xlu0 %2100, %v2022
    %v2102 = vpop.permute.xlu0 %2101
    %2103 = vset.pattern.permute.xlu0 1
    %2104 = vperm.xlu0 %2103, %v2023
    %v2105 = vpop.permute.xlu0 %2104
    %2106 = vset.pattern.permute.xlu0 1
    %2107 = vperm.xlu0 %2106, %v2024
    %v2108 = vpop.permute.xlu0 %2107
    %2109 = vset.pattern.permute.xlu0 1
    %2110 = vperm.xlu0 %2109, %v2025
    %v2111 = vpop.permute.xlu0 %2110
    %2112 = vset.pattern.permute.xlu0 1
    %2113 = vperm.xlu0 %2112, %v2026
    %v2114 = vpop.permute.xlu0 %2113
    %2115 = vset.pattern.permute.xlu0 1
    %2116 = vperm.xlu0 %2115, %v2027
    %v2117 = vpop.permute.xlu0 %2116
    %2118 = vset.pattern.permute.xlu0 1
    %2119 = vperm.xlu0 %2118, %v2028
    %v2120 = vpop.permute.xlu0 %2119
    %2121 = vset.pattern.permute.xlu0 1
    %2122 = vperm.xlu0 %2121, %v2029
    %v2123 = vpop.permute.xlu0 %2122
    %2124 = vset.pattern.permute.xlu0 1
    %2125 = vperm.xlu0 %2124, %v2030
    %v2126 = vpop.permute.xlu0 %2125
    %vm2127 = vcmp.eq.s32.totalorder %v2033, 1
    %vm2128 = vcmp.eq.s32.totalorder %v2036, 1
    %vm2129 = vcmp.eq.s32.totalorder %v2039, 1
    %vm2130 = vcmp.eq.s32.totalorder %v2042, 1
    %vm2131 = vcmp.eq.s32.totalorder %v2045, 1
    %vm2132 = vcmp.eq.s32.totalorder %v2048, 1
    %vm2133 = vcmp.eq.s32.totalorder %v2051, 1
    %vm2134 = vcmp.eq.s32.totalorder %v2054, 1
    %vm2135 = vcmp.eq.s32.totalorder %v2057, 1
    %vm2136 = vcmp.eq.s32.totalorder %v2060, 1
    %vm2137 = vcmp.eq.s32.totalorder %v2063, 1
    %vm2138 = vcmp.eq.s32.totalorder %v2066, 1
    %vm2139 = vcmp.eq.s32.totalorder %v2069, 1
    %vm2140 = vcmp.eq.s32.totalorder %v2072, 1
    %vm2141 = vcmp.eq.s32.totalorder %v2075, 1
    %vm2142 = vcmp.eq.s32.totalorder %v2078, 1
    %vm2143 = vcmp.eq.s32.totalorder %v2081, 1
    %vm2144 = vcmp.eq.s32.totalorder %v2084, 1
    %vm2145 = vcmp.eq.s32.totalorder %v2087, 1
    %vm2146 = vcmp.eq.s32.totalorder %v2090, 1
    %vm2147 = vcmp.eq.s32.totalorder %v2093, 1
    %vm2148 = vcmp.eq.s32.totalorder %v2096, 1
    %vm2149 = vcmp.eq.s32.totalorder %v2099, 1
    %vm2150 = vcmp.eq.s32.totalorder %v2102, 1
    %vm2151 = vcmp.eq.s32.totalorder %v2105, 1
    %vm2152 = vcmp.eq.s32.totalorder %v2108, 1
    %vm2153 = vcmp.eq.s32.totalorder %v2111, 1
    %vm2154 = vcmp.eq.s32.totalorder %v2114, 1
    %vm2155 = vcmp.eq.s32.totalorder %v2117, 1
    %vm2156 = vcmp.eq.s32.totalorder %v2120, 1
    %vm2157 = vcmp.eq.s32.totalorder %v2123, 1
    %vm2158 = vcmp.eq.s32.totalorder %v2126, 1
    %v2159 = vsel %vm2127, %v1809, %v1694
    %v2160 = vsel %vm2128, %v1814, %v1695
    %v2161 = vsel %vm2129, %v1819, %v1696
    %v2162 = vsel %vm2130, %v1824, %v1697
    %v2163 = vsel %vm2131, %v1829, %v1698
    %v2164 = vsel %vm2132, %v1834, %v1699
    %v2165 = vsel %vm2133, %v1839, %v1700
    %v2166 = vsel %vm2134, %v1844, %v1701
    %v2167 = vsel %vm2135, %v1849, %v1702
    %v2168 = vsel %vm2136, %v1854, %v1703
    %v2169 = vsel %vm2137, %v1859, %v1704
    %v2170 = vsel %vm2138, %v1864, %v1705
    %v2171 = vsel %vm2139, %v1869, %v1706
    %v2172 = vsel %vm2140, %v1874, %v1707
    %v2173 = vsel %vm2141, %v1879, %v1708
    %v2174 = vsel %vm2142, %v1884, %v1709
    %v2175 = vsel %vm2143, %v1889, %v1710
    %v2176 = vsel %vm2144, %v1894, %v1711
    %v2177 = vsel %vm2145, %v1899, %v1712
    %v2178 = vsel %vm2146, %v1904, %v1713
    %v2179 = vsel %vm2147, %v1909, %v1714
    %v2180 = vsel %vm2148, %v1914, %v1715
    %v2181 = vsel %vm2149, %v1919, %v1716
    %v2182 = vsel %vm2150, %v1924, %v1717
    %v2183 = vsel %vm2151, %v1929, %v1718
    %v2184 = vsel %vm2152, %v1934, %v1719
    %v2185 = vsel %vm2153, %v1939, %v1720
    %v2186 = vsel %vm2154, %v1944, %v1721
    %v2187 = vsel %vm2155, %v1949, %v1722
    %v2188 = vsel %vm2156, %v1954, %v1723
    %v2189 = vsel %vm2157, %v1959, %v1724
    %v2190 = vsel %vm2158, %v1964, %v1725
    %2191 = vst [vmem:[#allocation2] sm:$0xff] %v2159
    %2192 = vst [vmem:[#allocation2 + $0x8] sm:$0xff] %v2160
    %2193 = vst [vmem:[#allocation2 + $0x10] sm:$0xff] %v2161
    %2194 = vst [vmem:[#allocation2 + $0x18] sm:$0xff] %v2162
    %2195 = vst [vmem:[#allocation2 + $0x20] sm:$0xff] %v2163
    %2196 = vst [vmem:[#allocation2 + $0x28] sm:$0xff] %v2164
    %2197 = vst [vmem:[#allocation2 + $0x30] sm:$0xff] %v2165
    %2198 = vst [vmem:[#allocation2 + $0x38] sm:$0xff] %v2166
    %2199 = vst [vmem:[#allocation2 + $0x40] sm:$0xff] %v2167
    %2200 = vst [vmem:[#allocation2 + $0x48] sm:$0xff] %v2168
    %2201 = vst [vmem:[#allocation2 + $0x50] sm:$0xff] %v2169
    %2202 = vst [vmem:[#allocation2 + $0x58] sm:$0xff] %v2170
    %2203 = vst [vmem:[#allocation2 + $0x60] sm:$0xff] %v2171
    %2204 = vst [vmem:[#allocation2 + $0x68] sm:$0xff] %v2172
    %2205 = vst [vmem:[#allocation2 + $0x70] sm:$0xff] %v2173
    %2206 = vst [vmem:[#allocation2 + $0x78] sm:$0xff] %v2174
    %2207 = vst [vmem:[#allocation2 + $0x80] sm:$0xff] %v2175
    %2208 = vst [vmem:[#allocation2 + $0x88] sm:$0xff] %v2176
    %2209 = vst [vmem:[#allocation2 + $0x90] sm:$0xff] %v2177
    %2210 = vst [vmem:[#allocation2 + $0x98] sm:$0xff] %v2178
    %2211 = vst [vmem:[#allocation2 + $0xa0] sm:$0xff] %v2179
    %2212 = vst [vmem:[#allocation2 + $0xa8] sm:$0xff] %v2180
    %2213 = vst [vmem:[#allocation2 + $0xb0] sm:$0xff] %v2181
    %2214 = vst [vmem:[#allocation2 + $0xb8] sm:$0xff] %v2182
    %2215 = vst [vmem:[#allocation2 + $0xc0] sm:$0xff] %v2183
    %2216 = vst [vmem:[#allocation2 + $0xc8] sm:$0xff] %v2184
    %2217 = vst [vmem:[#allocation2 + $0xd0] sm:$0xff] %v2185
    %2218 = vst [vmem:[#allocation2 + $0xd8] sm:$0xff] %v2186
    %2219 = vst [vmem:[#allocation2 + $0xe0] sm:$0xff] %v2187
    %2220 = vst [vmem:[#allocation2 + $0xe8] sm:$0xff] %v2188
    %2221 = vst [vmem:[#allocation2 + $0xf0] sm:$0xff] %v2189
    %2222 = vst [vmem:[#allocation2 + $0xf8] sm:$0xff] %v2190
    %v2223 = vld [vmem:[#allocation2] sm:$0xff]
    %v2224 = vld [vmem:[#allocation2 + $0x8] sm:$0xff]
    %v2225 = vld [vmem:[#allocation2 + $0x10] sm:$0xff]
    %v2226 = vld [vmem:[#allocation2 + $0x18] sm:$0xff]
    %v2227 = vld [vmem:[#allocation2 + $0x20] sm:$0xff]
    %v2228 = vld [vmem:[#allocation2 + $0x28] sm:$0xff]
    %v2229 = vld [vmem:[#allocation2 + $0x30] sm:$0xff]
    %v2230 = vld [vmem:[#allocation2 + $0x38] sm:$0xff]
    %v2231 = vld [vmem:[#allocation2 + $0x40] sm:$0xff]
    %v2232 = vld [vmem:[#allocation2 + $0x48] sm:$0xff]
    %v2233 = vld [vmem:[#allocation2 + $0x50] sm:$0xff]
    %v2234 = vld [vmem:[#allocation2 + $0x58] sm:$0xff]
    %v2235 = vld [vmem:[#allocation2 + $0x60] sm:$0xff]
    %v2236 = vld [vmem:[#allocation2 + $0x68] sm:$0xff]
    %v2237 = vld [vmem:[#allocation2 + $0x70] sm:$0xff]
    %v2238 = vld [vmem:[#allocation2 + $0x78] sm:$0xff]
    %v2239 = vld [vmem:[#allocation2 + $0x80] sm:$0xff]
    %v2240 = vld [vmem:[#allocation2 + $0x88] sm:$0xff]
    %v2241 = vld [vmem:[#allocation2 + $0x90] sm:$0xff]
    %v2242 = vld [vmem:[#allocation2 + $0x98] sm:$0xff]
    %v2243 = vld [vmem:[#allocation2 + $0xa0] sm:$0xff]
    %v2244 = vld [vmem:[#allocation2 + $0xa8] sm:$0xff]
    %v2245 = vld [vmem:[#allocation2 + $0xb0] sm:$0xff]
    %v2246 = vld [vmem:[#allocation2 + $0xb8] sm:$0xff]
    %v2247 = vld [vmem:[#allocation2 + $0xc0] sm:$0xff]
    %v2248 = vld [vmem:[#allocation2 + $0xc8] sm:$0xff]
    %v2249 = vld [vmem:[#allocation2 + $0xd0] sm:$0xff]
    %v2250 = vld [vmem:[#allocation2 + $0xd8] sm:$0xff]
    %v2251 = vld [vmem:[#allocation2 + $0xe0] sm:$0xff]
    %v2252 = vld [vmem:[#allocation2 + $0xe8] sm:$0xff]
    %v2253 = vld [vmem:[#allocation2 + $0xf0] sm:$0xff]
    %v2254 = vld [vmem:[#allocation2 + $0xf8] sm:$0xff]
    %v2255 = vld [vmem:[%s1164] sm:$0xff]
    %v2256 = vld [vmem:[%s1164 + $0x8] sm:$0xff]
    %v2257 = vld [vmem:[%s1164 + $0x10] sm:$0xff]
    %v2258 = vld [vmem:[%s1164 + $0x18] sm:$0xff]
    %v2259 = vld [vmem:[%s1164 + $0x20] sm:$0xff]
    %v2260 = vld [vmem:[%s1164 + $0x28] sm:$0xff]
    %v2261 = vld [vmem:[%s1164 + $0x30] sm:$0xff]
    %v2262 = vld [vmem:[%s1164 + $0x38] sm:$0xff]
    %v2263 = vld [vmem:[%s1164 + $0x40] sm:$0xff]
    %v2264 = vld [vmem:[%s1164 + $0x48] sm:$0xff]
    %v2265 = vld [vmem:[%s1164 + $0x50] sm:$0xff]
    %v2266 = vld [vmem:[%s1164 + $0x58] sm:$0xff]
    %v2267 = vld [vmem:[%s1164 + $0x60] sm:$0xff]
    %v2268 = vld [vmem:[%s1164 + $0x68] sm:$0xff]
    %v2269 = vld [vmem:[%s1164 + $0x70] sm:$0xff]
    %v2270 = vld [vmem:[%s1164 + $0x78] sm:$0xff]
    %2271 = vmatprep.subr.mxu0 0.0
    %2272 = vmatpush1.msra.mxu0 %v2255
    %2273 = vmatprep.subr.mxu0 0.0
    %2274 = vmatpush1.msra.mxu0 %v2256
    %2275 = vmatprep.subr.mxu0 0.0
    %2276 = vmatpush1.msra.mxu0 %v2257
    %2277 = vmatprep.subr.mxu0 0.0
    %2278 = vmatpush1.msra.mxu0 %v2258
    %2279 = vmatprep.subr.mxu0 0.0
    %2280 = vmatpush1.msra.mxu0 %v2259
    %2281 = vmatprep.subr.mxu0 0.0
    %2282 = vmatpush1.msra.mxu0 %v2260
    %2283 = vmatprep.subr.mxu0 0.0
    %2284 = vmatpush1.msra.mxu0 %v2261
    %2285 = vmatprep.subr.mxu0 0.0
    %2286 = vmatpush1.msra.mxu0 %v2262
    %2287 = vmatprep.subr.mxu0 0.0
    %2288 = vmatpush1.msra.mxu0 %v2263
    %2289 = vmatprep.subr.mxu0 0.0
    %2290 = vmatpush1.msra.mxu0 %v2264
    %2291 = vmatprep.subr.mxu0 0.0
    %2292 = vmatpush1.msra.mxu0 %v2265
    %2293 = vmatprep.subr.mxu0 0.0
    %2294 = vmatpush1.msra.mxu0 %v2266
    %2295 = vmatprep.subr.mxu0 0.0
    %2296 = vmatpush1.msra.mxu0 %v2267
    %2297 = vmatprep.subr.mxu0 0.0
    %2298 = vmatpush1.msra.mxu0 %v2268
    %2299 = vmatprep.subr.mxu0 0.0
    %2300 = vmatpush1.msra.mxu0 %v2269
    %2301 = vmatprep.subr.mxu0 0.0
    %2302 = vmatpush1.msra.mxu0 %v2270
    %2303 = vmatprep.subr.mxu0 0.0
    %2304 = vmatpush1.msra.mxu0 0.0
    %2305 = vmatprep.subr.mxu0 0.0
    %2306 = vmatpush1.msra.mxu0 0.0
    %2307 = vmatprep.subr.mxu0 0.0
    %2308 = vmatpush1.msra.mxu0 0.0
    %2309 = vmatprep.subr.mxu0 0.0
    %2310 = vmatpush1.msra.mxu0 0.0
    %2311 = vmatprep.subr.mxu0 0.0
    %2312 = vmatpush1.msra.mxu0 0.0
    %2313 = vmatprep.subr.mxu0 0.0
    %2314 = vmatpush1.msra.mxu0 0.0
    %2315 = vmatprep.subr.mxu0 0.0
    %2316 = vmatpush1.msra.mxu0 0.0
    %2317 = vmatprep.subr.mxu0 0.0
    %2318 = vmatpush1.msra.mxu0 0.0
    %2319 = vmatprep.subr.mxu0 0.0
    %2320 = vmatpush1.msra.mxu0 0.0
    %2321 = vmatprep.subr.mxu0 0.0
    %2322 = vmatpush1.msra.mxu0 0.0
    %2323 = vmatprep.subr.mxu0 0.0
    %2324 = vmatpush1.msra.mxu0 0.0
    %2325 = vmatprep.subr.mxu0 0.0
    %2326 = vmatpush1.msra.mxu0 0.0
    %2327 = vmatprep.subr.mxu0 0.0
    %2328 = vmatpush1.msra.mxu0 0.0
    %2329 = vmatprep.subr.mxu0 0.0
    %2330 = vmatpush1.msra.mxu0 0.0
    %2331 = vmatprep.subr.mxu0 0.0
    %2332 = vmatpush1.msra.mxu0 0.0
    %2333 = vmatprep.subr.mxu0 0.0
    %2334 = vmatpush1.msra.mxu0 0.0
    %2335 = vmatprep.mubr.f32.mxu0 0.0
    %2336 = vmatmul.mubr.f32.gmra.mrb[0].mxu0 %v2223
    %v2337 = vpop.f32.mrb[0].mxu0
    %v2338 = vadd.f32 0.0, %v2337
    %v2339 = vpop.f32.mrb[0].mxu0
    %2340 = vmatprep.mubr.f32.mxu0 0.0
    %2341 = vmatmul.mubr.f32.gmra.mrb[0].mxu0 %v2224
    %v2342 = vpop.f32.mrb[0].mxu0
    %v2343 = vadd.f32 0.0, %v2342
    %v2344 = vpop.f32.mrb[0].mxu0
    %2345 = vmatprep.mubr.f32.mxu0 0.0
    %2346 = vmatmul.mubr.f32.gmra.mrb[0].mxu0 %v2225
    %v2347 = vpop.f32.mrb[0].mxu0
    %v2348 = vadd.f32 0.0, %v2347
    %v2349 = vpop.f32.mrb[0].mxu0
    %2350 = vmatprep.mubr.f32.mxu0 0.0
    %2351 = vmatmul.mubr.f32.gmra.mrb[0].mxu0 %v2226
    %v2352 = vpop.f32.mrb[0].mxu0
    %v2353 = vadd.f32 0.0, %v2352
    %v2354 = vpop.f32.mrb[0].mxu0
    %2355 = vmatprep.mubr.f32.mxu0 0.0
    %2356 = vmatmul.mubr.f32.gmra.mrb[0].mxu0 %v2227
    %v2357 = vpop.f32.mrb[0].mxu0
    %v2358 = vadd.f32 0.0, %v2357
    %v2359 = vpop.f32.mrb[0].mxu0
    %2360 = vmatprep.mubr.f32.mxu0 0.0
    %2361 = vmatmul.mubr.f32.gmra.mrb[0].mxu0 %v2228
    %v2362 = vpop.f32.mrb[0].mxu0
    %v2363 = vadd.f32 0.0, %v2362
    %v2364 = vpop.f32.mrb[0].mxu0
    %2365 = vmatprep.mubr.f32.mxu0 0.0
    %2366 = vmatmul.mubr.f32.gmra.mrb[0].mxu0 %v2229
    %v2367 = vpop.f32.mrb[0].mxu0
    %v2368 = vadd.f32 0.0, %v2367
    %v2369 = vpop.f32.mrb[0].mxu0
    %2370 = vmatprep.mubr.f32.mxu0 0.0
    %2371 = vmatmul.mubr.f32.gmra.mrb[0].mxu0 %v2230
    %v2372 = vpop.f32.mrb[0].mxu0
    %v2373 = vadd.f32 0.0, %v2372
    %v2374 = vpop.f32.mrb[0].mxu0
    %2375 = vmatprep.mubr.f32.mxu0 0.0
    %2376 = vmatmul.mubr.f32.gmra.mrb[0].mxu0 %v2231
    %v2377 = vpop.f32.mrb[0].mxu0
    %v2378 = vadd.f32 0.0, %v2377
    %v2379 = vpop.f32.mrb[0].mxu0
    %2380 = vmatprep.mubr.f32.mxu0 0.0
    %2381 = vmatmul.mubr.f32.gmra.mrb[0].mxu0 %v2232
    %v2382 = vpop.f32.mrb[0].mxu0
    %v2383 = vadd.f32 0.0, %v2382
    %v2384 = vpop.f32.mrb[0].mxu0
    %2385 = vmatprep.mubr.f32.mxu0 0.0
    %2386 = vmatmul.mubr.f32.gmra.mrb[0].mxu0 %v2233
    %v2387 = vpop.f32.mrb[0].mxu0
    %v2388 = vadd.f32 0.0, %v2387
    %v2389 = vpop.f32.mrb[0].mxu0
    %2390 = vmatprep.mubr.f32.mxu0 0.0
    %2391 = vmatmul.mubr.f32.gmra.mrb[0].mxu0 %v2234
    %v2392 = vpop.f32.mrb[0].mxu0
    %v2393 = vadd.f32 0.0, %v2392
    %v2394 = vpop.f32.mrb[0].mxu0
    %2395 = vmatprep.mubr.f32.mxu0 0.0
    %2396 = vmatmul.mubr.f32.gmra.mrb[0].mxu0 %v2235
    %v2397 = vpop.f32.mrb[0].mxu0
    %v2398 = vadd.f32 0.0, %v2397
    %v2399 = vpop.f32.mrb[0].mxu0
    %2400 = vmatprep.mubr.f32.mxu0 0.0
    %2401 = vmatmul.mubr.f32.gmra.mrb[0].mxu0 %v2236
    %v2402 = vpop.f32.mrb[0].mxu0
    %v2403 = vadd.f32 0.0, %v2402
    %v2404 = vpop.f32.mrb[0].mxu0
    %2405 = vmatprep.mubr.f32.mxu0 0.0
    %2406 = vmatmul.mubr.f32.gmra.mrb[0].mxu0 %v2237
    %v2407 = vpop.f32.mrb[0].mxu0
    %v2408 = vadd.f32 0.0, %v2407
    %v2409 = vpop.f32.mrb[0].mxu0
    %2410 = vmatprep.mubr.f32.mxu0 0.0
    %2411 = vmatmul.mubr.f32.gmra.mrb[0].mxu0 %v2238
    %v2412 = vpop.f32.mrb[0].mxu0
    %v2413 = vadd.f32 0.0, %v2412
    %v2414 = vpop.f32.mrb[0].mxu0
    %2415 = vmatprep.mubr.f32.mxu0 0.0
    %2416 = vmatmul.mubr.f32.gmra.mrb[0].mxu0 %v2239
    %v2417 = vpop.f32.mrb[0].mxu0
    %v2418 = vadd.f32 0.0, %v2417
    %v2419 = vpop.f32.mrb[0].mxu0
    %2420 = vmatprep.mubr.f32.mxu0 0.0
    %2421 = vmatmul.mubr.f32.gmra.mrb[0].mxu0 %v2240
    %v2422 = vpop.f32.mrb[0].mxu0
    %v2423 = vadd.f32 0.0, %v2422
    %v2424 = vpop.f32.mrb[0].mxu0
    %2425 = vmatprep.mubr.f32.mxu0 0.0
    %2426 = vmatmul.mubr.f32.gmra.mrb[0].mxu0 %v2241
    %v2427 = vpop.f32.mrb[0].mxu0
    %v2428 = vadd.f32 0.0, %v2427
    %v2429 = vpop.f32.mrb[0].mxu0
    %2430 = vmatprep.mubr.f32.mxu0 0.0
    %2431 = vmatmul.mubr.f32.gmra.mrb[0].mxu0 %v2242
    %v2432 = vpop.f32.mrb[0].mxu0
    %v2433 = vadd.f32 0.0, %v2432
    %v2434 = vpop.f32.mrb[0].mxu0
    %2435 = vmatprep.mubr.f32.mxu0 0.0
    %2436 = vmatmul.mubr.f32.gmra.mrb[0].mxu0 %v2243
    %v2437 = vpop.f32.mrb[0].mxu0
    %v2438 = vadd.f32 0.0, %v2437
    %v2439 = vpop.f32.mrb[0].mxu0
    %2440 = vmatprep.mubr.f32.mxu0 0.0
    %2441 = vmatmul.mubr.f32.gmra.mrb[0].mxu0 %v2244
    %v2442 = vpop.f32.mrb[0].mxu0
    %v2443 = vadd.f32 0.0, %v2442
    %v2444 = vpop.f32.mrb[0].mxu0
    %2445 = vmatprep.mubr.f32.mxu0 0.0
    %2446 = vmatmul.mubr.f32.gmra.mrb[0].mxu0 %v2245
    %v2447 = vpop.f32.mrb[0].mxu0
    %v2448 = vadd.f32 0.0, %v2447
    %v2449 = vpop.f32.mrb[0].mxu0
    %2450 = vmatprep.mubr.f32.mxu0 0.0
    %2451 = vmatmul.mubr.f32.gmra.mrb[0].mxu0 %v2246
    %v2452 = vpop.f32.mrb[0].mxu0
    %v2453 = vadd.f32 0.0, %v2452
    %v2454 = vpop.f32.mrb[0].mxu0
    %2455 = vmatprep.mubr.f32.mxu0 0.0
    %2456 = vmatmul.mubr.f32.gmra.mrb[0].mxu0 %v2247
    %v2457 = vpop.f32.mrb[0].mxu0
    %v2458 = vadd.f32 0.0, %v2457
    %v2459 = vpop.f32.mrb[0].mxu0
    %2460 = vmatprep.mubr.f32.mxu0 0.0
    %2461 = vmatmul.mubr.f32.gmra.mrb[0].mxu0 %v2248
    %v2462 = vpop.f32.mrb[0].mxu0
    %v2463 = vadd.f32 0.0, %v2462
    %v2464 = vpop.f32.mrb[0].mxu0
    %2465 = vmatprep.mubr.f32.mxu0 0.0
    %2466 = vmatmul.mubr.f32.gmra.mrb[0].mxu0 %v2249
    %v2467 = vpop.f32.mrb[0].mxu0
    %v2468 = vadd.f32 0.0, %v2467
    %v2469 = vpop.f32.mrb[0].mxu0
    %2470 = vmatprep.mubr.f32.mxu0 0.0
    %2471 = vmatmul.mubr.f32.gmra.mrb[0].mxu0 %v2250
    %v2472 = vpop.f32.mrb[0].mxu0
    %v2473 = vadd.f32 0.0, %v2472
    %v2474 = vpop.f32.mrb[0].mxu0
    %2475 = vmatprep.mubr.f32.mxu0 0.0
    %2476 = vmatmul.mubr.f32.gmra.mrb[0].mxu0 %v2251
    %v2477 = vpop.f32.mrb[0].mxu0
    %v2478 = vadd.f32 0.0, %v2477
    %v2479 = vpop.f32.mrb[0].mxu0
    %2480 = vmatprep.mubr.f32.mxu0 0.0
    %2481 = vmatmul.mubr.f32.gmra.mrb[0].mxu0 %v2252
    %v2482 = vpop.f32.mrb[0].mxu0
    %v2483 = vadd.f32 0.0, %v2482
    %v2484 = vpop.f32.mrb[0].mxu0
    %2485 = vmatprep.mubr.f32.mxu0 0.0
    %2486 = vmatmul.mubr.f32.gmra.mrb[0].mxu0 %v2253
    %v2487 = vpop.f32.mrb[0].mxu0
    %v2488 = vadd.f32 0.0, %v2487
    %v2489 = vpop.f32.mrb[0].mxu0
    %2490 = vmatprep.mubr.f32.mxu0 0.0
    %2491 = vmatmul.mubr.f32.gmra.mrb[0].mxu0 %v2254
    %v2492 = vpop.f32.mrb[0].mxu0
    %v2493 = vadd.f32 0.0, %v2492
    %v2494 = vpop.f32.mrb[0].mxu0
    %2495 = vdwg.mxu0
    %vm2496 = vcmp.eq.s32.totalorder %v1662, 1
    %vm2497 = vcmp.eq.s32.totalorder %v1663, 1
    %vm2498 = vcmp.eq.s32.totalorder %v1664, 1
    %vm2499 = vcmp.eq.s32.totalorder %v1665, 1
    %vm2500 = vcmp.eq.s32.totalorder %v1666, 1
    %vm2501 = vcmp.eq.s32.totalorder %v1667, 1
    %vm2502 = vcmp.eq.s32.totalorder %v1668, 1
    %vm2503 = vcmp.eq.s32.totalorder %v1669, 1
    %vm2504 = vcmp.eq.s32.totalorder %v1670, 1
    %vm2505 = vcmp.eq.s32.totalorder %v1671, 1
    %vm2506 = vcmp.eq.s32.totalorder %v1672, 1
    %vm2507 = vcmp.eq.s32.totalorder %v1673, 1
    %vm2508 = vcmp.eq.s32.totalorder %v1674, 1
    %vm2509 = vcmp.eq.s32.totalorder %v1675, 1
    %vm2510 = vcmp.eq.s32.totalorder %v1676, 1
    %vm2511 = vcmp.eq.s32.totalorder %v1677, 1
    %vm2512 = vcmp.eq.s32.totalorder %v1678, 1
    %vm2513 = vcmp.eq.s32.totalorder %v1679, 1
    %vm2514 = vcmp.eq.s32.totalorder %v1680, 1
    %vm2515 = vcmp.eq.s32.totalorder %v1681, 1
    %vm2516 = vcmp.eq.s32.totalorder %v1682, 1
    %vm2517 = vcmp.eq.s32.totalorder %v1683, 1
    %vm2518 = vcmp.eq.s32.totalorder %v1684, 1
    %vm2519 = vcmp.eq.s32.totalorder %v1685, 1
    %vm2520 = vcmp.eq.s32.totalorder %v1686, 1
    %vm2521 = vcmp.eq.s32.totalorder %v1687, 1
    %vm2522 = vcmp.eq.s32.totalorder %v1688, 1
    %vm2523 = vcmp.eq.s32.totalorder %v1689, 1
    %vm2524 = vcmp.eq.s32.totalorder %v1690, 1
    %vm2525 = vcmp.eq.s32.totalorder %v1691, 1
    %vm2526 = vcmp.eq.s32.totalorder %v1692, 1
    %vm2527 = vcmp.eq.s32.totalorder %v1693, 1
    %v2528 = vsel %vm2496, 1, 0
    %v2529 = vsel %vm2497, 1, 0
    %v2530 = vsel %vm2498, 1, 0
    %v2531 = vsel %vm2499, 1, 0
    %v2532 = vsel %vm2500, 1, 0
    %v2533 = vsel %vm2501, 1, 0
    %v2534 = vsel %vm2502, 1, 0
    %v2535 = vsel %vm2503, 1, 0
    %v2536 = vsel %vm2504, 1, 0
    %v2537 = vsel %vm2505, 1, 0
    %v2538 = vsel %vm2506, 1, 0
    %v2539 = vsel %vm2507, 1, 0
    %v2540 = vsel %vm2508, 1, 0
    %v2541 = vsel %vm2509, 1, 0
    %v2542 = vsel %vm2510, 1, 0
    %v2543 = vsel %vm2511, 1, 0
    %v2544 = vsel %vm2512, 1, 0
    %v2545 = vsel %vm2513, 1, 0
    %v2546 = vsel %vm2514, 1, 0
    %v2547 = vsel %vm2515, 1, 0
    %v2548 = vsel %vm2516, 1, 0
    %v2549 = vsel %vm2517, 1, 0
    %v2550 = vsel %vm2518, 1, 0
    %v2551 = vsel %vm2519, 1, 0
    %v2552 = vsel %vm2520, 1, 0
    %v2553 = vsel %vm2521, 1, 0
    %v2554 = vsel %vm2522, 1, 0
    %v2555 = vsel %vm2523, 1, 0
    %v2556 = vsel %vm2524, 1, 0
    %v2557 = vsel %vm2525, 1, 0
    %v2558 = vsel %vm2526, 1, 0
    %v2559 = vsel %vm2527, 1, 0
    %2560 = vset.pattern.permute.xlu0 1
    %2561 = vperm.xlu0 %2560, %v2528
    %v2562 = vpop.permute.xlu0 %2561
    %2563 = vset.pattern.permute.xlu0 1
    %2564 = vperm.xlu0 %2563, %v2529
    %v2565 = vpop.permute.xlu0 %2564
    %2566 = vset.pattern.permute.xlu0 1
    %2567 = vperm.xlu0 %2566, %v2530
    %v2568 = vpop.permute.xlu0 %2567
    %2569 = vset.pattern.permute.xlu0 1
    %2570 = vperm.xlu0 %2569, %v2531
    %v2571 = vpop.permute.xlu0 %2570
    %2572 = vset.pattern.permute.xlu0 1
    %2573 = vperm.xlu0 %2572, %v2532
    %v2574 = vpop.permute.xlu0 %2573
    %2575 = vset.pattern.permute.xlu0 1
    %2576 = vperm.xlu0 %2575, %v2533
    %v2577 = vpop.permute.xlu0 %2576
    %2578 = vset.pattern.permute.xlu0 1
    %2579 = vperm.xlu0 %2578, %v2534
    %v2580 = vpop.permute.xlu0 %2579
    %2581 = vset.pattern.permute.xlu0 1
    %2582 = vperm.xlu0 %2581, %v2535
    %v2583 = vpop.permute.xlu0 %2582
    %2584 = vset.pattern.permute.xlu0 1
    %2585 = vperm.xlu0 %2584, %v2536
    %v2586 = vpop.permute.xlu0 %2585
    %2587 = vset.pattern.permute.xlu0 1
    %2588 = vperm.xlu0 %2587, %v2537
    %v2589 = vpop.permute.xlu0 %2588
    %2590 = vset.pattern.permute.xlu0 1
    %2591 = vperm.xlu0 %2590, %v2538
    %v2592 = vpop.permute.xlu0 %2591
    %2593 = vset.pattern.permute.xlu0 1
    %2594 = vperm.xlu0 %2593, %v2539
    %v2595 = vpop.permute.xlu0 %2594
    %2596 = vset.pattern.permute.xlu0 1
    %2597 = vperm.xlu0 %2596, %v2540
    %v2598 = vpop.permute.xlu0 %2597
    %2599 = vset.pattern.permute.xlu0 1
    %2600 = vperm.xlu0 %2599, %v2541
    %v2601 = vpop.permute.xlu0 %2600
    %2602 = vset.pattern.permute.xlu0 1
    %2603 = vperm.xlu0 %2602, %v2542
    %v2604 = vpop.permute.xlu0 %2603
    %2605 = vset.pattern.permute.xlu0 1
    %2606 = vperm.xlu0 %2605, %v2543
    %v2607 = vpop.permute.xlu0 %2606
    %2608 = vset.pattern.permute.xlu0 1
    %2609 = vperm.xlu0 %2608, %v2544
    %v2610 = vpop.permute.xlu0 %2609
    %2611 = vset.pattern.permute.xlu0 1
    %2612 = vperm.xlu0 %2611, %v2545
    %v2613 = vpop.permute.xlu0 %2612
    %2614 = vset.pattern.permute.xlu0 1
    %2615 = vperm.xlu0 %2614, %v2546
    %v2616 = vpop.permute.xlu0 %2615
    %2617 = vset.pattern.permute.xlu0 1
    %2618 = vperm.xlu0 %2617, %v2547
    %v2619 = vpop.permute.xlu0 %2618
    %2620 = vset.pattern.permute.xlu0 1
    %2621 = vperm.xlu0 %2620, %v2548
    %v2622 = vpop.permute.xlu0 %2621
    %2623 = vset.pattern.permute.xlu0 1
    %2624 = vperm.xlu0 %2623, %v2549
    %v2625 = vpop.permute.xlu0 %2624
    %2626 = vset.pattern.permute.xlu0 1
    %2627 = vperm.xlu0 %2626, %v2550
    %v2628 = vpop.permute.xlu0 %2627
    %2629 = vset.pattern.permute.xlu0 1
    %2630 = vperm.xlu0 %2629, %v2551
    %v2631 = vpop.permute.xlu0 %2630
    %2632 = vset.pattern.permute.xlu0 1
    %2633 = vperm.xlu0 %2632, %v2552
    %v2634 = vpop.permute.xlu0 %2633
    %2635 = vset.pattern.permute.xlu0 1
    %2636 = vperm.xlu0 %2635, %v2553
    %v2637 = vpop.permute.xlu0 %2636
    %2638 = vset.pattern.permute.xlu0 1
    %2639 = vperm.xlu0 %2638, %v2554
    %v2640 = vpop.permute.xlu0 %2639
    %2641 = vset.pattern.permute.xlu0 1
    %2642 = vperm.xlu0 %2641, %v2555
    %v2643 = vpop.permute.xlu0 %2642
    %2644 = vset.pattern.permute.xlu0 1
    %2645 = vperm.xlu0 %2644, %v2556
    %v2646 = vpop.permute.xlu0 %2645
    %2647 = vset.pattern.permute.xlu0 1
    %2648 = vperm.xlu0 %2647, %v2557
    %v2649 = vpop.permute.xlu0 %2648
    %2650 = vset.pattern.permute.xlu0 1
    %2651 = vperm.xlu0 %2650, %v2558
    %v2652 = vpop.permute.xlu0 %2651
    %2653 = vset.pattern.permute.xlu0 1
    %2654 = vperm.xlu0 %2653, %v2559
    %v2655 = vpop.permute.xlu0 %2654
    %vm2656 = vcmp.eq.s32.totalorder %v2562, 1
    %vm2657 = vcmp.eq.s32.totalorder %v2565, 1
    %vm2658 = vcmp.eq.s32.totalorder %v2568, 1
    %vm2659 = vcmp.eq.s32.totalorder %v2571, 1
    %vm2660 = vcmp.eq.s32.totalorder %v2574, 1
    %vm2661 = vcmp.eq.s32.totalorder %v2577, 1
    %vm2662 = vcmp.eq.s32.totalorder %v2580, 1
    %vm2663 = vcmp.eq.s32.totalorder %v2583, 1
    %vm2664 = vcmp.eq.s32.totalorder %v2586, 1
    %vm2665 = vcmp.eq.s32.totalorder %v2589, 1
    %vm2666 = vcmp.eq.s32.totalorder %v2592, 1
    %vm2667 = vcmp.eq.s32.totalorder %v2595, 1
    %vm2668 = vcmp.eq.s32.totalorder %v2598, 1
    %vm2669 = vcmp.eq.s32.totalorder %v2601, 1
    %vm2670 = vcmp.eq.s32.totalorder %v2604, 1
    %vm2671 = vcmp.eq.s32.totalorder %v2607, 1
    %vm2672 = vcmp.eq.s32.totalorder %v2610, 1
    %vm2673 = vcmp.eq.s32.totalorder %v2613, 1
    %vm2674 = vcmp.eq.s32.totalorder %v2616, 1
    %vm2675 = vcmp.eq.s32.totalorder %v2619, 1
    %vm2676 = vcmp.eq.s32.totalorder %v2622, 1
    %vm2677 = vcmp.eq.s32.totalorder %v2625, 1
    %vm2678 = vcmp.eq.s32.totalorder %v2628, 1
    %vm2679 = vcmp.eq.s32.totalorder %v2631, 1
    %vm2680 = vcmp.eq.s32.totalorder %v2634, 1
    %vm2681 = vcmp.eq.s32.totalorder %v2637, 1
    %vm2682 = vcmp.eq.s32.totalorder %v2640, 1
    %vm2683 = vcmp.eq.s32.totalorder %v2643, 1
    %vm2684 = vcmp.eq.s32.totalorder %v2646, 1
    %vm2685 = vcmp.eq.s32.totalorder %v2649, 1
    %vm2686 = vcmp.eq.s32.totalorder %v2652, 1
    %vm2687 = vcmp.eq.s32.totalorder %v2655, 1
    %v2688 = vsel %vm2656, %v2338, %v2223
    %v2689 = vsel %vm2657, %v2343, %v2224
    %v2690 = vsel %vm2658, %v2348, %v2225
    %v2691 = vsel %vm2659, %v2353, %v2226
    %v2692 = vsel %vm2660, %v2358, %v2227
    %v2693 = vsel %vm2661, %v2363, %v2228
    %v2694 = vsel %vm2662, %v2368, %v2229
    %v2695 = vsel %vm2663, %v2373, %v2230
    %v2696 = vsel %vm2664, %v2378, %v2231
    %v2697 = vsel %vm2665, %v2383, %v2232
    %v2698 = vsel %vm2666, %v2388, %v2233
    %v2699 = vsel %vm2667, %v2393, %v2234
    %v2700 = vsel %vm2668, %v2398, %v2235
    %v2701 = vsel %vm2669, %v2403, %v2236
    %v2702 = vsel %vm2670, %v2408, %v2237
    %v2703 = vsel %vm2671, %v2413, %v2238
    %v2704 = vsel %vm2672, %v2418, %v2239
    %v2705 = vsel %vm2673, %v2423, %v2240
    %v2706 = vsel %vm2674, %v2428, %v2241
    %v2707 = vsel %vm2675, %v2433, %v2242
    %v2708 = vsel %vm2676, %v2438, %v2243
    %v2709 = vsel %vm2677, %v2443, %v2244
    %v2710 = vsel %vm2678, %v2448, %v2245
    %v2711 = vsel %vm2679, %v2453, %v2246
    %v2712 = vsel %vm2680, %v2458, %v2247
    %v2713 = vsel %vm2681, %v2463, %v2248
    %v2714 = vsel %vm2682, %v2468, %v2249
    %v2715 = vsel %vm2683, %v2473, %v2250
    %v2716 = vsel %vm2684, %v2478, %v2251
    %v2717 = vsel %vm2685, %v2483, %v2252
    %v2718 = vsel %vm2686, %v2488, %v2253
    %v2719 = vsel %vm2687, %v2493, %v2254
    %2720 = vst [vmem:[#allocation2] sm:$0xff] %v2688
    %2721 = vst [vmem:[#allocation2 + $0x8] sm:$0xff] %v2689
    %2722 = vst [vmem:[#allocation2 + $0x10] sm:$0xff] %v2690
    %2723 = vst [vmem:[#allocation2 + $0x18] sm:$0xff] %v2691
    %2724 = vst [vmem:[#allocation2 + $0x20] sm:$0xff] %v2692
    %2725 = vst [vmem:[#allocation2 + $0x28] sm:$0xff] %v2693
    %2726 = vst [vmem:[#allocation2 + $0x30] sm:$0xff] %v2694
    %2727 = vst [vmem:[#allocation2 + $0x38] sm:$0xff] %v2695
    %2728 = vst [vmem:[#allocation2 + $0x40] sm:$0xff] %v2696
    %2729 = vst [vmem:[#allocation2 + $0x48] sm:$0xff] %v2697
    %2730 = vst [vmem:[#allocation2 + $0x50] sm:$0xff] %v2698
    %2731 = vst [vmem:[#allocation2 + $0x58] sm:$0xff] %v2699
    %2732 = vst [vmem:[#allocation2 + $0x60] sm:$0xff] %v2700
    %2733 = vst [vmem:[#allocation2 + $0x68] sm:$0xff] %v2701
    %2734 = vst [vmem:[#allocation2 + $0x70] sm:$0xff] %v2702
    %2735 = vst [vmem:[#allocation2 + $0x78] sm:$0xff] %v2703
    %2736 = vst [vmem:[#allocation2 + $0x80] sm:$0xff] %v2704
    %2737 = vst [vmem:[#allocation2 + $0x88] sm:$0xff] %v2705
    %2738 = vst [vmem:[#allocation2 + $0x90] sm:$0xff] %v2706
    %2739 = vst [vmem:[#allocation2 + $0x98] sm:$0xff] %v2707
    %2740 = vst [vmem:[#allocation2 + $0xa0] sm:$0xff] %v2708
    %2741 = vst [vmem:[#allocation2 + $0xa8] sm:$0xff] %v2709
    %2742 = vst [vmem:[#allocation2 + $0xb0] sm:$0xff] %v2710
    %2743 = vst [vmem:[#allocation2 + $0xb8] sm:$0xff] %v2711
    %2744 = vst [vmem:[#allocation2 + $0xc0] sm:$0xff] %v2712
    %2745 = vst [vmem:[#allocation2 + $0xc8] sm:$0xff] %v2713
    %2746 = vst [vmem:[#allocation2 + $0xd0] sm:$0xff] %v2714
    %2747 = vst [vmem:[#allocation2 + $0xd8] sm:$0xff] %v2715
    %2748 = vst [vmem:[#allocation2 + $0xe0] sm:$0xff] %v2716
    %2749 = vst [vmem:[#allocation2 + $0xe8] sm:$0xff] %v2717
    %2750 = vst [vmem:[#allocation2 + $0xf0] sm:$0xff] %v2718
    %2751 = vst [vmem:[#allocation2 + $0xf8] sm:$0xff] %v2719
    %v2752 = vld [vmem:[%s0] sm:$0xff]
    %v2753 = vld [vmem:[%s0 + $0x8] sm:$0xff]
    %v2754 = vld [vmem:[%s0 + $0x10] sm:$0xff]
    %v2755 = vld [vmem:[%s0 + $0x18] sm:$0xff]
    %v2756 = vld [vmem:[%s0 + $0x20] sm:$0xff]
    %v2757 = vld [vmem:[%s0 + $0x28] sm:$0xff]
    %v2758 = vld [vmem:[%s0 + $0x30] sm:$0xff]
    %v2759 = vld [vmem:[%s0 + $0x38] sm:$0xff]
    %v2760 = vld [vmem:[%s0 + $0x40] sm:$0xff]
    %v2761 = vld [vmem:[%s0 + $0x48] sm:$0xff]
    %v2762 = vld [vmem:[%s0 + $0x50] sm:$0xff]
    %v2763 = vld [vmem:[%s0 + $0x58] sm:$0xff]
    %v2764 = vld [vmem:[%s0 + $0x60] sm:$0xff]
    %v2765 = vld [vmem:[%s0 + $0x68] sm:$0xff]
    %v2766 = vld [vmem:[%s0 + $0x70] sm:$0xff]
    %v2767 = vld [vmem:[%s0 + $0x78] sm:$0xff]
    %v2768 = vld [vmem:[%s0 + $0x80] sm:$0xff]
    %v2769 = vld [vmem:[%s0 + $0x88] sm:$0xff]
    %v2770 = vld [vmem:[%s0 + $0x90] sm:$0xff]
    %v2771 = vld [vmem:[%s0 + $0x98] sm:$0xff]
    %v2772 = vld [vmem:[%s0 + $0xa0] sm:$0xff]
    %v2773 = vld [vmem:[%s0 + $0xa8] sm:$0xff]
    %v2774 = vld [vmem:[%s0 + $0xb0] sm:$0xff]
    %v2775 = vld [vmem:[%s0 + $0xb8] sm:$0xff]
    %v2776 = vld [vmem:[%s0 + $0xc0] sm:$0xff]
    %v2777 = vld [vmem:[%s0 + $0xc8] sm:$0xff]
    %v2778 = vld [vmem:[%s0 + $0xd0] sm:$0xff]
    %v2779 = vld [vmem:[%s0 + $0xd8] sm:$0xff]
    %v2780 = vld [vmem:[%s0 + $0xe0] sm:$0xff]
    %v2781 = vld [vmem:[%s0 + $0xe8] sm:$0xff]
    %v2782 = vld [vmem:[%s0 + $0xf0] sm:$0xff]
    %v2783 = vld [vmem:[%s0 + $0xf8] sm:$0xff]
    %v2784 = vld [vmem:[#allocation2] sm:$0xff]
    %v2785 = vld [vmem:[#allocation2 + $0x8] sm:$0xff]
    %v2786 = vld [vmem:[#allocation2 + $0x10] sm:$0xff]
    %v2787 = vld [vmem:[#allocation2 + $0x18] sm:$0xff]
    %v2788 = vld [vmem:[#allocation2 + $0x20] sm:$0xff]
    %v2789 = vld [vmem:[#allocation2 + $0x28] sm:$0xff]
    %v2790 = vld [vmem:[#allocation2 + $0x30] sm:$0xff]
    %v2791 = vld [vmem:[#allocation2 + $0x38] sm:$0xff]
    %v2792 = vld [vmem:[#allocation2 + $0x40] sm:$0xff]
    %v2793 = vld [vmem:[#allocation2 + $0x48] sm:$0xff]
    %v2794 = vld [vmem:[#allocation2 + $0x50] sm:$0xff]
    %v2795 = vld [vmem:[#allocation2 + $0x58] sm:$0xff]
    %v2796 = vld [vmem:[#allocation2 + $0x60] sm:$0xff]
    %v2797 = vld [vmem:[#allocation2 + $0x68] sm:$0xff]
    %v2798 = vld [vmem:[#allocation2 + $0x70] sm:$0xff]
    %v2799 = vld [vmem:[#allocation2 + $0x78] sm:$0xff]
    %v2800 = vld [vmem:[#allocation2 + $0x80] sm:$0xff]
    %v2801 = vld [vmem:[#allocation2 + $0x88] sm:$0xff]
    %v2802 = vld [vmem:[#allocation2 + $0x90] sm:$0xff]
    %v2803 = vld [vmem:[#allocation2 + $0x98] sm:$0xff]
    %v2804 = vld [vmem:[#allocation2 + $0xa0] sm:$0xff]
    %v2805 = vld [vmem:[#allocation2 + $0xa8] sm:$0xff]
    %v2806 = vld [vmem:[#allocation2 + $0xb0] sm:$0xff]
    %v2807 = vld [vmem:[#allocation2 + $0xb8] sm:$0xff]
    %v2808 = vld [vmem:[#allocation2 + $0xc0] sm:$0xff]
    %v2809 = vld [vmem:[#allocation2 + $0xc8] sm:$0xff]
    %v2810 = vld [vmem:[#allocation2 + $0xd0] sm:$0xff]
    %v2811 = vld [vmem:[#allocation2 + $0xd8] sm:$0xff]
    %v2812 = vld [vmem:[#allocation2 + $0xe0] sm:$0xff]
    %v2813 = vld [vmem:[#allocation2 + $0xe8] sm:$0xff]
    %v2814 = vld [vmem:[#allocation2 + $0xf0] sm:$0xff]
    %v2815 = vld [vmem:[#allocation2 + $0xf8] sm:$0xff]
    %v2816 = vld [vmem:[%s1] sm:$0xff]
    %v2817 = vld [vmem:[%s1 + $0x8] sm:$0xff]
    %v2818 = vld [vmem:[%s1 + $0x10] sm:$0xff]
    %v2819 = vld [vmem:[%s1 + $0x18] sm:$0xff]
    %v2820 = vld [vmem:[%s1 + $0x20] sm:$0xff]
    %v2821 = vld [vmem:[%s1 + $0x28] sm:$0xff]
    %v2822 = vld [vmem:[%s1 + $0x30] sm:$0xff]
    %v2823 = vld [vmem:[%s1 + $0x38] sm:$0xff]
    %v2824 = vld [vmem:[%s1 + $0x40] sm:$0xff]
    %v2825 = vld [vmem:[%s1 + $0x48] sm:$0xff]
    %v2826 = vld [vmem:[%s1 + $0x50] sm:$0xff]
    %v2827 = vld [vmem:[%s1 + $0x58] sm:$0xff]
    %v2828 = vld [vmem:[%s1 + $0x60] sm:$0xff]
    %v2829 = vld [vmem:[%s1 + $0x68] sm:$0xff]
    %v2830 = vld [vmem:[%s1 + $0x70] sm:$0xff]
    %v2831 = vld [vmem:[%s1 + $0x78] sm:$0xff]
    %2832 = vmatprep.subr.mxu0 0.0
    %2833 = vmatpush1.msra.mxu0 %v2816
    %2834 = vmatprep.subr.mxu0 0.0
    %2835 = vmatpush1.msra.mxu0 %v2817
    %2836 = vmatprep.subr.mxu0 0.0
    %2837 = vmatpush1.msra.mxu0 %v2818
    %2838 = vmatprep.subr.mxu0 0.0
    %2839 = vmatpush1.msra.mxu0 %v2819
    %2840 = vmatprep.subr.mxu0 0.0
    %2841 = vmatpush1.msra.mxu0 %v2820
    %2842 = vmatprep.subr.mxu0 0.0
    %2843 = vmatpush1.msra.mxu0 %v2821
    %2844 = vmatprep.subr.mxu0 0.0
    %2845 = vmatpush1.msra.mxu0 %v2822
    %2846 = vmatprep.subr.mxu0 0.0
    %2847 = vmatpush1.msra.mxu0 %v2823
    %2848 = vmatprep.subr.mxu0 0.0
    %2849 = vmatpush1.msra.mxu0 %v2824
    %2850 = vmatprep.subr.mxu0 0.0
    %2851 = vmatpush1.msra.mxu0 %v2825
    %2852 = vmatprep.subr.mxu0 0.0
    %2853 = vmatpush1.msra.mxu0 %v2826
    %2854 = vmatprep.subr.mxu0 0.0
    %2855 = vmatpush1.msra.mxu0 %v2827
    %2856 = vmatprep.subr.mxu0 0.0
    %2857 = vmatpush1.msra.mxu0 %v2828
    %2858 = vmatprep.subr.mxu0 0.0
    %2859 = vmatpush1.msra.mxu0 %v2829
    %2860 = vmatprep.subr.mxu0 0.0
    %2861 = vmatpush1.msra.mxu0 %v2830
    %2862 = vmatprep.subr.mxu0 0.0
    %2863 = vmatpush1.msra.mxu0 %v2831
    %2864 = vmatprep.subr.mxu0 0.0
    %2865 = vmatpush1.msra.mxu0 0.0
    %2866 = vmatprep.subr.mxu0 0.0
    %2867 = vmatpush1.msra.mxu0 0.0
    %2868 = vmatprep.subr.mxu0 0.0
    %2869 = vmatpush1.msra.mxu0 0.0
    %2870 = vmatprep.subr.mxu0 0.0
    %2871 = vmatpush1.msra.mxu0 0.0
    %2872 = vmatprep.subr.mxu0 0.0
    %2873 = vmatpush1.msra.mxu0 0.0
    %2874 = vmatprep.subr.mxu0 0.0
    %2875 = vmatpush1.msra.mxu0 0.0
    %2876 = vmatprep.subr.mxu0 0.0
    %2877 = vmatpush1.msra.mxu0 0.0
    %2878 = vmatprep.subr.mxu0 0.0
    %2879 = vmatpush1.msra.mxu0 0.0
    %2880 = vmatprep.subr.mxu0 0.0
    %2881 = vmatpush1.msra.mxu0 0.0
    %2882 = vmatprep.subr.mxu0 0.0
    %2883 = vmatpush1.msra.mxu0 0.0
    %2884 = vmatprep.subr.mxu0 0.0
    %2885 = vmatpush1.msra.mxu0 0.0
    %2886 = vmatprep.subr.mxu0 0.0
    %2887 = vmatpush1.msra.mxu0 0.0
    %2888 = vmatprep.subr.mxu0 0.0
    %2889 = vmatpush1.msra.mxu0 0.0
    %2890 = vmatprep.subr.mxu0 0.0
    %2891 = vmatpush1.msra.mxu0 0.0
    %2892 = vmatprep.subr.mxu0 0.0
    %2893 = vmatpush1.msra.mxu0 0.0
    %2894 = vmatprep.subr.mxu0 0.0
    %2895 = vmatpush1.msra.mxu0 0.0
    %2896 = vmatprep.mubr.f32.mxu0 0.0
    %2897 = vmatmul.mubr.f32.gmra.mrb[0].mxu0 %v2784
    %v2898 = vpop.f32.mrb[0].mxu0
    %v2899 = vadd.f32 0.0, %v2898
    %v2900 = vpop.f32.mrb[0].mxu0
    %2901 = vmatprep.mubr.f32.mxu0 0.0
    %2902 = vmatmul.mubr.f32.gmra.mrb[0].mxu0 %v2785
    %v2903 = vpop.f32.mrb[0].mxu0
    %v2904 = vadd.f32 0.0, %v2903
    %v2905 = vpop.f32.mrb[0].mxu0
    %2906 = vmatprep.mubr.f32.mxu0 0.0
    %2907 = vmatmul.mubr.f32.gmra.mrb[0].mxu0 %v2786
    %v2908 = vpop.f32.mrb[0].mxu0
    %v2909 = vadd.f32 0.0, %v2908
    %v2910 = vpop.f32.mrb[0].mxu0
    %2911 = vmatprep.mubr.f32.mxu0 0.0
    %2912 = vmatmul.mubr.f32.gmra.mrb[0].mxu0 %v2787
    %v2913 = vpop.f32.mrb[0].mxu0
    %v2914 = vadd.f32 0.0, %v2913
    %v2915 = vpop.f32.mrb[0].mxu0
    %2916 = vmatprep.mubr.f32.mxu0 0.0
    %2917 = vmatmul.mubr.f32.gmra.mrb[0].mxu0 %v2788
    %v2918 = vpop.f32.mrb[0].mxu0
    %v2919 = vadd.f32 0.0, %v2918
    %v2920 = vpop.f32.mrb[0].mxu0
    %2921 = vmatprep.mubr.f32.mxu0 0.0
    %2922 = vmatmul.mubr.f32.gmra.mrb[0].mxu0 %v2789
    %v2923 = vpop.f32.mrb[0].mxu0
    %v2924 = vadd.f32 0.0, %v2923
    %v2925 = vpop.f32.mrb[0].mxu0
    %2926 = vmatprep.mubr.f32.mxu0 0.0
    %2927 = vmatmul.mubr.f32.gmra.mrb[0].mxu0 %v2790
    %v2928 = vpop.f32.mrb[0].mxu0
    %v2929 = vadd.f32 0.0, %v2928
    %v2930 = vpop.f32.mrb[0].mxu0
    %2931 = vmatprep.mubr.f32.mxu0 0.0
    %2932 = vmatmul.mubr.f32.gmra.mrb[0].mxu0 %v2791
    %v2933 = vpop.f32.mrb[0].mxu0
    %v2934 = vadd.f32 0.0, %v2933
    %v2935 = vpop.f32.mrb[0].mxu0
    %2936 = vmatprep.mubr.f32.mxu0 0.0
    %2937 = vmatmul.mubr.f32.gmra.mrb[0].mxu0 %v2792
    %v2938 = vpop.f32.mrb[0].mxu0
    %v2939 = vadd.f32 0.0, %v2938
    %v2940 = vpop.f32.mrb[0].mxu0
    %2941 = vmatprep.mubr.f32.mxu0 0.0
    %2942 = vmatmul.mubr.f32.gmra.mrb[0].mxu0 %v2793
    %v2943 = vpop.f32.mrb[0].mxu0
    %v2944 = vadd.f32 0.0, %v2943
    %v2945 = vpop.f32.mrb[0].mxu0
    %2946 = vmatprep.mubr.f32.mxu0 0.0
    %2947 = vmatmul.mubr.f32.gmra.mrb[0].mxu0 %v2794
    %v2948 = vpop.f32.mrb[0].mxu0
    %v2949 = vadd.f32 0.0, %v2948
    %v2950 = vpop.f32.mrb[0].mxu0
    %2951 = vmatprep.mubr.f32.mxu0 0.0
    %2952 = vmatmul.mubr.f32.gmra.mrb[0].mxu0 %v2795
    %v2953 = vpop.f32.mrb[0].mxu0
    %v2954 = vadd.f32 0.0, %v2953
    %v2955 = vpop.f32.mrb[0].mxu0
    %2956 = vmatprep.mubr.f32.mxu0 0.0
    %2957 = vmatmul.mubr.f32.gmra.mrb[0].mxu0 %v2796
    %v2958 = vpop.f32.mrb[0].mxu0
    %v2959 = vadd.f32 0.0, %v2958
    %v2960 = vpop.f32.mrb[0].mxu0
    %2961 = vmatprep.mubr.f32.mxu0 0.0
    %2962 = vmatmul.mubr.f32.gmra.mrb[0].mxu0 %v2797
    %v2963 = vpop.f32.mrb[0].mxu0
    %v2964 = vadd.f32 0.0, %v2963
    %v2965 = vpop.f32.mrb[0].mxu0
    %2966 = vmatprep.mubr.f32.mxu0 0.0
    %2967 = vmatmul.mubr.f32.gmra.mrb[0].mxu0 %v2798
    %v2968 = vpop.f32.mrb[0].mxu0
    %v2969 = vadd.f32 0.0, %v2968
    %v2970 = vpop.f32.mrb[0].mxu0
    %2971 = vmatprep.mubr.f32.mxu0 0.0
    %2972 = vmatmul.mubr.f32.gmra.mrb[0].mxu0 %v2799
    %v2973 = vpop.f32.mrb[0].mxu0
    %v2974 = vadd.f32 0.0, %v2973
    %v2975 = vpop.f32.mrb[0].mxu0
    %2976 = vmatprep.mubr.f32.mxu0 0.0
    %2977 = vmatmul.mubr.f32.gmra.mrb[0].mxu0 %v2800
    %v2978 = vpop.f32.mrb[0].mxu0
    %v2979 = vadd.f32 0.0, %v2978
    %v2980 = vpop.f32.mrb[0].mxu0
    %2981 = vmatprep.mubr.f32.mxu0 0.0
    %2982 = vmatmul.mubr.f32.gmra.mrb[0].mxu0 %v2801
    %v2983 = vpop.f32.mrb[0].mxu0
    %v2984 = vadd.f32 0.0, %v2983
    %v2985 = vpop.f32.mrb[0].mxu0
    %2986 = vmatprep.mubr.f32.mxu0 0.0
    %2987 = vmatmul.mubr.f32.gmra.mrb[0].mxu0 %v2802
    %v2988 = vpop.f32.mrb[0].mxu0
    %v2989 = vadd.f32 0.0, %v2988
    %v2990 = vpop.f32.mrb[0].mxu0
    %2991 = vmatprep.mubr.f32.mxu0 0.0
    %2992 = vmatmul.mubr.f32.gmra.mrb[0].mxu0 %v2803
    %v2993 = vpop.f32.mrb[0].mxu0
    %v2994 = vadd.f32 0.0, %v2993
    %v2995 = vpop.f32.mrb[0].mxu0
    %2996 = vmatprep.mubr.f32.mxu0 0.0
    %2997 = vmatmul.mubr.f32.gmra.mrb[0].mxu0 %v2804
    %v2998 = vpop.f32.mrb[0].mxu0
    %v2999 = vadd.f32 0.0, %v2998
    %v3000 = vpop.f32.mrb[0].mxu0
    %3001 = vmatprep.mubr.f32.mxu0 0.0
    %3002 = vmatmul.mubr.f32.gmra.mrb[0].mxu0 %v2805
    %v3003 = vpop.f32.mrb[0].mxu0
    %v3004 = vadd.f32 0.0, %v3003
    %v3005 = vpop.f32.mrb[0].mxu0
    %3006 = vmatprep.mubr.f32.mxu0 0.0
    %3007 = vmatmul.mubr.f32.gmra.mrb[0].mxu0 %v2806
    %v3008 = vpop.f32.mrb[0].mxu0
    %v3009 = vadd.f32 0.0, %v3008
    %v3010 = vpop.f32.mrb[0].mxu0
    %3011 = vmatprep.mubr.f32.mxu0 0.0
    %3012 = vmatmul.mubr.f32.gmra.mrb[0].mxu0 %v2807
    %v3013 = vpop.f32.mrb[0].mxu0
    %v3014 = vadd.f32 0.0, %v3013
    %v3015 = vpop.f32.mrb[0].mxu0
    %3016 = vmatprep.mubr.f32.mxu0 0.0
    %3017 = vmatmul.mubr.f32.gmra.mrb[0].mxu0 %v2808
    %v3018 = vpop.f32.mrb[0].mxu0
    %v3019 = vadd.f32 0.0, %v3018
    %v3020 = vpop.f32.mrb[0].mxu0
    %3021 = vmatprep.mubr.f32.mxu0 0.0
    %3022 = vmatmul.mubr.f32.gmra.mrb[0].mxu0 %v2809
    %v3023 = vpop.f32.mrb[0].mxu0
    %v3024 = vadd.f32 0.0, %v3023
    %v3025 = vpop.f32.mrb[0].mxu0
    %3026 = vmatprep.mubr.f32.mxu0 0.0
    %3027 = vmatmul.mubr.f32.gmra.mrb[0].mxu0 %v2810
    %v3028 = vpop.f32.mrb[0].mxu0
    %v3029 = vadd.f32 0.0, %v3028
    %v3030 = vpop.f32.mrb[0].mxu0
    %3031 = vmatprep.mubr.f32.mxu0 0.0
    %3032 = vmatmul.mubr.f32.gmra.mrb[0].mxu0 %v2811
    %v3033 = vpop.f32.mrb[0].mxu0
    %v3034 = vadd.f32 0.0, %v3033
    %v3035 = vpop.f32.mrb[0].mxu0
    %3036 = vmatprep.mubr.f32.mxu0 0.0
    %3037 = vmatmul.mubr.f32.gmra.mrb[0].mxu0 %v2812
    %v3038 = vpop.f32.mrb[0].mxu0
    %v3039 = vadd.f32 0.0, %v3038
    %v3040 = vpop.f32.mrb[0].mxu0
    %3041 = vmatprep.mubr.f32.mxu0 0.0
    %3042 = vmatmul.mubr.f32.gmra.mrb[0].mxu0 %v2813
    %v3043 = vpop.f32.mrb[0].mxu0
    %v3044 = vadd.f32 0.0, %v3043
    %v3045 = vpop.f32.mrb[0].mxu0
    %3046 = vmatprep.mubr.f32.mxu0 0.0
    %3047 = vmatmul.mubr.f32.gmra.mrb[0].mxu0 %v2814
    %v3048 = vpop.f32.mrb[0].mxu0
    %v3049 = vadd.f32 0.0, %v3048
    %v3050 = vpop.f32.mrb[0].mxu0
    %3051 = vmatprep.mubr.f32.mxu0 0.0
    %3052 = vmatmul.mubr.f32.gmra.mrb[0].mxu0 %v2815
    %v3053 = vpop.f32.mrb[0].mxu0
    %v3054 = vadd.f32 0.0, %v3053
    %v3055 = vpop.f32.mrb[0].mxu0
    %3056 = vdwg.mxu0
    %vm3057 = vcmp.eq.s32.totalorder %v2752, 0
    %vm3058 = vcmp.eq.s32.totalorder %v2753, 0
    %vm3059 = vcmp.eq.s32.totalorder %v2754, 0
    %vm3060 = vcmp.eq.s32.totalorder %v2755, 0
    %vm3061 = vcmp.eq.s32.totalorder %v2756, 0
    %vm3062 = vcmp.eq.s32.totalorder %v2757, 0
    %vm3063 = vcmp.eq.s32.totalorder %v2758, 0
    %vm3064 = vcmp.eq.s32.totalorder %v2759, 0
    %vm3065 = vcmp.eq.s32.totalorder %v2760, 0
    %vm3066 = vcmp.eq.s32.totalorder %v2761, 0
    %vm3067 = vcmp.eq.s32.totalorder %v2762, 0
    %vm3068 = vcmp.eq.s32.totalorder %v2763, 0
    %vm3069 = vcmp.eq.s32.totalorder %v2764, 0
    %vm3070 = vcmp.eq.s32.totalorder %v2765, 0
    %vm3071 = vcmp.eq.s32.totalorder %v2766, 0
    %vm3072 = vcmp.eq.s32.totalorder %v2767, 0
    %vm3073 = vcmp.eq.s32.totalorder %v2768, 0
    %vm3074 = vcmp.eq.s32.totalorder %v2769, 0
    %vm3075 = vcmp.eq.s32.totalorder %v2770, 0
    %vm3076 = vcmp.eq.s32.totalorder %v2771, 0
    %vm3077 = vcmp.eq.s32.totalorder %v2772, 0
    %vm3078 = vcmp.eq.s32.totalorder %v2773, 0
    %vm3079 = vcmp.eq.s32.totalorder %v2774, 0
    %vm3080 = vcmp.eq.s32.totalorder %v2775, 0
    %vm3081 = vcmp.eq.s32.totalorder %v2776, 0
    %vm3082 = vcmp.eq.s32.totalorder %v2777, 0
    %vm3083 = vcmp.eq.s32.totalorder %v2778, 0
    %vm3084 = vcmp.eq.s32.totalorder %v2779, 0
    %vm3085 = vcmp.eq.s32.totalorder %v2780, 0
    %vm3086 = vcmp.eq.s32.totalorder %v2781, 0
    %vm3087 = vcmp.eq.s32.totalorder %v2782, 0
    %vm3088 = vcmp.eq.s32.totalorder %v2783, 0
    %v3089 = vsel %vm3057, 1, 0
    %v3090 = vsel %vm3058, 1, 0
    %v3091 = vsel %vm3059, 1, 0
    %v3092 = vsel %vm3060, 1, 0
    %v3093 = vsel %vm3061, 1, 0
    %v3094 = vsel %vm3062, 1, 0
    %v3095 = vsel %vm3063, 1, 0
    %v3096 = vsel %vm3064, 1, 0
    %v3097 = vsel %vm3065, 1, 0
    %v3098 = vsel %vm3066, 1, 0
    %v3099 = vsel %vm3067, 1, 0
    %v3100 = vsel %vm3068, 1, 0
    %v3101 = vsel %vm3069, 1, 0
    %v3102 = vsel %vm3070, 1, 0
    %v3103 = vsel %vm3071, 1, 0
    %v3104 = vsel %vm3072, 1, 0
    %v3105 = vsel %vm3073, 1, 0
    %v3106 = vsel %vm3074, 1, 0
    %v3107 = vsel %vm3075, 1, 0
    %v3108 = vsel %vm3076, 1, 0
    %v3109 = vsel %vm3077, 1, 0
    %v3110 = vsel %vm3078, 1, 0
    %v3111 = vsel %vm3079, 1, 0
    %v3112 = vsel %vm3080, 1, 0
    %v3113 = vsel %vm3081, 1, 0
    %v3114 = vsel %vm3082, 1, 0
    %v3115 = vsel %vm3083, 1, 0
    %v3116 = vsel %vm3084, 1, 0
    %v3117 = vsel %vm3085, 1, 0
    %v3118 = vsel %vm3086, 1, 0
    %v3119 = vsel %vm3087, 1, 0
    %v3120 = vsel %vm3088, 1, 0
    %3121 = vset.pattern.permute.xlu0 2
    %3122 = vperm.xlu0 %3121, %v3089
    %v3123 = vpop.permute.xlu0 %3122
    %3124 = vset.pattern.permute.xlu0 2
    %3125 = vperm.xlu0 %3124, %v3090
    %v3126 = vpop.permute.xlu0 %3125
    %3127 = vset.pattern.permute.xlu0 2
    %3128 = vperm.xlu0 %3127, %v3091
    %v3129 = vpop.permute.xlu0 %3128
    %3130 = vset.pattern.permute.xlu0 2
    %3131 = vperm.xlu0 %3130, %v3092
    %v3132 = vpop.permute.xlu0 %3131
    %3133 = vset.pattern.permute.xlu0 2
    %3134 = vperm.xlu0 %3133, %v3093
    %v3135 = vpop.permute.xlu0 %3134
    %3136 = vset.pattern.permute.xlu0 2
    %3137 = vperm.xlu0 %3136, %v3094
    %v3138 = vpop.permute.xlu0 %3137
    %3139 = vset.pattern.permute.xlu0 2
    %3140 = vperm.xlu0 %3139, %v3095
    %v3141 = vpop.permute.xlu0 %3140
    %3142 = vset.pattern.permute.xlu0 2
    %3143 = vperm.xlu0 %3142, %v3096
    %v3144 = vpop.permute.xlu0 %3143
    %3145 = vset.pattern.permute.xlu0 2
    %3146 = vperm.xlu0 %3145, %v3097
    %v3147 = vpop.permute.xlu0 %3146
    %3148 = vset.pattern.permute.xlu0 2
    %3149 = vperm.xlu0 %3148, %v3098
    %v3150 = vpop.permute.xlu0 %3149
    %3151 = vset.pattern.permute.xlu0 2
    %3152 = vperm.xlu0 %3151, %v3099
    %v3153 = vpop.permute.xlu0 %3152
    %3154 = vset.pattern.permute.xlu0 2
    %3155 = vperm.xlu0 %3154, %v3100
    %v3156 = vpop.permute.xlu0 %3155
    %3157 = vset.pattern.permute.xlu0 2
    %3158 = vperm.xlu0 %3157, %v3101
    %v3159 = vpop.permute.xlu0 %3158
    %3160 = vset.pattern.permute.xlu0 2
    %3161 = vperm.xlu0 %3160, %v3102
    %v3162 = vpop.permute.xlu0 %3161
    %3163 = vset.pattern.permute.xlu0 2
    %3164 = vperm.xlu0 %3163, %v3103
    %v3165 = vpop.permute.xlu0 %3164
    %3166 = vset.pattern.permute.xlu0 2
    %3167 = vperm.xlu0 %3166, %v3104
    %v3168 = vpop.permute.xlu0 %3167
    %3169 = vset.pattern.permute.xlu0 2
    %3170 = vperm.xlu0 %3169, %v3105
    %v3171 = vpop.permute.xlu0 %3170
    %3172 = vset.pattern.permute.xlu0 2
    %3173 = vperm.xlu0 %3172, %v3106
    %v3174 = vpop.permute.xlu0 %3173
    %3175 = vset.pattern.permute.xlu0 2
    %3176 = vperm.xlu0 %3175, %v3107
    %v3177 = vpop.permute.xlu0 %3176
    %3178 = vset.pattern.permute.xlu0 2
    %3179 = vperm.xlu0 %3178, %v3108
    %v3180 = vpop.permute.xlu0 %3179
    %3181 = vset.pattern.permute.xlu0 2
    %3182 = vperm.xlu0 %3181, %v3109
    %v3183 = vpop.permute.xlu0 %3182
    %3184 = vset.pattern.permute.xlu0 2
    %3185 = vperm.xlu0 %3184, %v3110
    %v3186 = vpop.permute.xlu0 %3185
    %3187 = vset.pattern.permute.xlu0 2
    %3188 = vperm.xlu0 %3187, %v3111
    %v3189 = vpop.permute.xlu0 %3188
    %3190 = vset.pattern.permute.xlu0 2
    %3191 = vperm.xlu0 %3190, %v3112
    %v3192 = vpop.permute.xlu0 %3191
    %3193 = vset.pattern.permute.xlu0 2
    %3194 = vperm.xlu0 %3193, %v3113
    %v3195 = vpop.permute.xlu0 %3194
    %3196 = vset.pattern.permute.xlu0 2
    %3197 = vperm.xlu0 %3196, %v3114
    %v3198 = vpop.permute.xlu0 %3197
    %3199 = vset.pattern.permute.xlu0 2
    %3200 = vperm.xlu0 %3199, %v3115
    %v3201 = vpop.permute.xlu0 %3200
    %3202 = vset.pattern.permute.xlu0 2
    %3203 = vperm.xlu0 %3202, %v3116
    %v3204 = vpop.permute.xlu0 %3203
    %3205 = vset.pattern.permute.xlu0 2
    %3206 = vperm.xlu0 %3205, %v3117
    %v3207 = vpop.permute.xlu0 %3206
    %3208 = vset.pattern.permute.xlu0 2
    %3209 = vperm.xlu0 %3208, %v3118
    %v3210 = vpop.permute.xlu0 %3209
    %3211 = vset.pattern.permute.xlu0 2
    %3212 = vperm.xlu0 %3211, %v3119
    %v3213 = vpop.permute.xlu0 %3212
    %3214 = vset.pattern.permute.xlu0 2
    %3215 = vperm.xlu0 %3214, %v3120
    %v3216 = vpop.permute.xlu0 %3215
    %vm3217 = vcmp.eq.s32.totalorder %v3123, 1
    %vm3218 = vcmp.eq.s32.totalorder %v3126, 1
    %vm3219 = vcmp.eq.s32.totalorder %v3129, 1
    %vm3220 = vcmp.eq.s32.totalorder %v3132, 1
    %vm3221 = vcmp.eq.s32.totalorder %v3135, 1
    %vm3222 = vcmp.eq.s32.totalorder %v3138, 1
    %vm3223 = vcmp.eq.s32.totalorder %v3141, 1
    %vm3224 = vcmp.eq.s32.totalorder %v3144, 1
    %vm3225 = vcmp.eq.s32.totalorder %v3147, 1
    %vm3226 = vcmp.eq.s32.totalorder %v3150, 1
    %vm3227 = vcmp.eq.s32.totalorder %v3153, 1
    %vm3228 = vcmp.eq.s32.totalorder %v3156, 1
    %vm3229 = vcmp.eq.s32.totalorder %v3159, 1
    %vm3230 = vcmp.eq.s32.totalorder %v3162, 1
    %vm3231 = vcmp.eq.s32.totalorder %v3165, 1
    %vm3232 = vcmp.eq.s32.totalorder %v3168, 1
    %vm3233 = vcmp.eq.s32.totalorder %v3171, 1
    %vm3234 = vcmp.eq.s32.totalorder %v3174, 1
    %vm3235 = vcmp.eq.s32.totalorder %v3177, 1
    %vm3236 = vcmp.eq.s32.totalorder %v3180, 1
    %vm3237 = vcmp.eq.s32.totalorder %v3183, 1
    %vm3238 = vcmp.eq.s32.totalorder %v3186, 1
    %vm3239 = vcmp.eq.s32.totalorder %v3189, 1
    %vm3240 = vcmp.eq.s32.totalorder %v3192, 1
    %vm3241 = vcmp.eq.s32.totalorder %v3195, 1
    %vm3242 = vcmp.eq.s32.totalorder %v3198, 1
    %vm3243 = vcmp.eq.s32.totalorder %v3201, 1
    %vm3244 = vcmp.eq.s32.totalorder %v3204, 1
    %vm3245 = vcmp.eq.s32.totalorder %v3207, 1
    %vm3246 = vcmp.eq.s32.totalorder %v3210, 1
    %vm3247 = vcmp.eq.s32.totalorder %v3213, 1
    %vm3248 = vcmp.eq.s32.totalorder %v3216, 1
    %v3249 = vsel %vm3217, %v2899, %v2784
    %v3250 = vsel %vm3218, %v2904, %v2785
    %v3251 = vsel %vm3219, %v2909, %v2786
    %v3252 = vsel %vm3220, %v2914, %v2787
    %v3253 = vsel %vm3221, %v2919, %v2788
    %v3254 = vsel %vm3222, %v2924, %v2789
    %v3255 = vsel %vm3223, %v2929, %v2790
    %v3256 = vsel %vm3224, %v2934, %v2791
    %v3257 = vsel %vm3225, %v2939, %v2792
    %v3258 = vsel %vm3226, %v2944, %v2793
    %v3259 = vsel %vm3227, %v2949, %v2794
    %v3260 = vsel %vm3228, %v2954, %v2795
    %v3261 = vsel %vm3229, %v2959, %v2796
    %v3262 = vsel %vm3230, %v2964, %v2797
    %v3263 = vsel %vm3231, %v2969, %v2798
    %v3264 = vsel %vm3232, %v2974, %v2799
    %v3265 = vsel %vm3233, %v2979, %v2800
    %v3266 = vsel %vm3234, %v2984, %v2801
    %v3267 = vsel %vm3235, %v2989, %v2802
    %v3268 = vsel %vm3236, %v2994, %v2803
    %v3269 = vsel %vm3237, %v2999, %v2804
    %v3270 = vsel %vm3238, %v3004, %v2805
    %v3271 = vsel %vm3239, %v3009, %v2806
    %v3272 = vsel %vm3240, %v3014, %v2807
    %v3273 = vsel %vm3241, %v3019, %v2808
    %v3274 = vsel %vm3242, %v3024, %v2809
    %v3275 = vsel %vm3243, %v3029, %v2810
    %v3276 = vsel %vm3244, %v3034, %v2811
    %v3277 = vsel %vm3245, %v3039, %v2812
    %v3278 = vsel %vm3246, %v3044, %v2813
    %v3279 = vsel %vm3247, %v3049, %v2814
    %v3280 = vsel %vm3248, %v3054, %v2815
    %3281 = vst [vmem:[#allocation2] sm:$0xff] %v3249
    %3282 = vst [vmem:[#allocation2 + $0x8] sm:$0xff] %v3250
    %3283 = vst [vmem:[#allocation2 + $0x10] sm:$0xff] %v3251
    %3284 = vst [vmem:[#allocation2 + $0x18] sm:$0xff] %v3252
    %3285 = vst [vmem:[#allocation2 + $0x20] sm:$0xff] %v3253
    %3286 = vst [vmem:[#allocation2 + $0x28] sm:$0xff] %v3254
    %3287 = vst [vmem:[#allocation2 + $0x30] sm:$0xff] %v3255
    %3288 = vst [vmem:[#allocation2 + $0x38] sm:$0xff] %v3256
    %3289 = vst [vmem:[#allocation2 + $0x40] sm:$0xff] %v3257
    %3290 = vst [vmem:[#allocation2 + $0x48] sm:$0xff] %v3258
    %3291 = vst [vmem:[#allocation2 + $0x50] sm:$0xff] %v3259
    %3292 = vst [vmem:[#allocation2 + $0x58] sm:$0xff] %v3260
    %3293 = vst [vmem:[#allocation2 + $0x60] sm:$0xff] %v3261
    %3294 = vst [vmem:[#allocation2 + $0x68] sm:$0xff] %v3262
    %3295 = vst [vmem:[#allocation2 + $0x70] sm:$0xff] %v3263
    %3296 = vst [vmem:[#allocation2 + $0x78] sm:$0xff] %v3264
    %3297 = vst [vmem:[#allocation2 + $0x80] sm:$0xff] %v3265
    %3298 = vst [vmem:[#allocation2 + $0x88] sm:$0xff] %v3266
    %3299 = vst [vmem:[#allocation2 + $0x90] sm:$0xff] %v3267
    %3300 = vst [vmem:[#allocation2 + $0x98] sm:$0xff] %v3268
    %3301 = vst [vmem:[#allocation2 + $0xa0] sm:$0xff] %v3269
    %3302 = vst [vmem:[#allocation2 + $0xa8] sm:$0xff] %v3270
    %3303 = vst [vmem:[#allocation2 + $0xb0] sm:$0xff] %v3271
    %3304 = vst [vmem:[#allocation2 + $0xb8] sm:$0xff] %v3272
    %3305 = vst [vmem:[#allocation2 + $0xc0] sm:$0xff] %v3273
    %3306 = vst [vmem:[#allocation2 + $0xc8] sm:$0xff] %v3274
    %3307 = vst [vmem:[#allocation2 + $0xd0] sm:$0xff] %v3275
    %3308 = vst [vmem:[#allocation2 + $0xd8] sm:$0xff] %v3276
    %3309 = vst [vmem:[#allocation2 + $0xe0] sm:$0xff] %v3277
    %3310 = vst [vmem:[#allocation2 + $0xe8] sm:$0xff] %v3278
    %3311 = vst [vmem:[#allocation2 + $0xf0] sm:$0xff] %v3279
    %3312 = vst [vmem:[#allocation2 + $0xf8] sm:$0xff] %v3280
    %v3313 = vld [vmem:[#allocation2] sm:$0xff]
    %v3314 = vld [vmem:[#allocation2 + $0x8] sm:$0xff]
    %v3315 = vld [vmem:[#allocation2 + $0x10] sm:$0xff]
    %v3316 = vld [vmem:[#allocation2 + $0x18] sm:$0xff]
    %v3317 = vld [vmem:[#allocation2 + $0x20] sm:$0xff]
    %v3318 = vld [vmem:[#allocation2 + $0x28] sm:$0xff]
    %v3319 = vld [vmem:[#allocation2 + $0x30] sm:$0xff]
    %v3320 = vld [vmem:[#allocation2 + $0x38] sm:$0xff]
    %v3321 = vld [vmem:[#allocation2 + $0x40] sm:$0xff]
    %v3322 = vld [vmem:[#allocation2 + $0x48] sm:$0xff]
    %v3323 = vld [vmem:[#allocation2 + $0x50] sm:$0xff]
    %v3324 = vld [vmem:[#allocation2 + $0x58] sm:$0xff]
    %v3325 = vld [vmem:[#allocation2 + $0x60] sm:$0xff]
    %v3326 = vld [vmem:[#allocation2 + $0x68] sm:$0xff]
    %v3327 = vld [vmem:[#allocation2 + $0x70] sm:$0xff]
    %v3328 = vld [vmem:[#allocation2 + $0x78] sm:$0xff]
    %v3329 = vld [vmem:[#allocation2 + $0x80] sm:$0xff]
    %v3330 = vld [vmem:[#allocation2 + $0x88] sm:$0xff]
    %v3331 = vld [vmem:[#allocation2 + $0x90] sm:$0xff]
    %v3332 = vld [vmem:[#allocation2 + $0x98] sm:$0xff]
    %v3333 = vld [vmem:[#allocation2 + $0xa0] sm:$0xff]
    %v3334 = vld [vmem:[#allocation2 + $0xa8] sm:$0xff]
    %v3335 = vld [vmem:[#allocation2 + $0xb0] sm:$0xff]
    %v3336 = vld [vmem:[#allocation2 + $0xb8] sm:$0xff]
    %v3337 = vld [vmem:[#allocation2 + $0xc0] sm:$0xff]
    %v3338 = vld [vmem:[#allocation2 + $0xc8] sm:$0xff]
    %v3339 = vld [vmem:[#allocation2 + $0xd0] sm:$0xff]
    %v3340 = vld [vmem:[#allocation2 + $0xd8] sm:$0xff]
    %v3341 = vld [vmem:[#allocation2 + $0xe0] sm:$0xff]
    %v3342 = vld [vmem:[#allocation2 + $0xe8] sm:$0xff]
    %v3343 = vld [vmem:[#allocation2 + $0xf0] sm:$0xff]
    %v3344 = vld [vmem:[#allocation2 + $0xf8] sm:$0xff]
    %v3345 = vld [vmem:[%s1164] sm:$0xff]
    %v3346 = vld [vmem:[%s1164 + $0x8] sm:$0xff]
    %v3347 = vld [vmem:[%s1164 + $0x10] sm:$0xff]
    %v3348 = vld [vmem:[%s1164 + $0x18] sm:$0xff]
    %v3349 = vld [vmem:[%s1164 + $0x20] sm:$0xff]
    %v3350 = vld [vmem:[%s1164 + $0x28] sm:$0xff]
    %v3351 = vld [vmem:[%s1164 + $0x30] sm:$0xff]
    %v3352 = vld [vmem:[%s1164 + $0x38] sm:$0xff]
    %v3353 = vld [vmem:[%s1164 + $0x40] sm:$0xff]
    %v3354 = vld [vmem:[%s1164 + $0x48] sm:$0xff]
    %v3355 = vld [vmem:[%s1164 + $0x50] sm:$0xff]
    %v3356 = vld [vmem:[%s1164 + $0x58] sm:$0xff]
    %v3357 = vld [vmem:[%s1164 + $0x60] sm:$0xff]
    %v3358 = vld [vmem:[%s1164 + $0x68] sm:$0xff]
    %v3359 = vld [vmem:[%s1164 + $0x70] sm:$0xff]
    %v3360 = vld [vmem:[%s1164 + $0x78] sm:$0xff]
    %3361 = vmatprep.subr.mxu0 0.0
    %3362 = vmatpush1.msra.mxu0 %v3345
    %3363 = vmatprep.subr.mxu0 0.0
    %3364 = vmatpush1.msra.mxu0 %v3346
    %3365 = vmatprep.subr.mxu0 0.0
    %3366 = vmatpush1.msra.mxu0 %v3347
    %3367 = vmatprep.subr.mxu0 0.0
    %3368 = vmatpush1.msra.mxu0 %v3348
    %3369 = vmatprep.subr.mxu0 0.0
    %3370 = vmatpush1.msra.mxu0 %v3349
    %3371 = vmatprep.subr.mxu0 0.0
    %3372 = vmatpush1.msra.mxu0 %v3350
    %3373 = vmatprep.subr.mxu0 0.0
    %3374 = vmatpush1.msra.mxu0 %v3351
    %3375 = vmatprep.subr.mxu0 0.0
    %3376 = vmatpush1.msra.mxu0 %v3352
    %3377 = vmatprep.subr.mxu0 0.0
    %3378 = vmatpush1.msra.mxu0 %v3353
    %3379 = vmatprep.subr.mxu0 0.0
    %3380 = vmatpush1.msra.mxu0 %v3354
    %3381 = vmatprep.subr.mxu0 0.0
    %3382 = vmatpush1.msra.mxu0 %v3355
    %3383 = vmatprep.subr.mxu0 0.0
    %3384 = vmatpush1.msra.mxu0 %v3356
    %3385 = vmatprep.subr.mxu0 0.0
    %3386 = vmatpush1.msra.mxu0 %v3357
    %3387 = vmatprep.subr.mxu0 0.0
    %3388 = vmatpush1.msra.mxu0 %v3358
    %3389 = vmatprep.subr.mxu0 0.0
    %3390 = vmatpush1.msra.mxu0 %v3359
    %3391 = vmatprep.subr.mxu0 0.0
    %3392 = vmatpush1.msra.mxu0 %v3360
    %3393 = vmatprep.subr.mxu0 0.0
    %3394 = vmatpush1.msra.mxu0 0.0
    %3395 = vmatprep.subr.mxu0 0.0
    %3396 = vmatpush1.msra.mxu0 0.0
    %3397 = vmatprep.subr.mxu0 0.0
    %3398 = vmatpush1.msra.mxu0 0.0
    %3399 = vmatprep.subr.mxu0 0.0
    %3400 = vmatpush1.msra.mxu0 0.0
    %3401 = vmatprep.subr.mxu0 0.0
    %3402 = vmatpush1.msra.mxu0 0.0
    %3403 = vmatprep.subr.mxu0 0.0
    %3404 = vmatpush1.msra.mxu0 0.0
    %3405 = vmatprep.subr.mxu0 0.0
    %3406 = vmatpush1.msra.mxu0 0.0
    %3407 = vmatprep.subr.mxu0 0.0
    %3408 = vmatpush1.msra.mxu0 0.0
    %3409 = vmatprep.subr.mxu0 0.0
    %3410 = vmatpush1.msra.mxu0 0.0
    %3411 = vmatprep.subr.mxu0 0.0
    %3412 = vmatpush1.msra.mxu0 0.0
    %3413 = vmatprep.subr.mxu0 0.0
    %3414 = vmatpush1.msra.mxu0 0.0
    %3415 = vmatprep.subr.mxu0 0.0
    %3416 = vmatpush1.msra.mxu0 0.0
    %3417 = vmatprep.subr.mxu0 0.0
    %3418 = vmatpush1.msra.mxu0 0.0
    %3419 = vmatprep.subr.mxu0 0.0
    %3420 = vmatpush1.msra.mxu0 0.0
    %3421 = vmatprep.subr.mxu0 0.0
    %3422 = vmatpush1.msra.mxu0 0.0
    %3423 = vmatprep.subr.mxu0 0.0
    %3424 = vmatpush1.msra.mxu0 0.0
    %3425 = vmatprep.mubr.f32.mxu0 0.0
    %3426 = vmatmul.mubr.f32.gmra.mrb[0].mxu0 %v3313
    %v3427 = vpop.f32.mrb[0].mxu0
    %v3428 = vadd.f32 0.0, %v3427
    %v3429 = vpop.f32.mrb[0].mxu0
    %3430 = vmatprep.mubr.f32.mxu0 0.0
    %3431 = vmatmul.mubr.f32.gmra.mrb[0].mxu0 %v3314
    %v3432 = vpop.f32.mrb[0].mxu0
    %v3433 = vadd.f32 0.0, %v3432
    %v3434 = vpop.f32.mrb[0].mxu0
    %3435 = vmatprep.mubr.f32.mxu0 0.0
    %3436 = vmatmul.mubr.f32.gmra.mrb[0].mxu0 %v3315
    %v3437 = vpop.f32.mrb[0].mxu0
    %v3438 = vadd.f32 0.0, %v3437
    %v3439 = vpop.f32.mrb[0].mxu0
    %3440 = vmatprep.mubr.f32.mxu0 0.0
    %3441 = vmatmul.mubr.f32.gmra.mrb[0].mxu0 %v3316
    %v3442 = vpop.f32.mrb[0].mxu0
    %v3443 = vadd.f32 0.0, %v3442
    %v3444 = vpop.f32.mrb[0].mxu0
    %3445 = vmatprep.mubr.f32.mxu0 0.0
    %3446 = vmatmul.mubr.f32.gmra.mrb[0].mxu0 %v3317
    %v3447 = vpop.f32.mrb[0].mxu0
    %v3448 = vadd.f32 0.0, %v3447
    %v3449 = vpop.f32.mrb[0].mxu0
    %3450 = vmatprep.mubr.f32.mxu0 0.0
    %3451 = vmatmul.mubr.f32.gmra.mrb[0].mxu0 %v3318
    %v3452 = vpop.f32.mrb[0].mxu0
    %v3453 = vadd.f32 0.0, %v3452
    %v3454 = vpop.f32.mrb[0].mxu0
    %3455 = vmatprep.mubr.f32.mxu0 0.0
    %3456 = vmatmul.mubr.f32.gmra.mrb[0].mxu0 %v3319
    %v3457 = vpop.f32.mrb[0].mxu0
    %v3458 = vadd.f32 0.0, %v3457
    %v3459 = vpop.f32.mrb[0].mxu0
    %3460 = vmatprep.mubr.f32.mxu0 0.0
    %3461 = vmatmul.mubr.f32.gmra.mrb[0].mxu0 %v3320
    %v3462 = vpop.f32.mrb[0].mxu0
    %v3463 = vadd.f32 0.0, %v3462
    %v3464 = vpop.f32.mrb[0].mxu0
    %3465 = vmatprep.mubr.f32.mxu0 0.0
    %3466 = vmatmul.mubr.f32.gmra.mrb[0].mxu0 %v3321
    %v3467 = vpop.f32.mrb[0].mxu0
    %v3468 = vadd.f32 0.0, %v3467
    %v3469 = vpop.f32.mrb[0].mxu0
    %3470 = vmatprep.mubr.f32.mxu0 0.0
    %3471 = vmatmul.mubr.f32.gmra.mrb[0].mxu0 %v3322
    %v3472 = vpop.f32.mrb[0].mxu0
    %v3473 = vadd.f32 0.0, %v3472
    %v3474 = vpop.f32.mrb[0].mxu0
    %3475 = vmatprep.mubr.f32.mxu0 0.0
    %3476 = vmatmul.mubr.f32.gmra.mrb[0].mxu0 %v3323
    %v3477 = vpop.f32.mrb[0].mxu0
    %v3478 = vadd.f32 0.0, %v3477
    %v3479 = vpop.f32.mrb[0].mxu0
    %3480 = vmatprep.mubr.f32.mxu0 0.0
    %3481 = vmatmul.mubr.f32.gmra.mrb[0].mxu0 %v3324
    %v3482 = vpop.f32.mrb[0].mxu0
    %v3483 = vadd.f32 0.0, %v3482
    %v3484 = vpop.f32.mrb[0].mxu0
    %3485 = vmatprep.mubr.f32.mxu0 0.0
    %3486 = vmatmul.mubr.f32.gmra.mrb[0].mxu0 %v3325
    %v3487 = vpop.f32.mrb[0].mxu0
    %v3488 = vadd.f32 0.0, %v3487
    %v3489 = vpop.f32.mrb[0].mxu0
    %3490 = vmatprep.mubr.f32.mxu0 0.0
    %3491 = vmatmul.mubr.f32.gmra.mrb[0].mxu0 %v3326
    %v3492 = vpop.f32.mrb[0].mxu0
    %v3493 = vadd.f32 0.0, %v3492
    %v3494 = vpop.f32.mrb[0].mxu0
    %3495 = vmatprep.mubr.f32.mxu0 0.0
    %3496 = vmatmul.mubr.f32.gmra.mrb[0].mxu0 %v3327
    %v3497 = vpop.f32.mrb[0].mxu0
    %v3498 = vadd.f32 0.0, %v3497
    %v3499 = vpop.f32.mrb[0].mxu0
    %3500 = vmatprep.mubr.f32.mxu0 0.0
    %3501 = vmatmul.mubr.f32.gmra.mrb[0].mxu0 %v3328
    %v3502 = vpop.f32.mrb[0].mxu0
    %v3503 = vadd.f32 0.0, %v3502
    %v3504 = vpop.f32.mrb[0].mxu0
    %3505 = vmatprep.mubr.f32.mxu0 0.0
    %3506 = vmatmul.mubr.f32.gmra.mrb[0].mxu0 %v3329
    %v3507 = vpop.f32.mrb[0].mxu0
    %v3508 = vadd.f32 0.0, %v3507
    %v3509 = vpop.f32.mrb[0].mxu0
    %3510 = vmatprep.mubr.f32.mxu0 0.0
    %3511 = vmatmul.mubr.f32.gmra.mrb[0].mxu0 %v3330
    %v3512 = vpop.f32.mrb[0].mxu0
    %v3513 = vadd.f32 0.0, %v3512
    %v3514 = vpop.f32.mrb[0].mxu0
    %3515 = vmatprep.mubr.f32.mxu0 0.0
    %3516 = vmatmul.mubr.f32.gmra.mrb[0].mxu0 %v3331
    %v3517 = vpop.f32.mrb[0].mxu0
    %v3518 = vadd.f32 0.0, %v3517
    %v3519 = vpop.f32.mrb[0].mxu0
    %3520 = vmatprep.mubr.f32.mxu0 0.0
    %3521 = vmatmul.mubr.f32.gmra.mrb[0].mxu0 %v3332
    %v3522 = vpop.f32.mrb[0].mxu0
    %v3523 = vadd.f32 0.0, %v3522
    %v3524 = vpop.f32.mrb[0].mxu0
    %3525 = vmatprep.mubr.f32.mxu0 0.0
    %3526 = vmatmul.mubr.f32.gmra.mrb[0].mxu0 %v3333
    %v3527 = vpop.f32.mrb[0].mxu0
    %v3528 = vadd.f32 0.0, %v3527
    %v3529 = vpop.f32.mrb[0].mxu0
    %3530 = vmatprep.mubr.f32.mxu0 0.0
    %3531 = vmatmul.mubr.f32.gmra.mrb[0].mxu0 %v3334
    %v3532 = vpop.f32.mrb[0].mxu0
    %v3533 = vadd.f32 0.0, %v3532
    %v3534 = vpop.f32.mrb[0].mxu0
    %3535 = vmatprep.mubr.f32.mxu0 0.0
    %3536 = vmatmul.mubr.f32.gmra.mrb[0].mxu0 %v3335
    %v3537 = vpop.f32.mrb[0].mxu0
    %v3538 = vadd.f32 0.0, %v3537
    %v3539 = vpop.f32.mrb[0].mxu0
    %3540 = vmatprep.mubr.f32.mxu0 0.0
    %3541 = vmatmul.mubr.f32.gmra.mrb[0].mxu0 %v3336
    %v3542 = vpop.f32.mrb[0].mxu0
    %v3543 = vadd.f32 0.0, %v3542
    %v3544 = vpop.f32.mrb[0].mxu0
    %3545 = vmatprep.mubr.f32.mxu0 0.0
    %3546 = vmatmul.mubr.f32.gmra.mrb[0].mxu0 %v3337
    %v3547 = vpop.f32.mrb[0].mxu0
    %v3548 = vadd.f32 0.0, %v3547
    %v3549 = vpop.f32.mrb[0].mxu0
    %3550 = vmatprep.mubr.f32.mxu0 0.0
    %3551 = vmatmul.mubr.f32.gmra.mrb[0].mxu0 %v3338
    %v3552 = vpop.f32.mrb[0].mxu0
    %v3553 = vadd.f32 0.0, %v3552
    %v3554 = vpop.f32.mrb[0].mxu0
    %3555 = vmatprep.mubr.f32.mxu0 0.0
    %3556 = vmatmul.mubr.f32.gmra.mrb[0].mxu0 %v3339
    %v3557 = vpop.f32.mrb[0].mxu0
    %v3558 = vadd.f32 0.0, %v3557
    %v3559 = vpop.f32.mrb[0].mxu0
    %3560 = vmatprep.mubr.f32.mxu0 0.0
    %3561 = vmatmul.mubr.f32.gmra.mrb[0].mxu0 %v3340
    %v3562 = vpop.f32.mrb[0].mxu0
    %v3563 = vadd.f32 0.0, %v3562
    %v3564 = vpop.f32.mrb[0].mxu0
    %3565 = vmatprep.mubr.f32.mxu0 0.0
    %3566 = vmatmul.mubr.f32.gmra.mrb[0].mxu0 %v3341
    %v3567 = vpop.f32.mrb[0].mxu0
    %v3568 = vadd.f32 0.0, %v3567
    %v3569 = vpop.f32.mrb[0].mxu0
    %3570 = vmatprep.mubr.f32.mxu0 0.0
    %3571 = vmatmul.mubr.f32.gmra.mrb[0].mxu0 %v3342
    %v3572 = vpop.f32.mrb[0].mxu0
    %v3573 = vadd.f32 0.0, %v3572
    %v3574 = vpop.f32.mrb[0].mxu0
    %3575 = vmatprep.mubr.f32.mxu0 0.0
    %3576 = vmatmul.mubr.f32.gmra.mrb[0].mxu0 %v3343
    %v3577 = vpop.f32.mrb[0].mxu0
    %v3578 = vadd.f32 0.0, %v3577
    %v3579 = vpop.f32.mrb[0].mxu0
    %3580 = vmatprep.mubr.f32.mxu0 0.0
    %3581 = vmatmul.mubr.f32.gmra.mrb[0].mxu0 %v3344
    %v3582 = vpop.f32.mrb[0].mxu0
    %v3583 = vadd.f32 0.0, %v3582
    %v3584 = vpop.f32.mrb[0].mxu0
    %3585 = vdwg.mxu0
    %vm3586 = vcmp.eq.s32.totalorder %v2752, 1
    %vm3587 = vcmp.eq.s32.totalorder %v2753, 1
    %vm3588 = vcmp.eq.s32.totalorder %v2754, 1
    %vm3589 = vcmp.eq.s32.totalorder %v2755, 1
    %vm3590 = vcmp.eq.s32.totalorder %v2756, 1
    %vm3591 = vcmp.eq.s32.totalorder %v2757, 1
    %vm3592 = vcmp.eq.s32.totalorder %v2758, 1
    %vm3593 = vcmp.eq.s32.totalorder %v2759, 1
    %vm3594 = vcmp.eq.s32.totalorder %v2760, 1
    %vm3595 = vcmp.eq.s32.totalorder %v2761, 1
    %vm3596 = vcmp.eq.s32.totalorder %v2762, 1
    %vm3597 = vcmp.eq.s32.totalorder %v2763, 1
    %vm3598 = vcmp.eq.s32.totalorder %v2764, 1
    %vm3599 = vcmp.eq.s32.totalorder %v2765, 1
    %vm3600 = vcmp.eq.s32.totalorder %v2766, 1
    %vm3601 = vcmp.eq.s32.totalorder %v2767, 1
    %vm3602 = vcmp.eq.s32.totalorder %v2768, 1
    %vm3603 = vcmp.eq.s32.totalorder %v2769, 1
    %vm3604 = vcmp.eq.s32.totalorder %v2770, 1
    %vm3605 = vcmp.eq.s32.totalorder %v2771, 1
    %vm3606 = vcmp.eq.s32.totalorder %v2772, 1
    %vm3607 = vcmp.eq.s32.totalorder %v2773, 1
    %vm3608 = vcmp.eq.s32.totalorder %v2774, 1
    %vm3609 = vcmp.eq.s32.totalorder %v2775, 1
    %vm3610 = vcmp.eq.s32.totalorder %v2776, 1
    %vm3611 = vcmp.eq.s32.totalorder %v2777, 1
    %vm3612 = vcmp.eq.s32.totalorder %v2778, 1
    %vm3613 = vcmp.eq.s32.totalorder %v2779, 1
    %vm3614 = vcmp.eq.s32.totalorder %v2780, 1
    %vm3615 = vcmp.eq.s32.totalorder %v2781, 1
    %vm3616 = vcmp.eq.s32.totalorder %v2782, 1
    %vm3617 = vcmp.eq.s32.totalorder %v2783, 1
    %v3618 = vsel %vm3586, 1, 0
    %v3619 = vsel %vm3587, 1, 0
    %v3620 = vsel %vm3588, 1, 0
    %v3621 = vsel %vm3589, 1, 0
    %v3622 = vsel %vm3590, 1, 0
    %v3623 = vsel %vm3591, 1, 0
    %v3624 = vsel %vm3592, 1, 0
    %v3625 = vsel %vm3593, 1, 0
    %v3626 = vsel %vm3594, 1, 0
    %v3627 = vsel %vm3595, 1, 0
    %v3628 = vsel %vm3596, 1, 0
    %v3629 = vsel %vm3597, 1, 0
    %v3630 = vsel %vm3598, 1, 0
    %v3631 = vsel %vm3599, 1, 0
    %v3632 = vsel %vm3600, 1, 0
    %v3633 = vsel %vm3601, 1, 0
    %v3634 = vsel %vm3602, 1, 0
    %v3635 = vsel %vm3603, 1, 0
    %v3636 = vsel %vm3604, 1, 0
    %v3637 = vsel %vm3605, 1, 0
    %v3638 = vsel %vm3606, 1, 0
    %v3639 = vsel %vm3607, 1, 0
    %v3640 = vsel %vm3608, 1, 0
    %v3641 = vsel %vm3609, 1, 0
    %v3642 = vsel %vm3610, 1, 0
    %v3643 = vsel %vm3611, 1, 0
    %v3644 = vsel %vm3612, 1, 0
    %v3645 = vsel %vm3613, 1, 0
    %v3646 = vsel %vm3614, 1, 0
    %v3647 = vsel %vm3615, 1, 0
    %v3648 = vsel %vm3616, 1, 0
    %v3649 = vsel %vm3617, 1, 0
    %3650 = vset.pattern.permute.xlu0 2
    %3651 = vperm.xlu0 %3650, %v3618
    %v3652 = vpop.permute.xlu0 %3651
    %3653 = vset.pattern.permute.xlu0 2
    %3654 = vperm.xlu0 %3653, %v3619
    %v3655 = vpop.permute.xlu0 %3654
    %3656 = vset.pattern.permute.xlu0 2
    %3657 = vperm.xlu0 %3656, %v3620
    %v3658 = vpop.permute.xlu0 %3657
    %3659 = vset.pattern.permute.xlu0 2
    %3660 = vperm.xlu0 %3659, %v3621
    %v3661 = vpop.permute.xlu0 %3660
    %3662 = vset.pattern.permute.xlu0 2
    %3663 = vperm.xlu0 %3662, %v3622
    %v3664 = vpop.permute.xlu0 %3663
    %3665 = vset.pattern.permute.xlu0 2
    %3666 = vperm.xlu0 %3665, %v3623
    %v3667 = vpop.permute.xlu0 %3666
    %3668 = vset.pattern.permute.xlu0 2
    %3669 = vperm.xlu0 %3668, %v3624
    %v3670 = vpop.permute.xlu0 %3669
    %3671 = vset.pattern.permute.xlu0 2
    %3672 = vperm.xlu0 %3671, %v3625
    %v3673 = vpop.permute.xlu0 %3672
    %3674 = vset.pattern.permute.xlu0 2
    %3675 = vperm.xlu0 %3674, %v3626
    %v3676 = vpop.permute.xlu0 %3675
    %3677 = vset.pattern.permute.xlu0 2
    %3678 = vperm.xlu0 %3677, %v3627
    %v3679 = vpop.permute.xlu0 %3678
    %3680 = vset.pattern.permute.xlu0 2
    %3681 = vperm.xlu0 %3680, %v3628
    %v3682 = vpop.permute.xlu0 %3681
    %3683 = vset.pattern.permute.xlu0 2
    %3684 = vperm.xlu0 %3683, %v3629
    %v3685 = vpop.permute.xlu0 %3684
    %3686 = vset.pattern.permute.xlu0 2
    %3687 = vperm.xlu0 %3686, %v3630
    %v3688 = vpop.permute.xlu0 %3687
    %3689 = vset.pattern.permute.xlu0 2
    %3690 = vperm.xlu0 %3689, %v3631
    %v3691 = vpop.permute.xlu0 %3690
    %3692 = vset.pattern.permute.xlu0 2
    %3693 = vperm.xlu0 %3692, %v3632
    %v3694 = vpop.permute.xlu0 %3693
    %3695 = vset.pattern.permute.xlu0 2
    %3696 = vperm.xlu0 %3695, %v3633
    %v3697 = vpop.permute.xlu0 %3696
    %3698 = vset.pattern.permute.xlu0 2
    %3699 = vperm.xlu0 %3698, %v3634
    %v3700 = vpop.permute.xlu0 %3699
    %3701 = vset.pattern.permute.xlu0 2
    %3702 = vperm.xlu0 %3701, %v3635
    %v3703 = vpop.permute.xlu0 %3702
    %3704 = vset.pattern.permute.xlu0 2
    %3705 = vperm.xlu0 %3704, %v3636
    %v3706 = vpop.permute.xlu0 %3705
    %3707 = vset.pattern.permute.xlu0 2
    %3708 = vperm.xlu0 %3707, %v3637
    %v3709 = vpop.permute.xlu0 %3708
    %3710 = vset.pattern.permute.xlu0 2
    %3711 = vperm.xlu0 %3710, %v3638
    %v3712 = vpop.permute.xlu0 %3711
    %3713 = vset.pattern.permute.xlu0 2
    %3714 = vperm.xlu0 %3713, %v3639
    %v3715 = vpop.permute.xlu0 %3714
    %3716 = vset.pattern.permute.xlu0 2
    %3717 = vperm.xlu0 %3716, %v3640
    %v3718 = vpop.permute.xlu0 %3717
    %3719 = vset.pattern.permute.xlu0 2
    %3720 = vperm.xlu0 %3719, %v3641
    %v3721 = vpop.permute.xlu0 %3720
    %3722 = vset.pattern.permute.xlu0 2
    %3723 = vperm.xlu0 %3722, %v3642
    %v3724 = vpop.permute.xlu0 %3723
    %3725 = vset.pattern.permute.xlu0 2
    %3726 = vperm.xlu0 %3725, %v3643
    %v3727 = vpop.permute.xlu0 %3726
    %3728 = vset.pattern.permute.xlu0 2
    %3729 = vperm.xlu0 %3728, %v3644
    %v3730 = vpop.permute.xlu0 %3729
    %3731 = vset.pattern.permute.xlu0 2
    %3732 = vperm.xlu0 %3731, %v3645
    %v3733 = vpop.permute.xlu0 %3732
    %3734 = vset.pattern.permute.xlu0 2
    %3735 = vperm.xlu0 %3734, %v3646
    %v3736 = vpop.permute.xlu0 %3735
    %3737 = vset.pattern.permute.xlu0 2
    %3738 = vperm.xlu0 %3737, %v3647
    %v3739 = vpop.permute.xlu0 %3738
    %3740 = vset.pattern.permute.xlu0 2
    %3741 = vperm.xlu0 %3740, %v3648
    %v3742 = vpop.permute.xlu0 %3741
    %3743 = vset.pattern.permute.xlu0 2
    %3744 = vperm.xlu0 %3743, %v3649
    %v3745 = vpop.permute.xlu0 %3744
    %vm3746 = vcmp.eq.s32.totalorder %v3652, 1
    %vm3747 = vcmp.eq.s32.totalorder %v3655, 1
    %vm3748 = vcmp.eq.s32.totalorder %v3658, 1
    %vm3749 = vcmp.eq.s32.totalorder %v3661, 1
    %vm3750 = vcmp.eq.s32.totalorder %v3664, 1
    %vm3751 = vcmp.eq.s32.totalorder %v3667, 1
    %vm3752 = vcmp.eq.s32.totalorder %v3670, 1
    %vm3753 = vcmp.eq.s32.totalorder %v3673, 1
    %vm3754 = vcmp.eq.s32.totalorder %v3676, 1
    %vm3755 = vcmp.eq.s32.totalorder %v3679, 1
    %vm3756 = vcmp.eq.s32.totalorder %v3682, 1
    %vm3757 = vcmp.eq.s32.totalorder %v3685, 1
    %vm3758 = vcmp.eq.s32.totalorder %v3688, 1
    %vm3759 = vcmp.eq.s32.totalorder %v3691, 1
    %vm3760 = vcmp.eq.s32.totalorder %v3694, 1
    %vm3761 = vcmp.eq.s32.totalorder %v3697, 1
    %vm3762 = vcmp.eq.s32.totalorder %v3700, 1
    %vm3763 = vcmp.eq.s32.totalorder %v3703, 1
    %vm3764 = vcmp.eq.s32.totalorder %v3706, 1
    %vm3765 = vcmp.eq.s32.totalorder %v3709, 1
    %vm3766 = vcmp.eq.s32.totalorder %v3712, 1
    %vm3767 = vcmp.eq.s32.totalorder %v3715, 1
    %vm3768 = vcmp.eq.s32.totalorder %v3718, 1
    %vm3769 = vcmp.eq.s32.totalorder %v3721, 1
    %vm3770 = vcmp.eq.s32.totalorder %v3724, 1
    %vm3771 = vcmp.eq.s32.totalorder %v3727, 1
    %vm3772 = vcmp.eq.s32.totalorder %v3730, 1
    %vm3773 = vcmp.eq.s32.totalorder %v3733, 1
    %vm3774 = vcmp.eq.s32.totalorder %v3736, 1
    %vm3775 = vcmp.eq.s32.totalorder %v3739, 1
    %vm3776 = vcmp.eq.s32.totalorder %v3742, 1
    %vm3777 = vcmp.eq.s32.totalorder %v3745, 1
    %v3778 = vsel %vm3746, %v3428, %v3313
    %v3779 = vsel %vm3747, %v3433, %v3314
    %v3780 = vsel %vm3748, %v3438, %v3315
    %v3781 = vsel %vm3749, %v3443, %v3316
    %v3782 = vsel %vm3750, %v3448, %v3317
    %v3783 = vsel %vm3751, %v3453, %v3318
    %v3784 = vsel %vm3752, %v3458, %v3319
    %v3785 = vsel %vm3753, %v3463, %v3320
    %v3786 = vsel %vm3754, %v3468, %v3321
    %v3787 = vsel %vm3755, %v3473, %v3322
    %v3788 = vsel %vm3756, %v3478, %v3323
    %v3789 = vsel %vm3757, %v3483, %v3324
    %v3790 = vsel %vm3758, %v3488, %v3325
    %v3791 = vsel %vm3759, %v3493, %v3326
    %v3792 = vsel %vm3760, %v3498, %v3327
    %v3793 = vsel %vm3761, %v3503, %v3328
    %v3794 = vsel %vm3762, %v3508, %v3329
    %v3795 = vsel %vm3763, %v3513, %v3330
    %v3796 = vsel %vm3764, %v3518, %v3331
    %v3797 = vsel %vm3765, %v3523, %v3332
    %v3798 = vsel %vm3766, %v3528, %v3333
    %v3799 = vsel %vm3767, %v3533, %v3334
    %v3800 = vsel %vm3768, %v3538, %v3335
    %v3801 = vsel %vm3769, %v3543, %v3336
    %v3802 = vsel %vm3770, %v3548, %v3337
    %v3803 = vsel %vm3771, %v3553, %v3338
    %v3804 = vsel %vm3772, %v3558, %v3339
    %v3805 = vsel %vm3773, %v3563, %v3340
    %v3806 = vsel %vm3774, %v3568, %v3341
    %v3807 = vsel %vm3775, %v3573, %v3342
    %v3808 = vsel %vm3776, %v3578, %v3343
    %v3809 = vsel %vm3777, %v3583, %v3344
    %3810 = vst [vmem:[#allocation2] sm:$0xff] %v3778
    %3811 = vst [vmem:[#allocation2 + $0x8] sm:$0xff] %v3779
    %3812 = vst [vmem:[#allocation2 + $0x10] sm:$0xff] %v3780
    %3813 = vst [vmem:[#allocation2 + $0x18] sm:$0xff] %v3781
    %3814 = vst [vmem:[#allocation2 + $0x20] sm:$0xff] %v3782
    %3815 = vst [vmem:[#allocation2 + $0x28] sm:$0xff] %v3783
    %3816 = vst [vmem:[#allocation2 + $0x30] sm:$0xff] %v3784
    %3817 = vst [vmem:[#allocation2 + $0x38] sm:$0xff] %v3785
    %3818 = vst [vmem:[#allocation2 + $0x40] sm:$0xff] %v3786
    %3819 = vst [vmem:[#allocation2 + $0x48] sm:$0xff] %v3787
    %3820 = vst [vmem:[#allocation2 + $0x50] sm:$0xff] %v3788
    %3821 = vst [vmem:[#allocation2 + $0x58] sm:$0xff] %v3789
    %3822 = vst [vmem:[#allocation2 + $0x60] sm:$0xff] %v3790
    %3823 = vst [vmem:[#allocation2 + $0x68] sm:$0xff] %v3791
    %3824 = vst [vmem:[#allocation2 + $0x70] sm:$0xff] %v3792
    %3825 = vst [vmem:[#allocation2 + $0x78] sm:$0xff] %v3793
    %3826 = vst [vmem:[#allocation2 + $0x80] sm:$0xff] %v3794
    %3827 = vst [vmem:[#allocation2 + $0x88] sm:$0xff] %v3795
    %3828 = vst [vmem:[#allocation2 + $0x90] sm:$0xff] %v3796
    %3829 = vst [vmem:[#allocation2 + $0x98] sm:$0xff] %v3797
    %3830 = vst [vmem:[#allocation2 + $0xa0] sm:$0xff] %v3798
    %3831 = vst [vmem:[#allocation2 + $0xa8] sm:$0xff] %v3799
    %3832 = vst [vmem:[#allocation2 + $0xb0] sm:$0xff] %v3800
    %3833 = vst [vmem:[#allocation2 + $0xb8] sm:$0xff] %v3801
    %3834 = vst [vmem:[#allocation2 + $0xc0] sm:$0xff] %v3802
    %3835 = vst [vmem:[#allocation2 + $0xc8] sm:$0xff] %v3803
    %3836 = vst [vmem:[#allocation2 + $0xd0] sm:$0xff] %v3804
    %3837 = vst [vmem:[#allocation2 + $0xd8] sm:$0xff] %v3805
    %3838 = vst [vmem:[#allocation2 + $0xe0] sm:$0xff] %v3806
    %3839 = vst [vmem:[#allocation2 + $0xe8] sm:$0xff] %v3807
    %3840 = vst [vmem:[#allocation2 + $0xf0] sm:$0xff] %v3808
    %3841 = vst [vmem:[#allocation2 + $0xf8] sm:$0xff] %v3809
    // Predicated region
    $region10: #{tpu_custom_call.1} parent=1 // pred_check
      _
    $region11: #{tpu_custom_call.1} parent=1 // pred_check_branch
      %3843 = sbr.rel (0) target = $region13
    $region12: #{tpu_custom_call.1} parent=1 // pred_region
      %s3845 = ssub.s32 4096, 4096
      %3846 = vsyncadd [#allocation3], %s3845
      %s3847 = sshll.u32 [#allocation2], 4
      %s3848 = int_to_ptr.vmem [resolvable:$true] %s3847
      %3853 = dma.vmem_to_hbm [thread:$0]  %s3848, 4096, %s2, [#allocation3], 128, 128, 8
    $region13: #{tpu_custom_call.1} parent=1 // pred_fallthru
      _
    // Predicated region
    $region14: #{tpu_custom_call.1} parent=1 // pred_check
      _
    $region15: #{tpu_custom_call.1} parent=1 // pred_check_branch
      %3855 = sbr.rel (0) target = $region17
    $region16: #{tpu_custom_call.1} parent=1 // pred_region
      %3856 = dma.done [#allocation3], 4096
    $region17: #{tpu_custom_call.1} parent=1 // pred_fallthru
      _
    %3857 = vsyncpa [#allocation3], 1

</llo_original>
